<compile_context>
chip_gen: v7x
topology: tpu7x:2x2x1
jax: 0.10.0
libtpu: 0.0.40
codegen_flags: <defaults>
</compile_context>

<pallas_src>
import jax
import jax.numpy as jnp
from jax.experimental import pallas as pl
from jax.experimental.pallas import tpu as pltpu


# ------------------------------- config -------------------------------------

RANK_IN = 64
PHI_DIM = 256          # base_model='LARP' -> phi_u_dim = phi_v_dim = 256
MODEL_SELECT = [512, 256, 256]
RANK_OUT = 256
BN_EPS = 1e-3

# Matmul operand dtype.  Keep f32 to match PyTorch numerics at these tiny
# shapes; flip to jnp.bfloat16 on v6e/v7x at large batch for higher matmul
# throughput (accumulation stays f32 via preferred_element_type).
COMPUTE_DTYPE = jnp.float32


# --------------------------- fused Pallas kernel ----------------------------

def _mm(x, w):
    """MXU matmul with f32 accumulation."""
    return jnp.dot(x.astype(COMPUTE_DTYPE), w.astype(COMPUTE_DTYPE),
                   preferred_element_type=jnp.float32)


def _bn_tanh(y):
    """BatchNorm1d (train-mode batch stats, eps=1e-3, gamma=1, beta=0) + tanh.

    Batch statistics span the full batch because the whole batch is one block.
    # TODO(synk): if the batch is ever tiled across a grid axis, restructure
    # this as a two-pass (sum / sum-of-squares) reduction so the statistics
    # stay batch-wide.
    """
    inv_n = 1.0 / y.shape[0]                              # static -> mul, not div
    mean = jnp.sum(y, axis=0, keepdims=True) * inv_n
    d = y - mean
    var = jnp.sum(d * d, axis=0, keepdims=True) * inv_n   # biased var (PyTorch BN)
    return jnp.tanh(d * jax.lax.rsqrt(var + BN_EPS))


def _tower(x_pref, x_cont, wp1, wc1, b1, w2, b2, w3, b3, we, be):
    h = _bn_tanh(_mm(x_pref, wp1) + _mm(x_cont, wc1) + b1)   # [N, 512]
    h = _bn_tanh(_mm(h, w2) + b2)                            # [N, 256]
    h = _bn_tanh(_mm(h, w3) + b3)                            # [N, 256]
    return _mm(h, we) + be                                   # [N, 256]


def fused_forward_kernel(uin_ref, ucont_ref, vin_ref, vcont_ref,
                         u_wp1, u_wc1, u_b1, u_w2, u_b2, u_w3, u_b3, u_we, u_be,
                         v_wp1, v_wc1, v_b1, v_w2, v_b2, v_w3, v_b3, v_we, v_be,
                         o_ref):
    # ---- user tower ----
    U = _tower(uin_ref[...], ucont_ref[...],
               u_wp1[...], u_wc1[...], u_b1[...],
               u_w2[...], u_b2[...], u_w3[...], u_b3[...], u_we[...], u_be[...])
    # ---- item tower ----
    V = _tower(vin_ref[...], vcont_ref[...],
               v_wp1[...], v_wc1[...], v_b1[...],
               v_w2[...], v_b2[...], v_w3[...], v_b3[...], v_we[...], v_be[...])

    # ---- MSE head (register-level epilogue) ----
    preds = jnp.sum(U * V, axis=1, keepdims=True)            # [N, 1]
    n = preds.shape[0]
    row = jax.lax.broadcasted_iota(jnp.int32, preds.shape, 0)
    target = jnp.where(row % 2 == 0, 1.0, 0.0).astype(jnp.float32)  # [1,0,1,0,...]
    diff = preds - target
    loss = jnp.sum(diff * diff, keepdims=True) * (1.0 / n)   # [1, 1]
    o_ref[...] = jnp.broadcast_to(loss, o_ref.shape)          # lane-dense (1,128) store


# ------------------------------ wrapper --------------------------------------

def _full_spec(a):
    # Full-array VMEM block (block shape == array shape -> no (8,128) issue).
    return pl.BlockSpec(a.shape, lambda *_: (0,) * a.ndim)


def _flatten_tower(layers, emb):
    (w1, b1), (w2, b2), (w3, b3) = layers
    we, be = emb
    # Split first-layer weight so the concat is never materialized.
    wp1, wc1 = w1[:RANK_IN], w1[RANK_IN:]
    return [wp1, wc1, b1, w2, b2, w3, b3, we, be]


def dropoutnet_loss(params, uin, ucontent, vin, vcontent):
    operands = ([uin, ucontent, vin, vcontent]
                + _flatten_tower(params["u_layers"], params["u_emb"])
                + _flatten_tower(params["v_layers"], params["v_emb"]))
    loss_padded = pl.pallas_call(
        fused_forward_kernel,
        grid=(1,),
        in_specs=[_full_spec(a) for a in operands],
        out_specs=pl.BlockSpec((1, 128), lambda *_: (0, 0)),
        out_shape=jax.ShapeDtypeStruct((1, 128), jnp.float32),
        compiler_params=pltpu.CompilerParams(
            dimension_semantics=("arbitrary",)),
    )(*operands)
    return loss_padded[0, 0]


# ------------------------------ model (glue) ---------------------------------

def trunc_normal(key, shape, std=0.01):
    # matches truncated_normal_(std=0.01): N(0,1) truncated to (-2,2), scaled by std
    return std * jax.random.truncated_normal(key, -2.0, 2.0, shape, jnp.float32)


def init_params(key):
    dims = [RANK_IN + PHI_DIM] + MODEL_SELECT          # [320, 512, 256, 256]
    keys = iter(jax.random.split(key, 8))

    def tower():
        layers = []
        for i in range(len(dims) - 1):
            w = trunc_normal(next(keys), (dims[i], dims[i + 1]))   # [D_in, D_out]
            b = jnp.zeros((1, dims[i + 1]), jnp.float32)
            layers.append((w, b))
        emb = (trunc_normal(next(keys), (dims[-1], RANK_OUT)),
               jnp.zeros((1, RANK_OUT), jnp.float32))
        return layers, emb

    u_layers, u_emb = tower()
    v_layers, v_emb = tower()
    # NOTE: p_f / c_f Linears exist in the PyTorch module but are unused in
    # forward(); they are intentionally not created here.
    return {"u_layers": u_layers, "u_emb": u_emb,
            "v_layers": v_layers, "v_emb": v_emb}


def _gather_batch(uid, items, user_pref, item_pref, user_content, item_content):
    uid2 = jnp.repeat(uid, 2)                           # repeat_interleave(2) -> [2B]
    vid = items.reshape(-1)                             # [2B]
    Uin = user_pref[uid2]                               # [2B, 64]
    Vin = item_pref[vid]                                # [2B, 64]
    Ucontent = user_content[uid2]                       # [2B, 256]
    Vcontent = item_content[vid]                        # [2B, 256]
    return Uin, Ucontent, Vin, Vcontent


def dropoutnet_forward(params, uid, items, user_pref, item_pref,
                       user_content, item_content):
    Uin, Ucontent, Vin, Vcontent = _gather_batch(
        uid, items, user_pref, item_pref, user_content, item_content)
    # NOTE: the PyTorch "dropout" block (`Uin[u_indices].zero_()`) zeroes a copy
    # produced by advanced indexing, so it has NO effect on Uin/Vin; it is
    # intentionally omitted to preserve the actual forward semantics.
    return dropoutnet_loss(params, Uin, Ucontent, Vin, Vcontent)


# --------------------------- pure-JAX reference ------------------------------

def _ref_loss(params, uin, ucontent, vin, vcontent):
    hp = jax.lax.Precision.HIGHEST

    def bn_tanh(y):
        mean = jnp.mean(y, axis=0, keepdims=True)
        var = jnp.mean((y - mean) ** 2, axis=0, keepdims=True)
        return jnp.tanh((y - mean) / jnp.sqrt(var + BN_EPS))

    def tower(xp, xc, layers, emb):
        x = jnp.concatenate([xp, xc], axis=1)
        for w, b in layers:
            x = bn_tanh(jnp.dot(x, w, precision=hp) + b)
        we, be = emb
        return jnp.dot(x, we, precision=hp) + be

    U = tower(uin, ucontent, params["u_layers"], params["u_emb"])
    V = tower(vin, vcontent, params["v_layers"], params["v_emb"])
    preds = jnp.sum(U * V, axis=1)
    n = preds.shape[0]
    target = jnp.where(jnp.arange(n) % 2 == 0, 1.0, 0.0)
    return jnp.mean((preds - target) ** 2)


# ----------------------------------- main ------------------------------------

if __name__ == "__main__":
    key = jax.random.PRNGKey(0)
    k_param, k_up, k_ip, k_uc, k_ic, k_uid, k_items = jax.random.split(key, 7)

    params = init_params(k_param)

    num_users, num_items = 10, 12
    B = 4                                               # -> 2B = 8 rows per tower
    user_pref = jax.random.normal(k_up, (num_users, RANK_IN), jnp.float32)
    item_pref = jax.random.normal(k_ip, (num_items, RANK_IN), jnp.float32)
    user_content = jax.random.normal(k_uc, (num_users, PHI_DIM), jnp.float32)
    item_content = jax.random.normal(k_ic, (num_items, PHI_DIM), jnp.float32)

    uid = jax.random.randint(k_uid, (B,), 0, num_users)
    items = jax.random.randint(k_items, (B, 2), 0, num_items)

    loss = jax.jit(dropoutnet_forward)(params, uid, items, user_pref, item_pref,
                                       user_content, item_content)
    jax.block_until_ready(loss)
    assert loss.shape == () and bool(jnp.isfinite(loss))

    # Correctness check against a pure-JAX reference (loose tolerance to allow
    # for matmul-pass / transcendental implementation differences).
    Uin, Ucontent, Vin, Vcontent = _gather_batch(
        uid, items, user_pref, item_pref, user_content, item_content)
    ref = _ref_loss(params, Uin, Ucontent, Vin, Vcontent)
    assert abs(float(loss) - float(ref)) < 1e-2, (float(loss), float(ref))

    print("KERNEL_OK")
</pallas_src>

<mosaic_0001>
module attributes {stable_mosaic.version = 11 : i64} {
  func.func @fused_forward_kernel(%arg0: i32, %arg1: memref<8x64xf32, #tpu.memory_space<vmem>>, %arg2: memref<8x256xf32, #tpu.memory_space<vmem>>, %arg3: memref<8x64xf32, #tpu.memory_space<vmem>>, %arg4: memref<8x256xf32, #tpu.memory_space<vmem>>, %arg5: memref<64x512xf32, #tpu.memory_space<vmem>>, %arg6: memref<256x512xf32, #tpu.memory_space<vmem>>, %arg7: memref<1x512xf32, #tpu.memory_space<vmem>>, %arg8: memref<512x256xf32, #tpu.memory_space<vmem>>, %arg9: memref<1x256xf32, #tpu.memory_space<vmem>>, %arg10: memref<256x256xf32, #tpu.memory_space<vmem>>, %arg11: memref<1x256xf32, #tpu.memory_space<vmem>>, %arg12: memref<256x256xf32, #tpu.memory_space<vmem>>, %arg13: memref<1x256xf32, #tpu.memory_space<vmem>>, %arg14: memref<64x512xf32, #tpu.memory_space<vmem>>, %arg15: memref<256x512xf32, #tpu.memory_space<vmem>>, %arg16: memref<1x512xf32, #tpu.memory_space<vmem>>, %arg17: memref<512x256xf32, #tpu.memory_space<vmem>>, %arg18: memref<1x256xf32, #tpu.memory_space<vmem>>, %arg19: memref<256x256xf32, #tpu.memory_space<vmem>>, %arg20: memref<1x256xf32, #tpu.memory_space<vmem>>, %arg21: memref<256x256xf32, #tpu.memory_space<vmem>>, %arg22: memref<1x256xf32, #tpu.memory_space<vmem>>, %arg23: memref<1x128xf32, #tpu.memory_space<vmem>>) attributes {dimension_semantics = [#tpu.dimension_semantics<arbitrary>], iteration_bounds = array<i64: 1>, scalar_prefetch = 0 : i64, scratch_operands = 0 : i64, tpu.core_type = #tpu.core_type<tc>, window_params = [{pipeline_mode = #tpu.pipeline_mode<synchronous>, transform_indices = @transform_0, window_bounds = array<i64: 8, 64>}, {pipeline_mode = #tpu.pipeline_mode<synchronous>, transform_indices = @transform_1, window_bounds = array<i64: 8, 256>}, {pipeline_mode = #tpu.pipeline_mode<synchronous>, transform_indices = @transform_2, window_bounds = array<i64: 8, 64>}, {pipeline_mode = #tpu.pipeline_mode<synchronous>, transform_indices = @transform_3, window_bounds = array<i64: 8, 256>}, {pipeline_mode = #tpu.pipeline_mode<synchronous>, transform_indices = @transform_4, window_bounds = array<i64: 64, 512>}, {pipeline_mode = #tpu.pipeline_mode<synchronous>, transform_indices = @transform_5, window_bounds = array<i64: 256, 512>}, {pipeline_mode = #tpu.pipeline_mode<synchronous>, transform_indices = @transform_6, window_bounds = array<i64: 1, 512>}, {pipeline_mode = #tpu.pipeline_mode<synchronous>, transform_indices = @transform_7, window_bounds = array<i64: 512, 256>}, {pipeline_mode = #tpu.pipeline_mode<synchronous>, transform_indices = @transform_8, window_bounds = array<i64: 1, 256>}, {pipeline_mode = #tpu.pipeline_mode<synchronous>, transform_indices = @transform_9, window_bounds = array<i64: 256, 256>}, {pipeline_mode = #tpu.pipeline_mode<synchronous>, transform_indices = @transform_10, window_bounds = array<i64: 1, 256>}, {pipeline_mode = #tpu.pipeline_mode<synchronous>, transform_indices = @transform_11, window_bounds = array<i64: 256, 256>}, {pipeline_mode = #tpu.pipeline_mode<synchronous>, transform_indices = @transform_12, window_bounds = array<i64: 1, 256>}, {pipeline_mode = #tpu.pipeline_mode<synchronous>, transform_indices = @transform_13, window_bounds = array<i64: 64, 512>}, {pipeline_mode = #tpu.pipeline_mode<synchronous>, transform_indices = @transform_14, window_bounds = array<i64: 256, 512>}, {pipeline_mode = #tpu.pipeline_mode<synchronous>, transform_indices = @transform_15, window_bounds = array<i64: 1, 512>}, {pipeline_mode = #tpu.pipeline_mode<synchronous>, transform_indices = @transform_16, window_bounds = array<i64: 512, 256>}, {pipeline_mode = #tpu.pipeline_mode<synchronous>, transform_indices = @transform_17, window_bounds = array<i64: 1, 256>}, {pipeline_mode = #tpu.pipeline_mode<synchronous>, transform_indices = @transform_18, window_bounds = array<i64: 256, 256>}, {pipeline_mode = #tpu.pipeline_mode<synchronous>, transform_indices = @transform_19, window_bounds = array<i64: 1, 256>}, {pipeline_mode = #tpu.pipeline_mode<synchronous>, transform_indices = @transform_20, window_bounds = array<i64: 256, 256>}, {pipeline_mode = #tpu.pipeline_mode<synchronous>, transform_indices = @transform_21, window_bounds = array<i64: 1, 256>}, {pipeline_mode = #tpu.pipeline_mode<synchronous>, transform_indices = @transform_22, window_bounds = array<i64: 1, 128>}]} {
    %c0 = arith.constant 0 : index
    %c0_0 = arith.constant 0 : index
    %0 = vector.load %arg1[%c0, %c0_0] : memref<8x64xf32, #tpu.memory_space<vmem>>, vector<8x64xf32>
    %c0_1 = arith.constant 0 : index
    %c0_2 = arith.constant 0 : index
    %1 = vector.load %arg2[%c0_1, %c0_2] : memref<8x256xf32, #tpu.memory_space<vmem>>, vector<8x256xf32>
    %c0_3 = arith.constant 0 : index
    %c0_4 = arith.constant 0 : index
    %2 = vector.load %arg5[%c0_3, %c0_4] : memref<64x512xf32, #tpu.memory_space<vmem>>, vector<64x512xf32>
    %c0_5 = arith.constant 0 : index
    %c0_6 = arith.constant 0 : index
    %3 = vector.load %arg6[%c0_5, %c0_6] : memref<256x512xf32, #tpu.memory_space<vmem>>, vector<256x512xf32>
    %c0_7 = arith.constant 0 : index
    %c0_8 = arith.constant 0 : index
    %4 = vector.load %arg7[%c0_7, %c0_8] : memref<1x512xf32, #tpu.memory_space<vmem>>, vector<1x512xf32>
    %c0_9 = arith.constant 0 : index
    %c0_10 = arith.constant 0 : index
    %5 = vector.load %arg8[%c0_9, %c0_10] : memref<512x256xf32, #tpu.memory_space<vmem>>, vector<512x256xf32>
    %c0_11 = arith.constant 0 : index
    %c0_12 = arith.constant 0 : index
    %6 = vector.load %arg9[%c0_11, %c0_12] : memref<1x256xf32, #tpu.memory_space<vmem>>, vector<1x256xf32>
    %c0_13 = arith.constant 0 : index
    %c0_14 = arith.constant 0 : index
    %7 = vector.load %arg10[%c0_13, %c0_14] : memref<256x256xf32, #tpu.memory_space<vmem>>, vector<256x256xf32>
    %c0_15 = arith.constant 0 : index
    %c0_16 = arith.constant 0 : index
    %8 = vector.load %arg11[%c0_15, %c0_16] : memref<1x256xf32, #tpu.memory_space<vmem>>, vector<1x256xf32>
    %c0_17 = arith.constant 0 : index
    %c0_18 = arith.constant 0 : index
    %9 = vector.load %arg12[%c0_17, %c0_18] : memref<256x256xf32, #tpu.memory_space<vmem>>, vector<256x256xf32>
    %c0_19 = arith.constant 0 : index
    %c0_20 = arith.constant 0 : index
    %10 = vector.load %arg13[%c0_19, %c0_20] : memref<1x256xf32, #tpu.memory_space<vmem>>, vector<1x256xf32>
    %cst = arith.constant dense<0.000000e+00> : vector<8x512xf32>
    %11 = tpu.matmul %0, %2, %cst {dimension_numbers = #tpu.dot_dimension_numbers<[1], [0], [0], [1], [0, 0, 1, 1], [], []>} : vector<8x64xf32>, vector<64x512xf32>, vector<8x512xf32> -> vector<8x512xf32>
    %cst_21 = arith.constant dense<0.000000e+00> : vector<8x512xf32>
    %12 = tpu.matmul %1, %3, %cst_21 {dimension_numbers = #tpu.dot_dimension_numbers<[1], [0], [0], [1], [0, 0, 1, 1], [], []>} : vector<8x256xf32>, vector<256x512xf32>, vector<8x512xf32> -> vector<8x512xf32>
    %13 = arith.addf %11, %12 : vector<8x512xf32>
    %14 = vector.broadcast %4 : vector<1x512xf32> to vector<8x512xf32>
    %15 = arith.addf %13, %14 : vector<8x512xf32>
    %cst_22 = arith.constant dense<0.000000e+00> : vector<512xf32>
    %16 = vector.multi_reduction <add>, %15, %cst_22 [0] : vector<8x512xf32> to vector<512xf32>
    %17 = vector.shape_cast %16 : vector<512xf32> to vector<1x512xf32>
    %cst_23 = arith.constant 1.250000e-01 : f32
    %18 = vector.broadcast %cst_23 : f32 to vector<1x512xf32>
    %19 = arith.mulf %17, %18 : vector<1x512xf32>
    %20 = vector.broadcast %19 : vector<1x512xf32> to vector<8x512xf32>
    %21 = arith.subf %15, %20 : vector<8x512xf32>
    %22 = arith.mulf %21, %21 : vector<8x512xf32>
    %cst_24 = arith.constant dense<0.000000e+00> : vector<512xf32>
    %23 = vector.multi_reduction <add>, %22, %cst_24 [0] : vector<8x512xf32> to vector<512xf32>
    %24 = vector.shape_cast %23 : vector<512xf32> to vector<1x512xf32>
    %cst_25 = arith.constant 1.250000e-01 : f32
    %25 = vector.broadcast %cst_25 : f32 to vector<1x512xf32>
    %26 = arith.mulf %24, %25 : vector<1x512xf32>
    %cst_26 = arith.constant 1.000000e-03 : f32
    %27 = vector.broadcast %cst_26 : f32 to vector<1x512xf32>
    %28 = arith.addf %26, %27 : vector<1x512xf32>
    %29 = math.rsqrt %28 : vector<1x512xf32>
    %30 = vector.broadcast %29 : vector<1x512xf32> to vector<8x512xf32>
    %31 = arith.mulf %21, %30 : vector<8x512xf32>
    %32 = math.tanh %31 : vector<8x512xf32>
    %cst_27 = arith.constant dense<0.000000e+00> : vector<8x256xf32>
    %33 = tpu.matmul %32, %5, %cst_27 {dimension_numbers = #tpu.dot_dimension_numbers<[1], [0], [0], [1], [0, 0, 1, 1], [], []>} : vector<8x512xf32>, vector<512x256xf32>, vector<8x256xf32> -> vector<8x256xf32>
    %34 = vector.broadcast %6 : vector<1x256xf32> to vector<8x256xf32>
    %35 = arith.addf %33, %34 : vector<8x256xf32>
    %cst_28 = arith.constant dense<0.000000e+00> : vector<256xf32>
    %36 = vector.multi_reduction <add>, %35, %cst_28 [0] : vector<8x256xf32> to vector<256xf32>
    %37 = vector.shape_cast %36 : vector<256xf32> to vector<1x256xf32>
    %cst_29 = arith.constant 1.250000e-01 : f32
    %38 = vector.broadcast %cst_29 : f32 to vector<1x256xf32>
    %39 = arith.mulf %37, %38 : vector<1x256xf32>
    %40 = vector.broadcast %39 : vector<1x256xf32> to vector<8x256xf32>
    %41 = arith.subf %35, %40 : vector<8x256xf32>
    %42 = arith.mulf %41, %41 : vector<8x256xf32>
    %cst_30 = arith.constant dense<0.000000e+00> : vector<256xf32>
    %43 = vector.multi_reduction <add>, %42, %cst_30 [0] : vector<8x256xf32> to vector<256xf32>
    %44 = vector.shape_cast %43 : vector<256xf32> to vector<1x256xf32>
    %cst_31 = arith.constant 1.250000e-01 : f32
    %45 = vector.broadcast %cst_31 : f32 to vector<1x256xf32>
    %46 = arith.mulf %44, %45 : vector<1x256xf32>
    %cst_32 = arith.constant 1.000000e-03 : f32
    %47 = vector.broadcast %cst_32 : f32 to vector<1x256xf32>
    %48 = arith.addf %46, %47 : vector<1x256xf32>
    %49 = math.rsqrt %48 : vector<1x256xf32>
    %50 = vector.broadcast %49 : vector<1x256xf32> to vector<8x256xf32>
    %51 = arith.mulf %41, %50 : vector<8x256xf32>
    %52 = math.tanh %51 : vector<8x256xf32>
    %cst_33 = arith.constant dense<0.000000e+00> : vector<8x256xf32>
    %53 = tpu.matmul %52, %7, %cst_33 {dimension_numbers = #tpu.dot_dimension_numbers<[1], [0], [0], [1], [0, 0, 1, 1], [], []>} : vector<8x256xf32>, vector<256x256xf32>, vector<8x256xf32> -> vector<8x256xf32>
    %54 = vector.broadcast %8 : vector<1x256xf32> to vector<8x256xf32>
    %55 = arith.addf %53, %54 : vector<8x256xf32>
    %cst_34 = arith.constant dense<0.000000e+00> : vector<256xf32>
    %56 = vector.multi_reduction <add>, %55, %cst_34 [0] : vector<8x256xf32> to vector<256xf32>
    %57 = vector.shape_cast %56 : vector<256xf32> to vector<1x256xf32>
    %cst_35 = arith.constant 1.250000e-01 : f32
    %58 = vector.broadcast %cst_35 : f32 to vector<1x256xf32>
    %59 = arith.mulf %57, %58 : vector<1x256xf32>
    %60 = vector.broadcast %59 : vector<1x256xf32> to vector<8x256xf32>
    %61 = arith.subf %55, %60 : vector<8x256xf32>
    %62 = arith.mulf %61, %61 : vector<8x256xf32>
    %cst_36 = arith.constant dense<0.000000e+00> : vector<256xf32>
    %63 = vector.multi_reduction <add>, %62, %cst_36 [0] : vector<8x256xf32> to vector<256xf32>
    %64 = vector.shape_cast %63 : vector<256xf32> to vector<1x256xf32>
    %cst_37 = arith.constant 1.250000e-01 : f32
    %65 = vector.broadcast %cst_37 : f32 to vector<1x256xf32>
    %66 = arith.mulf %64, %65 : vector<1x256xf32>
    %cst_38 = arith.constant 1.000000e-03 : f32
    %67 = vector.broadcast %cst_38 : f32 to vector<1x256xf32>
    %68 = arith.addf %66, %67 : vector<1x256xf32>
    %69 = math.rsqrt %68 : vector<1x256xf32>
    %70 = vector.broadcast %69 : vector<1x256xf32> to vector<8x256xf32>
    %71 = arith.mulf %61, %70 : vector<8x256xf32>
    %72 = math.tanh %71 : vector<8x256xf32>
    %cst_39 = arith.constant dense<0.000000e+00> : vector<8x256xf32>
    %73 = tpu.matmul %72, %9, %cst_39 {dimension_numbers = #tpu.dot_dimension_numbers<[1], [0], [0], [1], [0, 0, 1, 1], [], []>} : vector<8x256xf32>, vector<256x256xf32>, vector<8x256xf32> -> vector<8x256xf32>
    %74 = vector.broadcast %10 : vector<1x256xf32> to vector<8x256xf32>
    %75 = arith.addf %73, %74 : vector<8x256xf32>
    %c0_40 = arith.constant 0 : index
    %c0_41 = arith.constant 0 : index
    %76 = vector.load %arg3[%c0_40, %c0_41] : memref<8x64xf32, #tpu.memory_space<vmem>>, vector<8x64xf32>
    %c0_42 = arith.constant 0 : index
    %c0_43 = arith.constant 0 : index
    %77 = vector.load %arg4[%c0_42, %c0_43] : memref<8x256xf32, #tpu.memory_space<vmem>>, vector<8x256xf32>
    %c0_44 = arith.constant 0 : index
    %c0_45 = arith.constant 0 : index
    %78 = vector.load %arg14[%c0_44, %c0_45] : memref<64x512xf32, #tpu.memory_space<vmem>>, vector<64x512xf32>
    %c0_46 = arith.constant 0 : index
    %c0_47 = arith.constant 0 : index
    %79 = vector.load %arg15[%c0_46, %c0_47] : memref<256x512xf32, #tpu.memory_space<vmem>>, vector<256x512xf32>
    %c0_48 = arith.constant 0 : index
    %c0_49 = arith.constant 0 : index
    %80 = vector.load %arg16[%c0_48, %c0_49] : memref<1x512xf32, #tpu.memory_space<vmem>>, vector<1x512xf32>
    %c0_50 = arith.constant 0 : index
    %c0_51 = arith.constant 0 : index
    %81 = vector.load %arg17[%c0_50, %c0_51] : memref<512x256xf32, #tpu.memory_space<vmem>>, vector<512x256xf32>
    %c0_52 = arith.constant 0 : index
    %c0_53 = arith.constant 0 : index
    %82 = vector.load %arg18[%c0_52, %c0_53] : memref<1x256xf32, #tpu.memory_space<vmem>>, vector<1x256xf32>
    %c0_54 = arith.constant 0 : index
    %c0_55 = arith.constant 0 : index
    %83 = vector.load %arg19[%c0_54, %c0_55] : memref<256x256xf32, #tpu.memory_space<vmem>>, vector<256x256xf32>
    %c0_56 = arith.constant 0 : index
    %c0_57 = arith.constant 0 : index
    %84 = vector.load %arg20[%c0_56, %c0_57] : memref<1x256xf32, #tpu.memory_space<vmem>>, vector<1x256xf32>
    %c0_58 = arith.constant 0 : index
    %c0_59 = arith.constant 0 : index
    %85 = vector.load %arg21[%c0_58, %c0_59] : memref<256x256xf32, #tpu.memory_space<vmem>>, vector<256x256xf32>
    %c0_60 = arith.constant 0 : index
    %c0_61 = arith.constant 0 : index
    %86 = vector.load %arg22[%c0_60, %c0_61] : memref<1x256xf32, #tpu.memory_space<vmem>>, vector<1x256xf32>
    %cst_62 = arith.constant dense<0.000000e+00> : vector<8x512xf32>
    %87 = tpu.matmul %76, %78, %cst_62 {dimension_numbers = #tpu.dot_dimension_numbers<[1], [0], [0], [1], [0, 0, 1, 1], [], []>} : vector<8x64xf32>, vector<64x512xf32>, vector<8x512xf32> -> vector<8x512xf32>
    %cst_63 = arith.constant dense<0.000000e+00> : vector<8x512xf32>
    %88 = tpu.matmul %77, %79, %cst_63 {dimension_numbers = #tpu.dot_dimension_numbers<[1], [0], [0], [1], [0, 0, 1, 1], [], []>} : vector<8x256xf32>, vector<256x512xf32>, vector<8x512xf32> -> vector<8x512xf32>
    %89 = arith.addf %87, %88 : vector<8x512xf32>
    %90 = vector.broadcast %80 : vector<1x512xf32> to vector<8x512xf32>
    %91 = arith.addf %89, %90 : vector<8x512xf32>
    %cst_64 = arith.constant dense<0.000000e+00> : vector<512xf32>
    %92 = vector.multi_reduction <add>, %91, %cst_64 [0] : vector<8x512xf32> to vector<512xf32>
    %93 = vector.shape_cast %92 : vector<512xf32> to vector<1x512xf32>
    %cst_65 = arith.constant 1.250000e-01 : f32
    %94 = vector.broadcast %cst_65 : f32 to vector<1x512xf32>
    %95 = arith.mulf %93, %94 : vector<1x512xf32>
    %96 = vector.broadcast %95 : vector<1x512xf32> to vector<8x512xf32>
    %97 = arith.subf %91, %96 : vector<8x512xf32>
    %98 = arith.mulf %97, %97 : vector<8x512xf32>
    %cst_66 = arith.constant dense<0.000000e+00> : vector<512xf32>
    %99 = vector.multi_reduction <add>, %98, %cst_66 [0] : vector<8x512xf32> to vector<512xf32>
    %100 = vector.shape_cast %99 : vector<512xf32> to vector<1x512xf32>
    %cst_67 = arith.constant 1.250000e-01 : f32
    %101 = vector.broadcast %cst_67 : f32 to vector<1x512xf32>
    %102 = arith.mulf %100, %101 : vector<1x512xf32>
    %cst_68 = arith.constant 1.000000e-03 : f32
    %103 = vector.broadcast %cst_68 : f32 to vector<1x512xf32>
    %104 = arith.addf %102, %103 : vector<1x512xf32>
    %105 = math.rsqrt %104 : vector<1x512xf32>
    %106 = vector.broadcast %105 : vector<1x512xf32> to vector<8x512xf32>
    %107 = arith.mulf %97, %106 : vector<8x512xf32>
    %108 = math.tanh %107 : vector<8x512xf32>
    %cst_69 = arith.constant dense<0.000000e+00> : vector<8x256xf32>
    %109 = tpu.matmul %108, %81, %cst_69 {dimension_numbers = #tpu.dot_dimension_numbers<[1], [0], [0], [1], [0, 0, 1, 1], [], []>} : vector<8x512xf32>, vector<512x256xf32>, vector<8x256xf32> -> vector<8x256xf32>
    %110 = vector.broadcast %82 : vector<1x256xf32> to vector<8x256xf32>
    %111 = arith.addf %109, %110 : vector<8x256xf32>
    %cst_70 = arith.constant dense<0.000000e+00> : vector<256xf32>
    %112 = vector.multi_reduction <add>, %111, %cst_70 [0] : vector<8x256xf32> to vector<256xf32>
    %113 = vector.shape_cast %112 : vector<256xf32> to vector<1x256xf32>
    %cst_71 = arith.constant 1.250000e-01 : f32
    %114 = vector.broadcast %cst_71 : f32 to vector<1x256xf32>
    %115 = arith.mulf %113, %114 : vector<1x256xf32>
    %116 = vector.broadcast %115 : vector<1x256xf32> to vector<8x256xf32>
    %117 = arith.subf %111, %116 : vector<8x256xf32>
    %118 = arith.mulf %117, %117 : vector<8x256xf32>
    %cst_72 = arith.constant dense<0.000000e+00> : vector<256xf32>
    %119 = vector.multi_reduction <add>, %118, %cst_72 [0] : vector<8x256xf32> to vector<256xf32>
    %120 = vector.shape_cast %119 : vector<256xf32> to vector<1x256xf32>
    %cst_73 = arith.constant 1.250000e-01 : f32
    %121 = vector.broadcast %cst_73 : f32 to vector<1x256xf32>
    %122 = arith.mulf %120, %121 : vector<1x256xf32>
    %cst_74 = arith.constant 1.000000e-03 : f32
    %123 = vector.broadcast %cst_74 : f32 to vector<1x256xf32>
    %124 = arith.addf %122, %123 : vector<1x256xf32>
    %125 = math.rsqrt %124 : vector<1x256xf32>
    %126 = vector.broadcast %125 : vector<1x256xf32> to vector<8x256xf32>
    %127 = arith.mulf %117, %126 : vector<8x256xf32>
    %128 = math.tanh %127 : vector<8x256xf32>
    %cst_75 = arith.constant dense<0.000000e+00> : vector<8x256xf32>
    %129 = tpu.matmul %128, %83, %cst_75 {dimension_numbers = #tpu.dot_dimension_numbers<[1], [0], [0], [1], [0, 0, 1, 1], [], []>} : vector<8x256xf32>, vector<256x256xf32>, vector<8x256xf32> -> vector<8x256xf32>
    %130 = vector.broadcast %84 : vector<1x256xf32> to vector<8x256xf32>
    %131 = arith.addf %129, %130 : vector<8x256xf32>
    %cst_76 = arith.constant dense<0.000000e+00> : vector<256xf32>
    %132 = vector.multi_reduction <add>, %131, %cst_76 [0] : vector<8x256xf32> to vector<256xf32>
    %133 = vector.shape_cast %132 : vector<256xf32> to vector<1x256xf32>
    %cst_77 = arith.constant 1.250000e-01 : f32
    %134 = vector.broadcast %cst_77 : f32 to vector<1x256xf32>
    %135 = arith.mulf %133, %134 : vector<1x256xf32>
    %136 = vector.broadcast %135 : vector<1x256xf32> to vector<8x256xf32>
    %137 = arith.subf %131, %136 : vector<8x256xf32>
    %138 = arith.mulf %137, %137 : vector<8x256xf32>
    %cst_78 = arith.constant dense<0.000000e+00> : vector<256xf32>
    %139 = vector.multi_reduction <add>, %138, %cst_78 [0] : vector<8x256xf32> to vector<256xf32>
    %140 = vector.shape_cast %139 : vector<256xf32> to vector<1x256xf32>
    %cst_79 = arith.constant 1.250000e-01 : f32
    %141 = vector.broadcast %cst_79 : f32 to vector<1x256xf32>
    %142 = arith.mulf %140, %141 : vector<1x256xf32>
    %cst_80 = arith.constant 1.000000e-03 : f32
    %143 = vector.broadcast %cst_80 : f32 to vector<1x256xf32>
    %144 = arith.addf %142, %143 : vector<1x256xf32>
    %145 = math.rsqrt %144 : vector<1x256xf32>
    %146 = vector.broadcast %145 : vector<1x256xf32> to vector<8x256xf32>
    %147 = arith.mulf %137, %146 : vector<8x256xf32>
    %148 = math.tanh %147 : vector<8x256xf32>
    %cst_81 = arith.constant dense<0.000000e+00> : vector<8x256xf32>
    %149 = tpu.matmul %148, %85, %cst_81 {dimension_numbers = #tpu.dot_dimension_numbers<[1], [0], [0], [1], [0, 0, 1, 1], [], []>} : vector<8x256xf32>, vector<256x256xf32>, vector<8x256xf32> -> vector<8x256xf32>
    %150 = vector.broadcast %86 : vector<1x256xf32> to vector<8x256xf32>
    %151 = arith.addf %149, %150 : vector<8x256xf32>
    %152 = arith.mulf %75, %151 : vector<8x256xf32>
    %cst_82 = arith.constant dense<0.000000e+00> : vector<8xf32>
    %153 = vector.multi_reduction <add>, %152, %cst_82 [1] : vector<8x256xf32> to vector<8xf32>
    %154 = vector.shape_cast %153 : vector<8xf32> to vector<8x1xf32>
    %155 = tpu.iota {dimensions = array<i32: 0>} : vector<8x1xi32>
    %c2_i32 = arith.constant 2 : i32
    %c0_i32 = arith.constant 0 : i32
    %156 = arith.cmpi eq, %c2_i32, %c0_i32 : i32
    %c1_i32 = arith.constant 1 : i32
    %157 = arith.select %156, %c1_i32, %c2_i32 : i32
    %158 = vector.broadcast %157 : i32 to vector<8x1xi32>
    %159 = arith.remsi %155, %158 : vector<8x1xi32>
    %c0_i32_83 = arith.constant 0 : i32
    %160 = vector.broadcast %c0_i32_83 : i32 to vector<8x1xi32>
    %161 = arith.cmpi ne, %159, %160 : vector<8x1xi32>
    %c0_i32_84 = arith.constant 0 : i32
    %162 = vector.broadcast %c0_i32_84 : i32 to vector<8x1xi32>
    %163 = arith.cmpi slt, %159, %162 : vector<8x1xi32>
    %c0_i32_85 = arith.constant 0 : i32
    %164 = arith.cmpi slt, %157, %c0_i32_85 : i32
    %165 = vector.broadcast %164 : i1 to vector<8x1xi1>
    %166 = vector.broadcast %165 : vector<8x1xi1> to vector<8x1xi1>
    %167 = arith.xori %163, %166 : vector<8x1xi1>
    %168 = arith.andi %167, %161 : vector<8x1xi1>
    %169 = vector.broadcast %157 : i32 to vector<8x1xi32>
    %170 = arith.addi %159, %169 : vector<8x1xi32>
    %171 = arith.select %168, %170, %159 : vector<8x1xi1>, vector<8x1xi32>
    %c0_i32_86 = arith.constant 0 : i32
    %172 = vector.broadcast %c0_i32_86 : i32 to vector<8x1xi32>
    %173 = arith.cmpi eq, %171, %172 : vector<8x1xi32>
    %cst_87 = arith.constant 1.000000e+00 : f32
    %cst_88 = arith.constant 0.000000e+00 : f32
    %174 = vector.broadcast %cst_87 : f32 to vector<8x1xf32>
    %175 = vector.broadcast %cst_88 : f32 to vector<8x1xf32>
    %176 = arith.select %173, %174, %175 : vector<8x1xi1>, vector<8x1xf32>
    %177 = arith.subf %154, %176 : vector<8x1xf32>
    %178 = arith.mulf %177, %177 : vector<8x1xf32>
    %179 = vector.shape_cast %178 : vector<8x1xf32> to vector<1x8x1xf32>
    %cst_89 = arith.constant dense<0.000000e+00> : vector<1xf32>
    %180 = vector.multi_reduction <add>, %179, %cst_89 [1, 2] : vector<1x8x1xf32> to vector<1xf32>
    %181 = vector.shape_cast %180 : vector<1xf32> to vector<1x1x1xf32>
    %182 = vector.extract %181[0, 0, 0] : f32 from vector<1x1x1xf32>
    %183 = vector.broadcast %182 : f32 to vector<1x1xf32>
    %cst_90 = arith.constant 1.250000e-01 : f32
    %184 = vector.broadcast %cst_90 : f32 to vector<1x1xf32>
    %185 = arith.mulf %183, %184 : vector<1x1xf32>
    %186 = vector.shape_cast %185 : vector<1x1xf32> to vector<1x1xf32>
    %187 = vector.broadcast %186 : vector<1x1xf32> to vector<1x128xf32>
    %c0_91 = arith.constant 0 : index
    %c0_92 = arith.constant 0 : index
    %188 = vector.load %arg23[%c0_91, %c0_92] : memref<1x128xf32, #tpu.memory_space<vmem>>, vector<1x128xf32>
    tpu.vector_store %arg23[%c0_91, %c0_92], %187 {strides = array<i32>} : memref<1x128xf32, #tpu.memory_space<vmem>>, vector<1x128xf32>,
    return
  }
  func.func @transform_0(%arg0: i32) -> (i32, i32) {
    %c0_i32 = arith.constant 0 : i32
    %c0_i32_0 = arith.constant 0 : i32
    %c0_i32_1 = arith.constant 0 : i32
    return %c0_i32, %c0_i32_0 : i32, i32
  }
  func.func @transform_1(%arg0: i32) -> (i32, i32) {
    %c0_i32 = arith.constant 0 : i32
    %c0_i32_0 = arith.constant 0 : i32
    %c0_i32_1 = arith.constant 0 : i32
    return %c0_i32, %c0_i32_0 : i32, i32
  }
  func.func @transform_2(%arg0: i32) -> (i32, i32) {
    %c0_i32 = arith.constant 0 : i32
    %c0_i32_0 = arith.constant 0 : i32
    %c0_i32_1 = arith.constant 0 : i32
    return %c0_i32, %c0_i32_0 : i32, i32
  }
  func.func @transform_3(%arg0: i32) -> (i32, i32) {
    %c0_i32 = arith.constant 0 : i32
    %c0_i32_0 = arith.constant 0 : i32
    %c0_i32_1 = arith.constant 0 : i32
    return %c0_i32, %c0_i32_0 : i32, i32
  }
  func.func @transform_4(%arg0: i32) -> (i32, i32) {
    %c0_i32 = arith.constant 0 : i32
    %c0_i32_0 = arith.constant 0 : i32
    %c0_i32_1 = arith.constant 0 : i32
    return %c0_i32, %c0_i32_0 : i32, i32
  }
  func.func @transform_5(%arg0: i32) -> (i32, i32) {
    %c0_i32 = arith.constant 0 : i32
    %c0_i32_0 = arith.constant 0 : i32
    %c0_i32_1 = arith.constant 0 : i32
    return %c0_i32, %c0_i32_0 : i32, i32
  }
  func.func @transform_6(%arg0: i32) -> (i32, i32) {
    %c0_i32 = arith.constant 0 : i32
    %c0_i32_0 = arith.constant 0 : i32
    %c0_i32_1 = arith.constant 0 : i32
    return %c0_i32, %c0_i32_0 : i32, i32
  }
  func.func @transform_7(%arg0: i32) -> (i32, i32) {
    %c0_i32 = arith.constant 0 : i32
    %c0_i32_0 = arith.constant 0 : i32
    %c0_i32_1 = arith.constant 0 : i32
    return %c0_i32, %c0_i32_0 : i32, i32
  }
  func.func @transform_8(%arg0: i32) -> (i32, i32) {
    %c0_i32 = arith.constant 0 : i32
    %c0_i32_0 = arith.constant 0 : i32
    %c0_i32_1 = arith.constant 0 : i32
    return %c0_i32, %c0_i32_0 : i32, i32
  }
  func.func @transform_9(%arg0: i32) -> (i32, i32) {
    %c0_i32 = arith.constant 0 : i32
    %c0_i32_0 = arith.constant 0 : i32
    %c0_i32_1 = arith.constant 0 : i32
    return %c0_i32, %c0_i32_0 : i32, i32
  }
  func.func @transform_10(%arg0: i32) -> (i32, i32) {
    %c0_i32 = arith.constant 0 : i32
    %c0_i32_0 = arith.constant 0 : i32
    %c0_i32_1 = arith.constant 0 : i32
    return %c0_i32, %c0_i32_0 : i32, i32
  }
  func.func @transform_11(%arg0: i32) -> (i32, i32) {
    %c0_i32 = arith.constant 0 : i32
    %c0_i32_0 = arith.constant 0 : i32
    %c0_i32_1 = arith.constant 0 : i32
    return %c0_i32, %c0_i32_0 : i32, i32
  }
  func.func @transform_12(%arg0: i32) -> (i32, i32) {
    %c0_i32 = arith.constant 0 : i32
    %c0_i32_0 = arith.constant 0 : i32
    %c0_i32_1 = arith.constant 0 : i32
    return %c0_i32, %c0_i32_0 : i32, i32
  }
  func.func @transform_13(%arg0: i32) -> (i32, i32) {
    %c0_i32 = arith.constant 0 : i32
    %c0_i32_0 = arith.constant 0 : i32
    %c0_i32_1 = arith.constant 0 : i32
    return %c0_i32, %c0_i32_0 : i32, i32
  }
  func.func @transform_14(%arg0: i32) -> (i32, i32) {
    %c0_i32 = arith.constant 0 : i32
    %c0_i32_0 = arith.constant 0 : i32
    %c0_i32_1 = arith.constant 0 : i32
    return %c0_i32, %c0_i32_0 : i32, i32
  }
  func.func @transform_15(%arg0: i32) -> (i32, i32) {
    %c0_i32 = arith.constant 0 : i32
    %c0_i32_0 = arith.constant 0 : i32
    %c0_i32_1 = arith.constant 0 : i32
    return %c0_i32, %c0_i32_0 : i32, i32
  }
  func.func @transform_16(%arg0: i32) -> (i32, i32) {
    %c0_i32 = arith.constant 0 : i32
    %c0_i32_0 = arith.constant 0 : i32
    %c0_i32_1 = arith.constant 0 : i32
    return %c0_i32, %c0_i32_0 : i32, i32
  }
  func.func @transform_17(%arg0: i32) -> (i32, i32) {
    %c0_i32 = arith.constant 0 : i32
    %c0_i32_0 = arith.constant 0 : i32
    %c0_i32_1 = arith.constant 0 : i32
    return %c0_i32, %c0_i32_0 : i32, i32
  }
  func.func @transform_18(%arg0: i32) -> (i32, i32) {
    %c0_i32 = arith.constant 0 : i32
    %c0_i32_0 = arith.constant 0 : i32
    %c0_i32_1 = arith.constant 0 : i32
    return %c0_i32, %c0_i32_0 : i32, i32
  }
  func.func @transform_19(%arg0: i32) -> (i32, i32) {
    %c0_i32 = arith.constant 0 : i32
    %c0_i32_0 = arith.constant 0 : i32
    %c0_i32_1 = arith.constant 0 : i32
    return %c0_i32, %c0_i32_0 : i32, i32
  }
  func.func @transform_20(%arg0: i32) -> (i32, i32) {
    %c0_i32 = arith.constant 0 : i32
    %c0_i32_0 = arith.constant 0 : i32
    %c0_i32_1 = arith.constant 0 : i32
    return %c0_i32, %c0_i32_0 : i32, i32
  }
  func.func @transform_21(%arg0: i32) -> (i32, i32) {
    %c0_i32 = arith.constant 0 : i32
    %c0_i32_0 = arith.constant 0 : i32
    %c0_i32_1 = arith.constant 0 : i32
    return %c0_i32, %c0_i32_0 : i32, i32
  }
  func.func @transform_22(%arg0: i32) -> (i32, i32) {
    %c0_i32 = arith.constant 0 : i32
    %c0_i32_0 = arith.constant 0 : i32
    %c0_i32_1 = arith.constant 0 : i32
    return %c0_i32, %c0_i32_0 : i32, i32
  }
}

</mosaic_0001>

<llo_original>
// kernel: dropoutnet_forward.1
$region0: #{dropoutnet_forward.1}
  #allocation0 [shape = 'u32[]', space=smem, size = 0x4, offset = 0x4, fixed_abs, tag = 'smem constant byte address 0x4 - core index']
  #allocation1 [shape = 'u32[144,128]{1,0:T(1,128)}', space=vmem, size = 0x12000, scoped, tag = 'internal scratch']
  %s0 = inlined_call_operand.vmem [shape: f32[8,64], index: 0, kind: input, shape index: {}]
  %s1 = inlined_call_operand.vmem [shape: f32[8,256], index: 1, kind: input, shape index: {}]
  %s2 = inlined_call_operand.vmem [shape: f32[8,64], index: 2, kind: input, shape index: {}]
  %s3 = inlined_call_operand.vmem [shape: f32[8,256], index: 3, kind: input, shape index: {}]
  %s4 = inlined_call_operand.vmem [shape: f32[64,512], index: 4, kind: input, shape index: {}]
  %s5 = inlined_call_operand.vmem [shape: f32[256,512], index: 5, kind: input, shape index: {}]
  %s6 = inlined_call_operand.vmem [shape: f32[1,512], index: 6, kind: input, shape index: {}]
  %s7 = inlined_call_operand.vmem [shape: f32[512,256], index: 7, kind: input, shape index: {}]
  %s8 = inlined_call_operand.vmem [shape: f32[1,256], index: 8, kind: input, shape index: {}]
  %s9 = inlined_call_operand.vmem [shape: f32[256,256], index: 9, kind: input, shape index: {}]
  %s10 = inlined_call_operand.vmem [shape: f32[1,256], index: 10, kind: input, shape index: {}]
  %s11 = inlined_call_operand.hbm [shape: f32[256,256], index: 11, kind: input, shape index: {}]
  %s12 = inlined_call_operand.vmem [shape: f32[1,256], index: 12, kind: input, shape index: {}]
  %s13 = inlined_call_operand.vmem [shape: f32[64,512], index: 13, kind: input, shape index: {}]
  %s14 = inlined_call_operand.vmem [shape: f32[256,512], index: 14, kind: input, shape index: {}]
  %s15 = inlined_call_operand.vmem [shape: f32[1,512], index: 15, kind: input, shape index: {}]
  %s16 = inlined_call_operand.vmem [shape: f32[512,256], index: 16, kind: input, shape index: {}]
  %s17 = inlined_call_operand.vmem [shape: f32[1,256], index: 17, kind: input, shape index: {}]
  %s18 = inlined_call_operand.hbm [shape: f32[256,256], index: 18, kind: input, shape index: {}]
  %s19 = inlined_call_operand.vmem [shape: f32[1,256], index: 19, kind: input, shape index: {}]
  %s20 = inlined_call_operand.hbm [shape: f32[256,256], index: 20, kind: input, shape index: {}]
  %s21 = inlined_call_operand.vmem [shape: f32[1,256], index: 21, kind: input, shape index: {}]
  %s22 = inlined_call_operand.hbm [shape: f32[1,128], index: 22, kind: output, shape index: {}]
  %s23 = sld [smem:[#allocation0]]
  $region110: #{dropoutnet_forward.1} parent=0
    _
  %s25 = ssub.s32 1, %s23
  %s26 = scalar_select 0, %s25, %s23
  $region1: #{dropoutnet_forward.1} parent=0
    #allocation2 [shape = 'u8[262144]{0}', space=vmem, size = 0x40000, scoped, tag = 'input window, operand 11, single buffered']
    #allocation3 [shape = 's32[1]{0}', space=sflag, size = 0x4, scoped, tag = 'scoped memory for dropoutnet_forward.1']
    #allocation4 [shape = 's32[1]{0}', space=sflag, size = 0x4, scoped, tag = 'scoped memory for dropoutnet_forward.1']
    #allocation5 [shape = 'u8[262144]{0}', space=vmem, size = 0x40000, scoped, tag = 'input window, operand 18, single buffered']
    #allocation6 [shape = 's32[1]{0}', space=sflag, size = 0x4, scoped, tag = 'scoped memory for dropoutnet_forward.1']
    #allocation7 [shape = 'u8[262144]{0}', space=vmem, size = 0x40000, scoped, tag = 'input window, operand 20, single buffered']
    #allocation8 [shape = 'u8[512]{0}', space=vmem, size = 0x400, scoped, tag = 'output window, operand 0, single buffered']
    %27 = vsyncpa [#allocation3], 0
    %28 = vsyncpa [#allocation6], 0
    %29 = vsyncpa [#allocation4], 0
    // Predicated region
    $region2: #{dropoutnet_forward.1} parent=1 // pred_check
      _
    $region3: #{dropoutnet_forward.1} parent=1 // pred_check_branch
      %31 = sbr.rel (0) target = $region5
    $region4: #{dropoutnet_forward.1} parent=1 // pred_region
      _
    $region5: #{dropoutnet_forward.1} parent=1 // pred_fallthru
      _
    // Predicated region
    $region6: #{dropoutnet_forward.1} parent=1 // pred_check
      _
    $region7: #{dropoutnet_forward.1} parent=1 // pred_check_branch
      %33 = sbr.rel (0) target = $region9
    $region8: #{dropoutnet_forward.1} parent=1 // pred_region
      _
    $region9: #{dropoutnet_forward.1} parent=1 // pred_fallthru
      _
    // Predicated region
    $region10: #{dropoutnet_forward.1} parent=1 // pred_check
      _
    $region11: #{dropoutnet_forward.1} parent=1 // pred_check_branch
      %35 = sbr.rel (0) target = $region13
    $region12: #{dropoutnet_forward.1} parent=1 // pred_region
      _
    $region13: #{dropoutnet_forward.1} parent=1 // pred_fallthru
      _
    // Predicated region
    $region14: #{dropoutnet_forward.1} parent=1 // pred_check
      _
    $region15: #{dropoutnet_forward.1} parent=1 // pred_check_branch
      %37 = sbr.rel (0) target = $region17
    $region16: #{dropoutnet_forward.1} parent=1 // pred_region
      _
    $region17: #{dropoutnet_forward.1} parent=1 // pred_fallthru
      _
    // Predicated region
    $region18: #{dropoutnet_forward.1} parent=1 // pred_check
      _
    $region19: #{dropoutnet_forward.1} parent=1 // pred_check_branch
      %39 = sbr.rel (0) target = $region21
    $region20: #{dropoutnet_forward.1} parent=1 // pred_region
      _
    $region21: #{dropoutnet_forward.1} parent=1 // pred_fallthru
      _
    // Predicated region
    $region22: #{dropoutnet_forward.1} parent=1 // pred_check
      _
    $region23: #{dropoutnet_forward.1} parent=1 // pred_check_branch
      %41 = sbr.rel (0) target = $region25
    $region24: #{dropoutnet_forward.1} parent=1 // pred_region
      _
    $region25: #{dropoutnet_forward.1} parent=1 // pred_fallthru
      _
    // Predicated region
    $region26: #{dropoutnet_forward.1} parent=1 // pred_check
      _
    $region27: #{dropoutnet_forward.1} parent=1 // pred_check_branch
      %43 = sbr.rel (0) target = $region29
    $region28: #{dropoutnet_forward.1} parent=1 // pred_region
      _
    $region29: #{dropoutnet_forward.1} parent=1 // pred_fallthru
      _
    // Predicated region
    $region30: #{dropoutnet_forward.1} parent=1 // pred_check
      _
    $region31: #{dropoutnet_forward.1} parent=1 // pred_check_branch
      %45 = sbr.rel (0) target = $region33
    $region32: #{dropoutnet_forward.1} parent=1 // pred_region
      _
    $region33: #{dropoutnet_forward.1} parent=1 // pred_fallthru
      _
    // Predicated region
    $region34: #{dropoutnet_forward.1} parent=1 // pred_check
      _
    $region35: #{dropoutnet_forward.1} parent=1 // pred_check_branch
      %47 = sbr.rel (0) target = $region37
    $region36: #{dropoutnet_forward.1} parent=1 // pred_region
      _
    $region37: #{dropoutnet_forward.1} parent=1 // pred_fallthru
      _
    // Predicated region
    $region38: #{dropoutnet_forward.1} parent=1 // pred_check
      _
    $region39: #{dropoutnet_forward.1} parent=1 // pred_check_branch
      %49 = sbr.rel (0) target = $region41
    $region40: #{dropoutnet_forward.1} parent=1 // pred_region
      _
    $region41: #{dropoutnet_forward.1} parent=1 // pred_fallthru
      _
    // Predicated region
    $region42: #{dropoutnet_forward.1} parent=1 // pred_check
      _
    $region43: #{dropoutnet_forward.1} parent=1 // pred_check_branch
      %51 = sbr.rel (0) target = $region45
    $region44: #{dropoutnet_forward.1} parent=1 // pred_region
      _
    $region45: #{dropoutnet_forward.1} parent=1 // pred_fallthru
      _
    // Predicated region
    $region46: #{dropoutnet_forward.1} parent=1 // pred_check
      _
    $region47: #{dropoutnet_forward.1} parent=1 // pred_check_branch
      %53 = sbr.rel (0) target = $region49
    $region48: #{dropoutnet_forward.1} parent=1 // pred_region
      %s55 = ssub.s32 8192, 8192
      %56 = vsyncadd [#allocation3], %s55
      %s57 = sshll.u32 [#allocation2], 4
      %s58 = int_to_ptr.vmem [resolvable:$true] %s57
      %63 = dma.hbm_to_vmem [thread:$0]  %s11, 8192, %s58, [#allocation3], 256, 256, 16
    $region49: #{dropoutnet_forward.1} parent=1 // pred_fallthru
      _
    // Predicated region
    $region50: #{dropoutnet_forward.1} parent=1 // pred_check
      _
    $region51: #{dropoutnet_forward.1} parent=1 // pred_check_branch
      %65 = sbr.rel (0) target = $region53
    $region52: #{dropoutnet_forward.1} parent=1 // pred_region
      _
    $region53: #{dropoutnet_forward.1} parent=1 // pred_fallthru
      _
    // Predicated region
    $region54: #{dropoutnet_forward.1} parent=1 // pred_check
      _
    $region55: #{dropoutnet_forward.1} parent=1 // pred_check_branch
      %67 = sbr.rel (0) target = $region57
    $region56: #{dropoutnet_forward.1} parent=1 // pred_region
      _
    $region57: #{dropoutnet_forward.1} parent=1 // pred_fallthru
      _
    // Predicated region
    $region58: #{dropoutnet_forward.1} parent=1 // pred_check
      _
    $region59: #{dropoutnet_forward.1} parent=1 // pred_check_branch
      %69 = sbr.rel (0) target = $region61
    $region60: #{dropoutnet_forward.1} parent=1 // pred_region
      _
    $region61: #{dropoutnet_forward.1} parent=1 // pred_fallthru
      _
    // Predicated region
    $region62: #{dropoutnet_forward.1} parent=1 // pred_check
      _
    $region63: #{dropoutnet_forward.1} parent=1 // pred_check_branch
      %71 = sbr.rel (0) target = $region65
    $region64: #{dropoutnet_forward.1} parent=1 // pred_region
      _
    $region65: #{dropoutnet_forward.1} parent=1 // pred_fallthru
      _
    // Predicated region
    $region66: #{dropoutnet_forward.1} parent=1 // pred_check
      _
    $region67: #{dropoutnet_forward.1} parent=1 // pred_check_branch
      %73 = sbr.rel (0) target = $region69
    $region68: #{dropoutnet_forward.1} parent=1 // pred_region
      _
    $region69: #{dropoutnet_forward.1} parent=1 // pred_fallthru
      _
    // Predicated region
    $region70: #{dropoutnet_forward.1} parent=1 // pred_check
      _
    $region71: #{dropoutnet_forward.1} parent=1 // pred_check_branch
      %75 = sbr.rel (0) target = $region73
    $region72: #{dropoutnet_forward.1} parent=1 // pred_region
      _
    $region73: #{dropoutnet_forward.1} parent=1 // pred_fallthru
      _
    // Predicated region
    $region74: #{dropoutnet_forward.1} parent=1 // pred_check
      _
    $region75: #{dropoutnet_forward.1} parent=1 // pred_check_branch
      %77 = sbr.rel (0) target = $region77
    $region76: #{dropoutnet_forward.1} parent=1 // pred_region
      %s79 = ssub.s32 8192, 8192
      %80 = vsyncadd [#allocation6], %s79
      %s81 = sshll.u32 [#allocation5], 4
      %s82 = int_to_ptr.vmem [resolvable:$true] %s81
      %87 = dma.hbm_to_vmem [thread:$0]  %s18, 8192, %s82, [#allocation6], 256, 256, 16
    $region77: #{dropoutnet_forward.1} parent=1 // pred_fallthru
      _
    // Predicated region
    $region78: #{dropoutnet_forward.1} parent=1 // pred_check
      _
    $region79: #{dropoutnet_forward.1} parent=1 // pred_check_branch
      %89 = sbr.rel (0) target = $region81
    $region80: #{dropoutnet_forward.1} parent=1 // pred_region
      _
    $region81: #{dropoutnet_forward.1} parent=1 // pred_fallthru
      _
    // Predicated region
    $region82: #{dropoutnet_forward.1} parent=1 // pred_check
      _
    $region83: #{dropoutnet_forward.1} parent=1 // pred_check_branch
      %91 = sbr.rel (0) target = $region85
    $region84: #{dropoutnet_forward.1} parent=1 // pred_region
      %s93 = ssub.s32 8192, 8192
      %94 = vsyncadd [#allocation6], %s93
      %s95 = sshll.u32 [#allocation7], 4
      %s96 = int_to_ptr.vmem [resolvable:$true] %s95
      %101 = dma.hbm_to_vmem [thread:$0]  %s20, 8192, %s96, [#allocation6], 256, 256, 16
    $region85: #{dropoutnet_forward.1} parent=1 // pred_fallthru
      _
    // Predicated region
    $region86: #{dropoutnet_forward.1} parent=1 // pred_check
      _
    $region87: #{dropoutnet_forward.1} parent=1 // pred_check_branch
      %103 = sbr.rel (0) target = $region89
    $region88: #{dropoutnet_forward.1} parent=1 // pred_region
      _
    $region89: #{dropoutnet_forward.1} parent=1 // pred_fallthru
      _
    // Predicated region
    $region90: #{dropoutnet_forward.1} parent=1 // pred_check
      _
    $region91: #{dropoutnet_forward.1} parent=1 // pred_check_branch
      %105 = sbr.rel (0) target = $region93
    $region92: #{dropoutnet_forward.1} parent=1 // pred_region
      %106 = dma.done [#allocation3], 8192
    $region93: #{dropoutnet_forward.1} parent=1 // pred_fallthru
      _
    // Predicated region
    $region94: #{dropoutnet_forward.1} parent=1 // pred_check
      _
    $region95: #{dropoutnet_forward.1} parent=1 // pred_check_branch
      %108 = sbr.rel (0) target = $region97
    $region96: #{dropoutnet_forward.1} parent=1 // pred_region
      %109 = dma.done [#allocation6], 8192
    $region97: #{dropoutnet_forward.1} parent=1 // pred_fallthru
      _
    // Predicated region
    $region98: #{dropoutnet_forward.1} parent=1 // pred_check
      _
    $region99: #{dropoutnet_forward.1} parent=1 // pred_check_branch
      %111 = sbr.rel (0) target = $region101
    $region100: #{dropoutnet_forward.1} parent=1 // pred_region
      %112 = dma.done [#allocation6], 8192
    $region101: #{dropoutnet_forward.1} parent=1 // pred_fallthru
      _
    %v113 = vld [vmem:[%s0] sm:$0xff]
    %v114 = vld [vmem:[%s1] sm:$0xff]
    %v115 = vld [vmem:[%s1 + $0x8] sm:$0xff]
    %v116 = vld [vmem:[%s4] sm:$0xff]
    %v117 = vld [vmem:[%s4 + $0x8] sm:$0xff]
    %v118 = vld [vmem:[%s4 + $0x10] sm:$0xff]
    %v119 = vld [vmem:[%s4 + $0x18] sm:$0xff]
    %v120 = vld [vmem:[%s4 + $0x20] sm:$0xff]
    %v121 = vld [vmem:[%s4 + $0x28] sm:$0xff]
    %v122 = vld [vmem:[%s4 + $0x30] sm:$0xff]
    %v123 = vld [vmem:[%s4 + $0x38] sm:$0xff]
    %v124 = vld [vmem:[%s4 + $0x40] sm:$0xff]
    %v125 = vld [vmem:[%s4 + $0x48] sm:$0xff]
    %v126 = vld [vmem:[%s4 + $0x50] sm:$0xff]
    %v127 = vld [vmem:[%s4 + $0x58] sm:$0xff]
    %v128 = vld [vmem:[%s4 + $0x60] sm:$0xff]
    %v129 = vld [vmem:[%s4 + $0x68] sm:$0xff]
    %v130 = vld [vmem:[%s4 + $0x70] sm:$0xff]
    %v131 = vld [vmem:[%s4 + $0x78] sm:$0xff]
    %v132 = vld [vmem:[%s4 + $0x80] sm:$0xff]
    %v133 = vld [vmem:[%s4 + $0x88] sm:$0xff]
    %v134 = vld [vmem:[%s4 + $0x90] sm:$0xff]
    %v135 = vld [vmem:[%s4 + $0x98] sm:$0xff]
    %v136 = vld [vmem:[%s4 + $0xa0] sm:$0xff]
    %v137 = vld [vmem:[%s4 + $0xa8] sm:$0xff]
    %v138 = vld [vmem:[%s4 + $0xb0] sm:$0xff]
    %v139 = vld [vmem:[%s4 + $0xb8] sm:$0xff]
    %v140 = vld [vmem:[%s4 + $0xc0] sm:$0xff]
    %v141 = vld [vmem:[%s4 + $0xc8] sm:$0xff]
    %v142 = vld [vmem:[%s4 + $0xd0] sm:$0xff]
    %v143 = vld [vmem:[%s4 + $0xd8] sm:$0xff]
    %v144 = vld [vmem:[%s4 + $0xe0] sm:$0xff]
    %v145 = vld [vmem:[%s4 + $0xe8] sm:$0xff]
    %v146 = vld [vmem:[%s4 + $0xf0] sm:$0xff]
    %v147 = vld [vmem:[%s4 + $0xf8] sm:$0xff]
    %v148 = vld [vmem:[%s5] sm:$0xff]
    %v149 = vld [vmem:[%s5 + $0x8] sm:$0xff]
    %v150 = vld [vmem:[%s5 + $0x10] sm:$0xff]
    %v151 = vld [vmem:[%s5 + $0x18] sm:$0xff]
    %v152 = vld [vmem:[%s5 + $0x20] sm:$0xff]
    %v153 = vld [vmem:[%s5 + $0x28] sm:$0xff]
    %v154 = vld [vmem:[%s5 + $0x30] sm:$0xff]
    %v155 = vld [vmem:[%s5 + $0x38] sm:$0xff]
    %v156 = vld [vmem:[%s5 + $0x40] sm:$0xff]
    %v157 = vld [vmem:[%s5 + $0x48] sm:$0xff]
    %v158 = vld [vmem:[%s5 + $0x50] sm:$0xff]
    %v159 = vld [vmem:[%s5 + $0x58] sm:$0xff]
    %v160 = vld [vmem:[%s5 + $0x60] sm:$0xff]
    %v161 = vld [vmem:[%s5 + $0x68] sm:$0xff]
    %v162 = vld [vmem:[%s5 + $0x70] sm:$0xff]
    %v163 = vld [vmem:[%s5 + $0x78] sm:$0xff]
    %v164 = vld [vmem:[%s5 + $0x80] sm:$0xff]
    %v165 = vld [vmem:[%s5 + $0x88] sm:$0xff]
    %v166 = vld [vmem:[%s5 + $0x90] sm:$0xff]
    %v167 = vld [vmem:[%s5 + $0x98] sm:$0xff]
    %v168 = vld [vmem:[%s5 + $0xa0] sm:$0xff]
    %v169 = vld [vmem:[%s5 + $0xa8] sm:$0xff]
    %v170 = vld [vmem:[%s5 + $0xb0] sm:$0xff]
    %v171 = vld [vmem:[%s5 + $0xb8] sm:$0xff]
    %v172 = vld [vmem:[%s5 + $0xc0] sm:$0xff]
    %v173 = vld [vmem:[%s5 + $0xc8] sm:$0xff]
    %v174 = vld [vmem:[%s5 + $0xd0] sm:$0xff]
    %v175 = vld [vmem:[%s5 + $0xd8] sm:$0xff]
    %v176 = vld [vmem:[%s5 + $0xe0] sm:$0xff]
    %v177 = vld [vmem:[%s5 + $0xe8] sm:$0xff]
    %v178 = vld [vmem:[%s5 + $0xf0] sm:$0xff]
    %v179 = vld [vmem:[%s5 + $0xf8] sm:$0xff]
    %v180 = vld [vmem:[%s5 + $0x100] sm:$0xff]
    %v181 = vld [vmem:[%s5 + $0x108] sm:$0xff]
    %v182 = vld [vmem:[%s5 + $0x110] sm:$0xff]
    %v183 = vld [vmem:[%s5 + $0x118] sm:$0xff]
    %v184 = vld [vmem:[%s5 + $0x120] sm:$0xff]
    %v185 = vld [vmem:[%s5 + $0x128] sm:$0xff]
    %v186 = vld [vmem:[%s5 + $0x130] sm:$0xff]
    %v187 = vld [vmem:[%s5 + $0x138] sm:$0xff]
    %v188 = vld [vmem:[%s5 + $0x140] sm:$0xff]
    %v189 = vld [vmem:[%s5 + $0x148] sm:$0xff]
    %v190 = vld [vmem:[%s5 + $0x150] sm:$0xff]
    %v191 = vld [vmem:[%s5 + $0x158] sm:$0xff]
    %v192 = vld [vmem:[%s5 + $0x160] sm:$0xff]
    %v193 = vld [vmem:[%s5 + $0x168] sm:$0xff]
    %v194 = vld [vmem:[%s5 + $0x170] sm:$0xff]
    %v195 = vld [vmem:[%s5 + $0x178] sm:$0xff]
    %v196 = vld [vmem:[%s5 + $0x180] sm:$0xff]
    %v197 = vld [vmem:[%s5 + $0x188] sm:$0xff]
    %v198 = vld [vmem:[%s5 + $0x190] sm:$0xff]
    %v199 = vld [vmem:[%s5 + $0x198] sm:$0xff]
    %v200 = vld [vmem:[%s5 + $0x1a0] sm:$0xff]
    %v201 = vld [vmem:[%s5 + $0x1a8] sm:$0xff]
    %v202 = vld [vmem:[%s5 + $0x1b0] sm:$0xff]
    %v203 = vld [vmem:[%s5 + $0x1b8] sm:$0xff]
    %v204 = vld [vmem:[%s5 + $0x1c0] sm:$0xff]
    %v205 = vld [vmem:[%s5 + $0x1c8] sm:$0xff]
    %v206 = vld [vmem:[%s5 + $0x1d0] sm:$0xff]
    %v207 = vld [vmem:[%s5 + $0x1d8] sm:$0xff]
    %v208 = vld [vmem:[%s5 + $0x1e0] sm:$0xff]
    %v209 = vld [vmem:[%s5 + $0x1e8] sm:$0xff]
    %v210 = vld [vmem:[%s5 + $0x1f0] sm:$0xff]
    %v211 = vld [vmem:[%s5 + $0x1f8] sm:$0xff]
    %v212 = vld [vmem:[%s5 + $0x200] sm:$0xff]
    %v213 = vld [vmem:[%s5 + $0x208] sm:$0xff]
    %v214 = vld [vmem:[%s5 + $0x210] sm:$0xff]
    %v215 = vld [vmem:[%s5 + $0x218] sm:$0xff]
    %v216 = vld [vmem:[%s5 + $0x220] sm:$0xff]
    %v217 = vld [vmem:[%s5 + $0x228] sm:$0xff]
    %v218 = vld [vmem:[%s5 + $0x230] sm:$0xff]
    %v219 = vld [vmem:[%s5 + $0x238] sm:$0xff]
    %v220 = vld [vmem:[%s5 + $0x240] sm:$0xff]
    %v221 = vld [vmem:[%s5 + $0x248] sm:$0xff]
    %v222 = vld [vmem:[%s5 + $0x250] sm:$0xff]
    %v223 = vld [vmem:[%s5 + $0x258] sm:$0xff]
    %v224 = vld [vmem:[%s5 + $0x260] sm:$0xff]
    %v225 = vld [vmem:[%s5 + $0x268] sm:$0xff]
    %v226 = vld [vmem:[%s5 + $0x270] sm:$0xff]
    %v227 = vld [vmem:[%s5 + $0x278] sm:$0xff]
    %v228 = vld [vmem:[%s5 + $0x280] sm:$0xff]
    %v229 = vld [vmem:[%s5 + $0x288] sm:$0xff]
    %v230 = vld [vmem:[%s5 + $0x290] sm:$0xff]
    %v231 = vld [vmem:[%s5 + $0x298] sm:$0xff]
    %v232 = vld [vmem:[%s5 + $0x2a0] sm:$0xff]
    %v233 = vld [vmem:[%s5 + $0x2a8] sm:$0xff]
    %v234 = vld [vmem:[%s5 + $0x2b0] sm:$0xff]
    %v235 = vld [vmem:[%s5 + $0x2b8] sm:$0xff]
    %v236 = vld [vmem:[%s5 + $0x2c0] sm:$0xff]
    %v237 = vld [vmem:[%s5 + $0x2c8] sm:$0xff]
    %v238 = vld [vmem:[%s5 + $0x2d0] sm:$0xff]
    %v239 = vld [vmem:[%s5 + $0x2d8] sm:$0xff]
    %v240 = vld [vmem:[%s5 + $0x2e0] sm:$0xff]
    %v241 = vld [vmem:[%s5 + $0x2e8] sm:$0xff]
    %v242 = vld [vmem:[%s5 + $0x2f0] sm:$0xff]
    %v243 = vld [vmem:[%s5 + $0x2f8] sm:$0xff]
    %v244 = vld [vmem:[%s5 + $0x300] sm:$0xff]
    %v245 = vld [vmem:[%s5 + $0x308] sm:$0xff]
    %v246 = vld [vmem:[%s5 + $0x310] sm:$0xff]
    %v247 = vld [vmem:[%s5 + $0x318] sm:$0xff]
    %v248 = vld [vmem:[%s5 + $0x320] sm:$0xff]
    %v249 = vld [vmem:[%s5 + $0x328] sm:$0xff]
    %v250 = vld [vmem:[%s5 + $0x330] sm:$0xff]
    %v251 = vld [vmem:[%s5 + $0x338] sm:$0xff]
    %v252 = vld [vmem:[%s5 + $0x340] sm:$0xff]
    %v253 = vld [vmem:[%s5 + $0x348] sm:$0xff]
    %v254 = vld [vmem:[%s5 + $0x350] sm:$0xff]
    %v255 = vld [vmem:[%s5 + $0x358] sm:$0xff]
    %v256 = vld [vmem:[%s5 + $0x360] sm:$0xff]
    %v257 = vld [vmem:[%s5 + $0x368] sm:$0xff]
    %v258 = vld [vmem:[%s5 + $0x370] sm:$0xff]
    %v259 = vld [vmem:[%s5 + $0x378] sm:$0xff]
    %v260 = vld [vmem:[%s5 + $0x380] sm:$0xff]
    %v261 = vld [vmem:[%s5 + $0x388] sm:$0xff]
    %v262 = vld [vmem:[%s5 + $0x390] sm:$0xff]
    %v263 = vld [vmem:[%s5 + $0x398] sm:$0xff]
    %v264 = vld [vmem:[%s5 + $0x3a0] sm:$0xff]
    %v265 = vld [vmem:[%s5 + $0x3a8] sm:$0xff]
    %v266 = vld [vmem:[%s5 + $0x3b0] sm:$0xff]
    %v267 = vld [vmem:[%s5 + $0x3b8] sm:$0xff]
    %v268 = vld [vmem:[%s5 + $0x3c0] sm:$0xff]
    %v269 = vld [vmem:[%s5 + $0x3c8] sm:$0xff]
    %v270 = vld [vmem:[%s5 + $0x3d0] sm:$0xff]
    %v271 = vld [vmem:[%s5 + $0x3d8] sm:$0xff]
    %v272 = vld [vmem:[%s5 + $0x3e0] sm:$0xff]
    %v273 = vld [vmem:[%s5 + $0x3e8] sm:$0xff]
    %v274 = vld [vmem:[%s5 + $0x3f0] sm:$0xff]
    %v275 = vld [vmem:[%s5 + $0x3f8] sm:$0xff]
    %v276 = vld [vmem:[%s6] sm:$0xf]
    %v277 = vld [vmem:[%s7] sm:$0xff]
    %v278 = vld [vmem:[%s7 + $0x8] sm:$0xff]
    %v279 = vld [vmem:[%s7 + $0x10] sm:$0xff]
    %v280 = vld [vmem:[%s7 + $0x18] sm:$0xff]
    %v281 = vld [vmem:[%s7 + $0x20] sm:$0xff]
    %v282 = vld [vmem:[%s7 + $0x28] sm:$0xff]
    %v283 = vld [vmem:[%s7 + $0x30] sm:$0xff]
    %v284 = vld [vmem:[%s7 + $0x38] sm:$0xff]
    %v285 = vld [vmem:[%s7 + $0x40] sm:$0xff]
    %v286 = vld [vmem:[%s7 + $0x48] sm:$0xff]
    %v287 = vld [vmem:[%s7 + $0x50] sm:$0xff]
    %v288 = vld [vmem:[%s7 + $0x58] sm:$0xff]
    %v289 = vld [vmem:[%s7 + $0x60] sm:$0xff]
    %v290 = vld [vmem:[%s7 + $0x68] sm:$0xff]
    %v291 = vld [vmem:[%s7 + $0x70] sm:$0xff]
    %v292 = vld [vmem:[%s7 + $0x78] sm:$0xff]
    %v293 = vld [vmem:[%s7 + $0x80] sm:$0xff]
    %v294 = vld [vmem:[%s7 + $0x88] sm:$0xff]
    %v295 = vld [vmem:[%s7 + $0x90] sm:$0xff]
    %v296 = vld [vmem:[%s7 + $0x98] sm:$0xff]
    %v297 = vld [vmem:[%s7 + $0xa0] sm:$0xff]
    %v298 = vld [vmem:[%s7 + $0xa8] sm:$0xff]
    %v299 = vld [vmem:[%s7 + $0xb0] sm:$0xff]
    %v300 = vld [vmem:[%s7 + $0xb8] sm:$0xff]
    %v301 = vld [vmem:[%s7 + $0xc0] sm:$0xff]
    %v302 = vld [vmem:[%s7 + $0xc8] sm:$0xff]
    %v303 = vld [vmem:[%s7 + $0xd0] sm:$0xff]
    %v304 = vld [vmem:[%s7 + $0xd8] sm:$0xff]
    %v305 = vld [vmem:[%s7 + $0xe0] sm:$0xff]
    %v306 = vld [vmem:[%s7 + $0xe8] sm:$0xff]
    %v307 = vld [vmem:[%s7 + $0xf0] sm:$0xff]
    %v308 = vld [vmem:[%s7 + $0xf8] sm:$0xff]
    %v309 = vld [vmem:[%s7 + $0x100] sm:$0xff]
    %v310 = vld [vmem:[%s7 + $0x108] sm:$0xff]
    %v311 = vld [vmem:[%s7 + $0x110] sm:$0xff]
    %v312 = vld [vmem:[%s7 + $0x118] sm:$0xff]
    %v313 = vld [vmem:[%s7 + $0x120] sm:$0xff]
    %v314 = vld [vmem:[%s7 + $0x128] sm:$0xff]
    %v315 = vld [vmem:[%s7 + $0x130] sm:$0xff]
    %v316 = vld [vmem:[%s7 + $0x138] sm:$0xff]
    %v317 = vld [vmem:[%s7 + $0x140] sm:$0xff]
    %v318 = vld [vmem:[%s7 + $0x148] sm:$0xff]
    %v319 = vld [vmem:[%s7 + $0x150] sm:$0xff]
    %v320 = vld [vmem:[%s7 + $0x158] sm:$0xff]
    %v321 = vld [vmem:[%s7 + $0x160] sm:$0xff]
    %v322 = vld [vmem:[%s7 + $0x168] sm:$0xff]
    %v323 = vld [vmem:[%s7 + $0x170] sm:$0xff]
    %v324 = vld [vmem:[%s7 + $0x178] sm:$0xff]
    %v325 = vld [vmem:[%s7 + $0x180] sm:$0xff]
    %v326 = vld [vmem:[%s7 + $0x188] sm:$0xff]
    %v327 = vld [vmem:[%s7 + $0x190] sm:$0xff]
    %v328 = vld [vmem:[%s7 + $0x198] sm:$0xff]
    %v329 = vld [vmem:[%s7 + $0x1a0] sm:$0xff]
    %v330 = vld [vmem:[%s7 + $0x1a8] sm:$0xff]
    %v331 = vld [vmem:[%s7 + $0x1b0] sm:$0xff]
    %v332 = vld [vmem:[%s7 + $0x1b8] sm:$0xff]
    %v333 = vld [vmem:[%s7 + $0x1c0] sm:$0xff]
    %v334 = vld [vmem:[%s7 + $0x1c8] sm:$0xff]
    %v335 = vld [vmem:[%s7 + $0x1d0] sm:$0xff]
    %v336 = vld [vmem:[%s7 + $0x1d8] sm:$0xff]
    %v337 = vld [vmem:[%s7 + $0x1e0] sm:$0xff]
    %v338 = vld [vmem:[%s7 + $0x1e8] sm:$0xff]
    %v339 = vld [vmem:[%s7 + $0x1f0] sm:$0xff]
    %v340 = vld [vmem:[%s7 + $0x1f8] sm:$0xff]
    %v341 = vld [vmem:[%s7 + $0x200] sm:$0xff]
    %v342 = vld [vmem:[%s7 + $0x208] sm:$0xff]
    %v343 = vld [vmem:[%s7 + $0x210] sm:$0xff]
    %v344 = vld [vmem:[%s7 + $0x218] sm:$0xff]
    %v345 = vld [vmem:[%s7 + $0x220] sm:$0xff]
    %v346 = vld [vmem:[%s7 + $0x228] sm:$0xff]
    %v347 = vld [vmem:[%s7 + $0x230] sm:$0xff]
    %v348 = vld [vmem:[%s7 + $0x238] sm:$0xff]
    %v349 = vld [vmem:[%s7 + $0x240] sm:$0xff]
    %v350 = vld [vmem:[%s7 + $0x248] sm:$0xff]
    %v351 = vld [vmem:[%s7 + $0x250] sm:$0xff]
    %v352 = vld [vmem:[%s7 + $0x258] sm:$0xff]
    %v353 = vld [vmem:[%s7 + $0x260] sm:$0xff]
    %v354 = vld [vmem:[%s7 + $0x268] sm:$0xff]
    %v355 = vld [vmem:[%s7 + $0x270] sm:$0xff]
    %v356 = vld [vmem:[%s7 + $0x278] sm:$0xff]
    %v357 = vld [vmem:[%s7 + $0x280] sm:$0xff]
    %v358 = vld [vmem:[%s7 + $0x288] sm:$0xff]
    %v359 = vld [vmem:[%s7 + $0x290] sm:$0xff]
    %v360 = vld [vmem:[%s7 + $0x298] sm:$0xff]
    %v361 = vld [vmem:[%s7 + $0x2a0] sm:$0xff]
    %v362 = vld [vmem:[%s7 + $0x2a8] sm:$0xff]
    %v363 = vld [vmem:[%s7 + $0x2b0] sm:$0xff]
    %v364 = vld [vmem:[%s7 + $0x2b8] sm:$0xff]
    %v365 = vld [vmem:[%s7 + $0x2c0] sm:$0xff]
    %v366 = vld [vmem:[%s7 + $0x2c8] sm:$0xff]
    %v367 = vld [vmem:[%s7 + $0x2d0] sm:$0xff]
    %v368 = vld [vmem:[%s7 + $0x2d8] sm:$0xff]
    %v369 = vld [vmem:[%s7 + $0x2e0] sm:$0xff]
    %v370 = vld [vmem:[%s7 + $0x2e8] sm:$0xff]
    %v371 = vld [vmem:[%s7 + $0x2f0] sm:$0xff]
    %v372 = vld [vmem:[%s7 + $0x2f8] sm:$0xff]
    %v373 = vld [vmem:[%s7 + $0x300] sm:$0xff]
    %v374 = vld [vmem:[%s7 + $0x308] sm:$0xff]
    %v375 = vld [vmem:[%s7 + $0x310] sm:$0xff]
    %v376 = vld [vmem:[%s7 + $0x318] sm:$0xff]
    %v377 = vld [vmem:[%s7 + $0x320] sm:$0xff]
    %v378 = vld [vmem:[%s7 + $0x328] sm:$0xff]
    %v379 = vld [vmem:[%s7 + $0x330] sm:$0xff]
    %v380 = vld [vmem:[%s7 + $0x338] sm:$0xff]
    %v381 = vld [vmem:[%s7 + $0x340] sm:$0xff]
    %v382 = vld [vmem:[%s7 + $0x348] sm:$0xff]
    %v383 = vld [vmem:[%s7 + $0x350] sm:$0xff]
    %v384 = vld [vmem:[%s7 + $0x358] sm:$0xff]
    %v385 = vld [vmem:[%s7 + $0x360] sm:$0xff]
    %v386 = vld [vmem:[%s7 + $0x368] sm:$0xff]
    %v387 = vld [vmem:[%s7 + $0x370] sm:$0xff]
    %v388 = vld [vmem:[%s7 + $0x378] sm:$0xff]
    %v389 = vld [vmem:[%s7 + $0x380] sm:$0xff]
    %v390 = vld [vmem:[%s7 + $0x388] sm:$0xff]
    %v391 = vld [vmem:[%s7 + $0x390] sm:$0xff]
    %v392 = vld [vmem:[%s7 + $0x398] sm:$0xff]
    %v393 = vld [vmem:[%s7 + $0x3a0] sm:$0xff]
    %v394 = vld [vmem:[%s7 + $0x3a8] sm:$0xff]
    %v395 = vld [vmem:[%s7 + $0x3b0] sm:$0xff]
    %v396 = vld [vmem:[%s7 + $0x3b8] sm:$0xff]
    %v397 = vld [vmem:[%s7 + $0x3c0] sm:$0xff]
    %v398 = vld [vmem:[%s7 + $0x3c8] sm:$0xff]
    %v399 = vld [vmem:[%s7 + $0x3d0] sm:$0xff]
    %v400 = vld [vmem:[%s7 + $0x3d8] sm:$0xff]
    %v401 = vld [vmem:[%s7 + $0x3e0] sm:$0xff]
    %v402 = vld [vmem:[%s7 + $0x3e8] sm:$0xff]
    %v403 = vld [vmem:[%s7 + $0x3f0] sm:$0xff]
    %v404 = vld [vmem:[%s7 + $0x3f8] sm:$0xff]
    %v405 = vld [vmem:[%s8] sm:$0x3]
    %v406 = vld [vmem:[%s9] sm:$0xff]
    %v407 = vld [vmem:[%s9 + $0x8] sm:$0xff]
    %v408 = vld [vmem:[%s9 + $0x10] sm:$0xff]
    %v409 = vld [vmem:[%s9 + $0x18] sm:$0xff]
    %v410 = vld [vmem:[%s9 + $0x20] sm:$0xff]
    %v411 = vld [vmem:[%s9 + $0x28] sm:$0xff]
    %v412 = vld [vmem:[%s9 + $0x30] sm:$0xff]
    %v413 = vld [vmem:[%s9 + $0x38] sm:$0xff]
    %v414 = vld [vmem:[%s9 + $0x40] sm:$0xff]
    %v415 = vld [vmem:[%s9 + $0x48] sm:$0xff]
    %v416 = vld [vmem:[%s9 + $0x50] sm:$0xff]
    %v417 = vld [vmem:[%s9 + $0x58] sm:$0xff]
    %v418 = vld [vmem:[%s9 + $0x60] sm:$0xff]
    %v419 = vld [vmem:[%s9 + $0x68] sm:$0xff]
    %v420 = vld [vmem:[%s9 + $0x70] sm:$0xff]
    %v421 = vld [vmem:[%s9 + $0x78] sm:$0xff]
    %v422 = vld [vmem:[%s9 + $0x80] sm:$0xff]
    %v423 = vld [vmem:[%s9 + $0x88] sm:$0xff]
    %v424 = vld [vmem:[%s9 + $0x90] sm:$0xff]
    %v425 = vld [vmem:[%s9 + $0x98] sm:$0xff]
    %v426 = vld [vmem:[%s9 + $0xa0] sm:$0xff]
    %v427 = vld [vmem:[%s9 + $0xa8] sm:$0xff]
    %v428 = vld [vmem:[%s9 + $0xb0] sm:$0xff]
    %v429 = vld [vmem:[%s9 + $0xb8] sm:$0xff]
    %v430 = vld [vmem:[%s9 + $0xc0] sm:$0xff]
    %v431 = vld [vmem:[%s9 + $0xc8] sm:$0xff]
    %v432 = vld [vmem:[%s9 + $0xd0] sm:$0xff]
    %v433 = vld [vmem:[%s9 + $0xd8] sm:$0xff]
    %v434 = vld [vmem:[%s9 + $0xe0] sm:$0xff]
    %v435 = vld [vmem:[%s9 + $0xe8] sm:$0xff]
    %v436 = vld [vmem:[%s9 + $0xf0] sm:$0xff]
    %v437 = vld [vmem:[%s9 + $0xf8] sm:$0xff]
    %v438 = vld [vmem:[%s9 + $0x100] sm:$0xff]
    %v439 = vld [vmem:[%s9 + $0x108] sm:$0xff]
    %v440 = vld [vmem:[%s9 + $0x110] sm:$0xff]
    %v441 = vld [vmem:[%s9 + $0x118] sm:$0xff]
    %v442 = vld [vmem:[%s9 + $0x120] sm:$0xff]
    %v443 = vld [vmem:[%s9 + $0x128] sm:$0xff]
    %v444 = vld [vmem:[%s9 + $0x130] sm:$0xff]
    %v445 = vld [vmem:[%s9 + $0x138] sm:$0xff]
    %v446 = vld [vmem:[%s9 + $0x140] sm:$0xff]
    %v447 = vld [vmem:[%s9 + $0x148] sm:$0xff]
    %v448 = vld [vmem:[%s9 + $0x150] sm:$0xff]
    %v449 = vld [vmem:[%s9 + $0x158] sm:$0xff]
    %v450 = vld [vmem:[%s9 + $0x160] sm:$0xff]
    %v451 = vld [vmem:[%s9 + $0x168] sm:$0xff]
    %v452 = vld [vmem:[%s9 + $0x170] sm:$0xff]
    %v453 = vld [vmem:[%s9 + $0x178] sm:$0xff]
    %v454 = vld [vmem:[%s9 + $0x180] sm:$0xff]
    %v455 = vld [vmem:[%s9 + $0x188] sm:$0xff]
    %v456 = vld [vmem:[%s9 + $0x190] sm:$0xff]
    %v457 = vld [vmem:[%s9 + $0x198] sm:$0xff]
    %v458 = vld [vmem:[%s9 + $0x1a0] sm:$0xff]
    %v459 = vld [vmem:[%s9 + $0x1a8] sm:$0xff]
    %v460 = vld [vmem:[%s9 + $0x1b0] sm:$0xff]
    %v461 = vld [vmem:[%s9 + $0x1b8] sm:$0xff]
    %v462 = vld [vmem:[%s9 + $0x1c0] sm:$0xff]
    %v463 = vld [vmem:[%s9 + $0x1c8] sm:$0xff]
    %v464 = vld [vmem:[%s9 + $0x1d0] sm:$0xff]
    %v465 = vld [vmem:[%s9 + $0x1d8] sm:$0xff]
    %v466 = vld [vmem:[%s9 + $0x1e0] sm:$0xff]
    %v467 = vld [vmem:[%s9 + $0x1e8] sm:$0xff]
    %v468 = vld [vmem:[%s9 + $0x1f0] sm:$0xff]
    %v469 = vld [vmem:[%s9 + $0x1f8] sm:$0xff]
    %v470 = vld [vmem:[%s10] sm:$0x3]
    %v471 = vld [vmem:[#allocation2] sm:$0xff]
    %v472 = vld [vmem:[#allocation2 + $0x8] sm:$0xff]
    %v473 = vld [vmem:[#allocation2 + $0x10] sm:$0xff]
    %v474 = vld [vmem:[#allocation2 + $0x18] sm:$0xff]
    %v475 = vld [vmem:[#allocation2 + $0x20] sm:$0xff]
    %v476 = vld [vmem:[#allocation2 + $0x28] sm:$0xff]
    %v477 = vld [vmem:[#allocation2 + $0x30] sm:$0xff]
    %v478 = vld [vmem:[#allocation2 + $0x38] sm:$0xff]
    %v479 = vld [vmem:[#allocation2 + $0x40] sm:$0xff]
    %v480 = vld [vmem:[#allocation2 + $0x48] sm:$0xff]
    %v481 = vld [vmem:[#allocation2 + $0x50] sm:$0xff]
    %v482 = vld [vmem:[#allocation2 + $0x58] sm:$0xff]
    %v483 = vld [vmem:[#allocation2 + $0x60] sm:$0xff]
    %v484 = vld [vmem:[#allocation2 + $0x68] sm:$0xff]
    %v485 = vld [vmem:[#allocation2 + $0x70] sm:$0xff]
    %v486 = vld [vmem:[#allocation2 + $0x78] sm:$0xff]
    %v487 = vld [vmem:[#allocation2 + $0x80] sm:$0xff]
    %v488 = vld [vmem:[#allocation2 + $0x88] sm:$0xff]
    %v489 = vld [vmem:[#allocation2 + $0x90] sm:$0xff]
    %v490 = vld [vmem:[#allocation2 + $0x98] sm:$0xff]
    %v491 = vld [vmem:[#allocation2 + $0xa0] sm:$0xff]
    %v492 = vld [vmem:[#allocation2 + $0xa8] sm:$0xff]
    %v493 = vld [vmem:[#allocation2 + $0xb0] sm:$0xff]
    %v494 = vld [vmem:[#allocation2 + $0xb8] sm:$0xff]
    %v495 = vld [vmem:[#allocation2 + $0xc0] sm:$0xff]
    %v496 = vld [vmem:[#allocation2 + $0xc8] sm:$0xff]
    %v497 = vld [vmem:[#allocation2 + $0xd0] sm:$0xff]
    %v498 = vld [vmem:[#allocation2 + $0xd8] sm:$0xff]
    %v499 = vld [vmem:[#allocation2 + $0xe0] sm:$0xff]
    %v500 = vld [vmem:[#allocation2 + $0xe8] sm:$0xff]
    %v501 = vld [vmem:[#allocation2 + $0xf0] sm:$0xff]
    %v502 = vld [vmem:[#allocation2 + $0xf8] sm:$0xff]
    %v503 = vld [vmem:[#allocation2 + $0x100] sm:$0xff]
    %v504 = vld [vmem:[#allocation2 + $0x108] sm:$0xff]
    %v505 = vld [vmem:[#allocation2 + $0x110] sm:$0xff]
    %v506 = vld [vmem:[#allocation2 + $0x118] sm:$0xff]
    %v507 = vld [vmem:[#allocation2 + $0x120] sm:$0xff]
    %v508 = vld [vmem:[#allocation2 + $0x128] sm:$0xff]
    %v509 = vld [vmem:[#allocation2 + $0x130] sm:$0xff]
    %v510 = vld [vmem:[#allocation2 + $0x138] sm:$0xff]
    %v511 = vld [vmem:[#allocation2 + $0x140] sm:$0xff]
    %v512 = vld [vmem:[#allocation2 + $0x148] sm:$0xff]
    %v513 = vld [vmem:[#allocation2 + $0x150] sm:$0xff]
    %v514 = vld [vmem:[#allocation2 + $0x158] sm:$0xff]
    %v515 = vld [vmem:[#allocation2 + $0x160] sm:$0xff]
    %v516 = vld [vmem:[#allocation2 + $0x168] sm:$0xff]
    %v517 = vld [vmem:[#allocation2 + $0x170] sm:$0xff]
    %v518 = vld [vmem:[#allocation2 + $0x178] sm:$0xff]
    %v519 = vld [vmem:[#allocation2 + $0x180] sm:$0xff]
    %v520 = vld [vmem:[#allocation2 + $0x188] sm:$0xff]
    %v521 = vld [vmem:[#allocation2 + $0x190] sm:$0xff]
    %v522 = vld [vmem:[#allocation2 + $0x198] sm:$0xff]
    %v523 = vld [vmem:[#allocation2 + $0x1a0] sm:$0xff]
    %v524 = vld [vmem:[#allocation2 + $0x1a8] sm:$0xff]
    %v525 = vld [vmem:[#allocation2 + $0x1b0] sm:$0xff]
    %v526 = vld [vmem:[#allocation2 + $0x1b8] sm:$0xff]
    %v527 = vld [vmem:[#allocation2 + $0x1c0] sm:$0xff]
    %v528 = vld [vmem:[#allocation2 + $0x1c8] sm:$0xff]
    %v529 = vld [vmem:[#allocation2 + $0x1d0] sm:$0xff]
    %v530 = vld [vmem:[#allocation2 + $0x1d8] sm:$0xff]
    %v531 = vld [vmem:[#allocation2 + $0x1e0] sm:$0xff]
    %v532 = vld [vmem:[#allocation2 + $0x1e8] sm:$0xff]
    %v533 = vld [vmem:[#allocation2 + $0x1f0] sm:$0xff]
    %v534 = vld [vmem:[#allocation2 + $0x1f8] sm:$0xff]
    %v535 = vld [vmem:[%s12] sm:$0x3]
    %536 = vmatprep.subr.mxu0 %v149
    %537 = vmatpush1.msra.mxu0 %v148
    %538 = vmatprep.subr.mxu0 %v153
    %539 = vmatpush1.msra.mxu0 %v152
    %540 = vmatprep.subr.mxu0 %v157
    %541 = vmatpush1.msra.mxu0 %v156
    %542 = vmatprep.subr.mxu0 %v161
    %543 = vmatpush1.msra.mxu0 %v160
    %544 = vmatprep.subr.mxu0 %v165
    %545 = vmatpush1.msra.mxu0 %v164
    %546 = vmatprep.subr.mxu0 %v169
    %547 = vmatpush1.msra.mxu0 %v168
    %548 = vmatprep.subr.mxu0 %v173
    %549 = vmatpush1.msra.mxu0 %v172
    %550 = vmatprep.subr.mxu0 %v177
    %551 = vmatpush1.msra.mxu0 %v176
    %552 = vmatprep.subr.mxu0 %v181
    %553 = vmatpush1.msra.mxu0 %v180
    %554 = vmatprep.subr.mxu0 %v185
    %555 = vmatpush1.msra.mxu0 %v184
    %556 = vmatprep.subr.mxu0 %v189
    %557 = vmatpush1.msra.mxu0 %v188
    %558 = vmatprep.subr.mxu0 %v193
    %559 = vmatpush1.msra.mxu0 %v192
    %560 = vmatprep.subr.mxu0 %v197
    %561 = vmatpush1.msra.mxu0 %v196
    %562 = vmatprep.subr.mxu0 %v201
    %563 = vmatpush1.msra.mxu0 %v200
    %564 = vmatprep.subr.mxu0 %v205
    %565 = vmatpush1.msra.mxu0 %v204
    %566 = vmatprep.subr.mxu0 %v209
    %567 = vmatpush1.msra.mxu0 %v208
    %568 = vmatprep.subr.mxu0 %v213
    %569 = vmatpush1.msra.mxu0 %v212
    %570 = vmatprep.subr.mxu0 %v217
    %571 = vmatpush1.msra.mxu0 %v216
    %572 = vmatprep.subr.mxu0 %v221
    %573 = vmatpush1.msra.mxu0 %v220
    %574 = vmatprep.subr.mxu0 %v225
    %575 = vmatpush1.msra.mxu0 %v224
    %576 = vmatprep.subr.mxu0 %v229
    %577 = vmatpush1.msra.mxu0 %v228
    %578 = vmatprep.subr.mxu0 %v233
    %579 = vmatpush1.msra.mxu0 %v232
    %580 = vmatprep.subr.mxu0 %v237
    %581 = vmatpush1.msra.mxu0 %v236
    %582 = vmatprep.subr.mxu0 %v241
    %583 = vmatpush1.msra.mxu0 %v240
    %584 = vmatprep.subr.mxu0 %v245
    %585 = vmatpush1.msra.mxu0 %v244
    %586 = vmatprep.subr.mxu0 %v249
    %587 = vmatpush1.msra.mxu0 %v248
    %588 = vmatprep.subr.mxu0 %v253
    %589 = vmatpush1.msra.mxu0 %v252
    %590 = vmatprep.subr.mxu0 %v257
    %591 = vmatpush1.msra.mxu0 %v256
    %592 = vmatprep.subr.mxu0 %v261
    %593 = vmatpush1.msra.mxu0 %v260
    %594 = vmatprep.subr.mxu0 %v265
    %595 = vmatpush1.msra.mxu0 %v264
    %596 = vmatprep.subr.mxu0 %v269
    %597 = vmatpush1.msra.mxu0 %v268
    %598 = vmatprep.subr.mxu0 %v273
    %599 = vmatpush1.msra.mxu0 %v272
    %600 = vmatprep.mubr.f32.mxu0 %v115
    %601 = vmatmul.mubr.f32.gmra.mrb[0].mxu0 %v114
    %v602 = vpop.f32.mrb[0].mxu0
    %v603 = vadd.f32 0.0, %v602
    %v604 = vpop.f32.mrb[0].mxu0
    %v605 = vadd.f32 0.0, %v604
    %606 = vdwg.mxu0
    %607 = vmatprep.subr.mxu0 %v151
    %608 = vmatpush1.msra.mxu0 %v150
    %609 = vmatprep.subr.mxu0 %v155
    %610 = vmatpush1.msra.mxu0 %v154
    %611 = vmatprep.subr.mxu0 %v159
    %612 = vmatpush1.msra.mxu0 %v158
    %613 = vmatprep.subr.mxu0 %v163
    %614 = vmatpush1.msra.mxu0 %v162
    %615 = vmatprep.subr.mxu0 %v167
    %616 = vmatpush1.msra.mxu0 %v166
    %617 = vmatprep.subr.mxu0 %v171
    %618 = vmatpush1.msra.mxu0 %v170
    %619 = vmatprep.subr.mxu0 %v175
    %620 = vmatpush1.msra.mxu0 %v174
    %621 = vmatprep.subr.mxu0 %v179
    %622 = vmatpush1.msra.mxu0 %v178
    %623 = vmatprep.subr.mxu0 %v183
    %624 = vmatpush1.msra.mxu0 %v182
    %625 = vmatprep.subr.mxu0 %v187
    %626 = vmatpush1.msra.mxu0 %v186
    %627 = vmatprep.subr.mxu0 %v191
    %628 = vmatpush1.msra.mxu0 %v190
    %629 = vmatprep.subr.mxu0 %v195
    %630 = vmatpush1.msra.mxu0 %v194
    %631 = vmatprep.subr.mxu0 %v199
    %632 = vmatpush1.msra.mxu0 %v198
    %633 = vmatprep.subr.mxu0 %v203
    %634 = vmatpush1.msra.mxu0 %v202
    %635 = vmatprep.subr.mxu0 %v207
    %636 = vmatpush1.msra.mxu0 %v206
    %637 = vmatprep.subr.mxu0 %v211
    %638 = vmatpush1.msra.mxu0 %v210
    %639 = vmatprep.subr.mxu0 %v215
    %640 = vmatpush1.msra.mxu0 %v214
    %641 = vmatprep.subr.mxu0 %v219
    %642 = vmatpush1.msra.mxu0 %v218
    %643 = vmatprep.subr.mxu0 %v223
    %644 = vmatpush1.msra.mxu0 %v222
    %645 = vmatprep.subr.mxu0 %v227
    %646 = vmatpush1.msra.mxu0 %v226
    %647 = vmatprep.subr.mxu0 %v231
    %648 = vmatpush1.msra.mxu0 %v230
    %649 = vmatprep.subr.mxu0 %v235
    %650 = vmatpush1.msra.mxu0 %v234
    %651 = vmatprep.subr.mxu0 %v239
    %652 = vmatpush1.msra.mxu0 %v238
    %653 = vmatprep.subr.mxu0 %v243
    %654 = vmatpush1.msra.mxu0 %v242
    %655 = vmatprep.subr.mxu0 %v247
    %656 = vmatpush1.msra.mxu0 %v246
    %657 = vmatprep.subr.mxu0 %v251
    %658 = vmatpush1.msra.mxu0 %v250
    %659 = vmatprep.subr.mxu0 %v255
    %660 = vmatpush1.msra.mxu0 %v254
    %661 = vmatprep.subr.mxu0 %v259
    %662 = vmatpush1.msra.mxu0 %v258
    %663 = vmatprep.subr.mxu0 %v263
    %664 = vmatpush1.msra.mxu0 %v262
    %665 = vmatprep.subr.mxu0 %v267
    %666 = vmatpush1.msra.mxu0 %v266
    %667 = vmatprep.subr.mxu0 %v271
    %668 = vmatpush1.msra.mxu0 %v270
    %669 = vmatprep.subr.mxu0 %v275
    %670 = vmatpush1.msra.mxu0 %v274
    %671 = vmatprep.mubr.f32.mxu0 %v115
    %672 = vmatmul.mubr.f32.gmra.mrb[0].mxu0 %v114
    %v673 = vpop.f32.mrb[0].mxu0
    %v674 = vadd.f32 0.0, %v673
    %v675 = vpop.f32.mrb[0].mxu0
    %v676 = vadd.f32 0.0, %v675
    %677 = vdwg.mxu0
    %vm678 = vcmask 523264
    %v680 = vsel %vm678, %v113, 0
    %682 = vmatprep.subr.mxu0 %v117
    %683 = vmatpush1.msra.mxu0 %v116
    %684 = vmatprep.subr.mxu0 %v121
    %685 = vmatpush1.msra.mxu0 %v120
    %686 = vmatprep.subr.mxu0 %v125
    %687 = vmatpush1.msra.mxu0 %v124
    %688 = vmatprep.subr.mxu0 %v129
    %689 = vmatpush1.msra.mxu0 %v128
    %690 = vmatprep.subr.mxu0 %v133
    %691 = vmatpush1.msra.mxu0 %v132
    %692 = vmatprep.subr.mxu0 %v137
    %693 = vmatpush1.msra.mxu0 %v136
    %694 = vmatprep.subr.mxu0 %v141
    %695 = vmatpush1.msra.mxu0 %v140
    %696 = vmatprep.subr.mxu0 %v145
    %697 = vmatpush1.msra.mxu0 %v144
    %698 = vmatprep.subr.mxu0 0.0
    %699 = vmatpush1.msra.mxu0 0.0
    %700 = vmatprep.subr.mxu0 0.0
    %701 = vmatpush1.msra.mxu0 0.0
    %702 = vmatprep.subr.mxu0 0.0
    %703 = vmatpush1.msra.mxu0 0.0
    %704 = vmatprep.subr.mxu0 0.0
    %705 = vmatpush1.msra.mxu0 0.0
    %706 = vmatprep.subr.mxu0 0.0
    %707 = vmatpush1.msra.mxu0 0.0
    %708 = vmatprep.subr.mxu0 0.0
    %709 = vmatpush1.msra.mxu0 0.0
    %710 = vmatprep.subr.mxu0 0.0
    %711 = vmatpush1.msra.mxu0 0.0
    %712 = vmatprep.subr.mxu0 0.0
    %713 = vmatpush1.msra.mxu0 0.0
    %714 = vmatprep.subr.mxu0 0.0
    %715 = vmatpush1.msra.mxu0 0.0
    %716 = vmatprep.subr.mxu0 0.0
    %717 = vmatpush1.msra.mxu0 0.0
    %718 = vmatprep.subr.mxu0 0.0
    %719 = vmatpush1.msra.mxu0 0.0
    %720 = vmatprep.subr.mxu0 0.0
    %721 = vmatpush1.msra.mxu0 0.0
    %722 = vmatprep.subr.mxu0 0.0
    %723 = vmatpush1.msra.mxu0 0.0
    %724 = vmatprep.subr.mxu0 0.0
    %725 = vmatpush1.msra.mxu0 0.0
    %726 = vmatprep.subr.mxu0 0.0
    %727 = vmatpush1.msra.mxu0 0.0
    %728 = vmatprep.subr.mxu0 0.0
    %729 = vmatpush1.msra.mxu0 0.0
    %730 = vmatprep.subr.mxu0 0.0
    %731 = vmatpush1.msra.mxu0 0.0
    %732 = vmatprep.subr.mxu0 0.0
    %733 = vmatpush1.msra.mxu0 0.0
    %734 = vmatprep.subr.mxu0 0.0
    %735 = vmatpush1.msra.mxu0 0.0
    %736 = vmatprep.subr.mxu0 0.0
    %737 = vmatpush1.msra.mxu0 0.0
    %738 = vmatprep.subr.mxu0 0.0
    %739 = vmatpush1.msra.mxu0 0.0
    %740 = vmatprep.subr.mxu0 0.0
    %741 = vmatpush1.msra.mxu0 0.0
    %742 = vmatprep.subr.mxu0 0.0
    %743 = vmatpush1.msra.mxu0 0.0
    %744 = vmatprep.subr.mxu0 0.0
    %745 = vmatpush1.msra.mxu0 0.0
    %746 = vmatprep.mubr.f32.mxu0 0.0
    %747 = vmatmul.mubr.f32.gmra.mrb[0].mxu0 %v680
    %v748 = vpop.f32.mrb[0].mxu0
    %v749 = vadd.f32 %v603, %v748
    %v750 = vpop.f32.mrb[0].mxu0
    %v751 = vadd.f32 %v605, %v750
    %752 = vdwg.mxu0
    %753 = vmatprep.subr.mxu0 %v119
    %754 = vmatpush1.msra.mxu0 %v118
    %755 = vmatprep.subr.mxu0 %v123
    %756 = vmatpush1.msra.mxu0 %v122
    %757 = vmatprep.subr.mxu0 %v127
    %758 = vmatpush1.msra.mxu0 %v126
    %759 = vmatprep.subr.mxu0 %v131
    %760 = vmatpush1.msra.mxu0 %v130
    %761 = vmatprep.subr.mxu0 %v135
    %762 = vmatpush1.msra.mxu0 %v134
    %763 = vmatprep.subr.mxu0 %v139
    %764 = vmatpush1.msra.mxu0 %v138
    %765 = vmatprep.subr.mxu0 %v143
    %766 = vmatpush1.msra.mxu0 %v142
    %767 = vmatprep.subr.mxu0 %v147
    %768 = vmatpush1.msra.mxu0 %v146
    %769 = vmatprep.subr.mxu0 0.0
    %770 = vmatpush1.msra.mxu0 0.0
    %771 = vmatprep.subr.mxu0 0.0
    %772 = vmatpush1.msra.mxu0 0.0
    %773 = vmatprep.subr.mxu0 0.0
    %774 = vmatpush1.msra.mxu0 0.0
    %775 = vmatprep.subr.mxu0 0.0
    %776 = vmatpush1.msra.mxu0 0.0
    %777 = vmatprep.subr.mxu0 0.0
    %778 = vmatpush1.msra.mxu0 0.0
    %779 = vmatprep.subr.mxu0 0.0
    %780 = vmatpush1.msra.mxu0 0.0
    %781 = vmatprep.subr.mxu0 0.0
    %782 = vmatpush1.msra.mxu0 0.0
    %783 = vmatprep.subr.mxu0 0.0
    %784 = vmatpush1.msra.mxu0 0.0
    %785 = vmatprep.subr.mxu0 0.0
    %786 = vmatpush1.msra.mxu0 0.0
    %787 = vmatprep.subr.mxu0 0.0
    %788 = vmatpush1.msra.mxu0 0.0
    %789 = vmatprep.subr.mxu0 0.0
    %790 = vmatpush1.msra.mxu0 0.0
    %791 = vmatprep.subr.mxu0 0.0
    %792 = vmatpush1.msra.mxu0 0.0
    %793 = vmatprep.subr.mxu0 0.0
    %794 = vmatpush1.msra.mxu0 0.0
    %795 = vmatprep.subr.mxu0 0.0
    %796 = vmatpush1.msra.mxu0 0.0
    %797 = vmatprep.subr.mxu0 0.0
    %798 = vmatpush1.msra.mxu0 0.0
    %799 = vmatprep.subr.mxu0 0.0
    %800 = vmatpush1.msra.mxu0 0.0
    %801 = vmatprep.subr.mxu0 0.0
    %802 = vmatpush1.msra.mxu0 0.0
    %803 = vmatprep.subr.mxu0 0.0
    %804 = vmatpush1.msra.mxu0 0.0
    %805 = vmatprep.subr.mxu0 0.0
    %806 = vmatpush1.msra.mxu0 0.0
    %807 = vmatprep.subr.mxu0 0.0
    %808 = vmatpush1.msra.mxu0 0.0
    %809 = vmatprep.subr.mxu0 0.0
    %810 = vmatpush1.msra.mxu0 0.0
    %811 = vmatprep.subr.mxu0 0.0
    %812 = vmatpush1.msra.mxu0 0.0
    %813 = vmatprep.subr.mxu0 0.0
    %814 = vmatpush1.msra.mxu0 0.0
    %815 = vmatprep.subr.mxu0 0.0
    %816 = vmatpush1.msra.mxu0 0.0
    %817 = vmatprep.mubr.f32.mxu0 0.0
    %818 = vmatmul.mubr.f32.gmra.mrb[0].mxu0 %v680
    %v819 = vpop.f32.mrb[0].mxu0
    %v820 = vadd.f32 %v674, %v819
    %v821 = vpop.f32.mrb[0].mxu0
    %v822 = vadd.f32 %v676, %v821
    %823 = vdwg.mxu0
    %v825 = vlaneseq
    %v826 = vshrl.u32 %v825, 7
    %v827 = vsub.s32 0, %v826
    %v828 = vrot.slane %v276, %v827
    %v829 = vlaneseq
    %v830 = vshrl.u32 %v829, 7
    %v831 = vsub.s32 1, %v830
    %v832 = vrot.slane %v276, %v831
    %v833 = vlaneseq
    %v834 = vshrl.u32 %v833, 7
    %v835 = vsub.s32 2, %v834
    %v836 = vrot.slane %v276, %v835
    %v837 = vlaneseq
    %v838 = vshrl.u32 %v837, 7
    %v839 = vsub.s32 3, %v838
    %v840 = vrot.slane %v276, %v839
    %v845 = vadd.f32 %v749, %v828
    %v846 = vadd.f32 %v751, %v832
    %v847 = vadd.f32 %v820, %v836
    %v848 = vadd.f32 %v822, %v840
    %v849 = vrot.slane %v845, 4
    %v850 = vadd.f32 %v845, %v849
    %v851 = vrot.slane %v850, 2
    %v852 = vadd.f32 %v850, %v851
    %v853 = vrot.slane %v852, 1
    %v854 = vadd.f32 %v852, %v853
    %v855 = vrot.slane %v846, 4
    %v856 = vadd.f32 %v846, %v855
    %v857 = vrot.slane %v856, 2
    %v858 = vadd.f32 %v856, %v857
    %v859 = vrot.slane %v858, 1
    %v860 = vadd.f32 %v858, %v859
    %v861 = vrot.slane %v847, 4
    %v862 = vadd.f32 %v847, %v861
    %v863 = vrot.slane %v862, 2
    %v864 = vadd.f32 %v862, %v863
    %v865 = vrot.slane %v864, 1
    %v866 = vadd.f32 %v864, %v865
    %v867 = vrot.slane %v848, 4
    %v868 = vadd.f32 %v848, %v867
    %v869 = vrot.slane %v868, 2
    %v870 = vadd.f32 %v868, %v869
    %v871 = vrot.slane %v870, 1
    %v872 = vadd.f32 %v870, %v871
    %v873 = vmul.f32 %v854, 0.125
    %v874 = vmul.f32 %v860, 0.125
    %v875 = vmul.f32 %v866, 0.125
    %v876 = vmul.f32 %v872, 0.125
    %v877 = vsub.f32 %v845, %v873
    %v878 = vsub.f32 %v846, %v874
    %v879 = vsub.f32 %v847, %v875
    %v880 = vsub.f32 %v848, %v876
    %v881 = vmul.f32 %v877, %v877
    %v882 = vmul.f32 %v878, %v878
    %v883 = vmul.f32 %v879, %v879
    %v884 = vmul.f32 %v880, %v880
    %v885 = vrot.slane %v881, 4
    %v886 = vadd.f32 %v881, %v885
    %v887 = vrot.slane %v886, 2
    %v888 = vadd.f32 %v886, %v887
    %v889 = vrot.slane %v888, 1
    %v890 = vadd.f32 %v888, %v889
    %v891 = vrot.slane %v882, 4
    %v892 = vadd.f32 %v882, %v891
    %v893 = vrot.slane %v892, 2
    %v894 = vadd.f32 %v892, %v893
    %v895 = vrot.slane %v894, 1
    %v896 = vadd.f32 %v894, %v895
    %v897 = vrot.slane %v883, 4
    %v898 = vadd.f32 %v883, %v897
    %v899 = vrot.slane %v898, 2
    %v900 = vadd.f32 %v898, %v899
    %v901 = vrot.slane %v900, 1
    %v902 = vadd.f32 %v900, %v901
    %v903 = vrot.slane %v884, 4
    %v904 = vadd.f32 %v884, %v903
    %v905 = vrot.slane %v904, 2
    %v906 = vadd.f32 %v904, %v905
    %v907 = vrot.slane %v906, 1
    %v908 = vadd.f32 %v906, %v907
    %v909 = vmul.f32 %v890, 0.125
    %v910 = vmul.f32 %v896, 0.125
    %v911 = vmul.f32 %v902, 0.125
    %v912 = vmul.f32 %v908, 0.125
    %v913 = vadd.f32 %v909, 0.001
    %v914 = vadd.f32 %v910, 0.001
    %v915 = vadd.f32 %v911, 0.001
    %v916 = vadd.f32 %v912, 0.001
    %v917 = vrsqrt.pop %v913
    %v918 = vrsqrt.pop %v914
    %v919 = vrsqrt.pop %v915
    %v920 = vrsqrt.pop %v916
    %v921 = vmul.f32 %v877, %v917
    %v922 = vmul.f32 %v878, %v918
    %v923 = vmul.f32 %v879, %v919
    %v924 = vmul.f32 %v880, %v920
    %v925 = vtanh.pop %v921
    %v926 = vtanh.pop %v922
    %v927 = vtanh.pop %v923
    %v928 = vtanh.pop %v924
    %v930 = vlaneseq
    %v931 = vshrl.u32 %v930, 7
    %v932 = vsub.s32 0, %v931
    %v933 = vrot.slane %v405, %v932
    %v934 = vlaneseq
    %v935 = vshrl.u32 %v934, 7
    %v936 = vsub.s32 1, %v935
    %v937 = vrot.slane %v405, %v936
    %940 = vmatprep.subr.mxu0 %v278
    %941 = vmatpush1.msra.mxu0 %v277
    %942 = vmatprep.subr.mxu0 %v280
    %943 = vmatpush1.msra.mxu0 %v279
    %944 = vmatprep.subr.mxu0 %v282
    %945 = vmatpush1.msra.mxu0 %v281
    %946 = vmatprep.subr.mxu0 %v284
    %947 = vmatpush1.msra.mxu0 %v283
    %948 = vmatprep.subr.mxu0 %v286
    %949 = vmatpush1.msra.mxu0 %v285
    %950 = vmatprep.subr.mxu0 %v288
    %951 = vmatpush1.msra.mxu0 %v287
    %952 = vmatprep.subr.mxu0 %v290
    %953 = vmatpush1.msra.mxu0 %v289
    %954 = vmatprep.subr.mxu0 %v292
    %955 = vmatpush1.msra.mxu0 %v291
    %956 = vmatprep.subr.mxu0 %v294
    %957 = vmatpush1.msra.mxu0 %v293
    %958 = vmatprep.subr.mxu0 %v296
    %959 = vmatpush1.msra.mxu0 %v295
    %960 = vmatprep.subr.mxu0 %v298
    %961 = vmatpush1.msra.mxu0 %v297
    %962 = vmatprep.subr.mxu0 %v300
    %963 = vmatpush1.msra.mxu0 %v299
    %964 = vmatprep.subr.mxu0 %v302
    %965 = vmatpush1.msra.mxu0 %v301
    %966 = vmatprep.subr.mxu0 %v304
    %967 = vmatpush1.msra.mxu0 %v303
    %968 = vmatprep.subr.mxu0 %v306
    %969 = vmatpush1.msra.mxu0 %v305
    %970 = vmatprep.subr.mxu0 %v308
    %971 = vmatpush1.msra.mxu0 %v307
    %972 = vmatprep.subr.mxu0 %v310
    %973 = vmatpush1.msra.mxu0 %v309
    %974 = vmatprep.subr.mxu0 %v312
    %975 = vmatpush1.msra.mxu0 %v311
    %976 = vmatprep.subr.mxu0 %v314
    %977 = vmatpush1.msra.mxu0 %v313
    %978 = vmatprep.subr.mxu0 %v316
    %979 = vmatpush1.msra.mxu0 %v315
    %980 = vmatprep.subr.mxu0 %v318
    %981 = vmatpush1.msra.mxu0 %v317
    %982 = vmatprep.subr.mxu0 %v320
    %983 = vmatpush1.msra.mxu0 %v319
    %984 = vmatprep.subr.mxu0 %v322
    %985 = vmatpush1.msra.mxu0 %v321
    %986 = vmatprep.subr.mxu0 %v324
    %987 = vmatpush1.msra.mxu0 %v323
    %988 = vmatprep.subr.mxu0 %v326
    %989 = vmatpush1.msra.mxu0 %v325
    %990 = vmatprep.subr.mxu0 %v328
    %991 = vmatpush1.msra.mxu0 %v327
    %992 = vmatprep.subr.mxu0 %v330
    %993 = vmatpush1.msra.mxu0 %v329
    %994 = vmatprep.subr.mxu0 %v332
    %995 = vmatpush1.msra.mxu0 %v331
    %996 = vmatprep.subr.mxu0 %v334
    %997 = vmatpush1.msra.mxu0 %v333
    %998 = vmatprep.subr.mxu0 %v336
    %999 = vmatpush1.msra.mxu0 %v335
    %1000 = vmatprep.subr.mxu0 %v338
    %1001 = vmatpush1.msra.mxu0 %v337
    %1002 = vmatprep.subr.mxu0 %v340
    %1003 = vmatpush1.msra.mxu0 %v339
    %1004 = vmatprep.mubr.f32.mxu0 %v926
    %1005 = vmatmul.mubr.f32.gmra.mrb[0].mxu0 %v925
    %v1006 = vpop.f32.mrb[0].mxu0
    %v1007 = vadd.f32 %v933, %v1006
    %v1008 = vpop.f32.mrb[0].mxu0
    %v1009 = vadd.f32 %v937, %v1008
    %1010 = vdwg.mxu0
    %1011 = vmatprep.subr.mxu0 %v342
    %1012 = vmatpush1.msra.mxu0 %v341
    %1013 = vmatprep.subr.mxu0 %v344
    %1014 = vmatpush1.msra.mxu0 %v343
    %1015 = vmatprep.subr.mxu0 %v346
    %1016 = vmatpush1.msra.mxu0 %v345
    %1017 = vmatprep.subr.mxu0 %v348
    %1018 = vmatpush1.msra.mxu0 %v347
    %1019 = vmatprep.subr.mxu0 %v350
    %1020 = vmatpush1.msra.mxu0 %v349
    %1021 = vmatprep.subr.mxu0 %v352
    %1022 = vmatpush1.msra.mxu0 %v351
    %1023 = vmatprep.subr.mxu0 %v354
    %1024 = vmatpush1.msra.mxu0 %v353
    %1025 = vmatprep.subr.mxu0 %v356
    %1026 = vmatpush1.msra.mxu0 %v355
    %1027 = vmatprep.subr.mxu0 %v358
    %1028 = vmatpush1.msra.mxu0 %v357
    %1029 = vmatprep.subr.mxu0 %v360
    %1030 = vmatpush1.msra.mxu0 %v359
    %1031 = vmatprep.subr.mxu0 %v362
    %1032 = vmatpush1.msra.mxu0 %v361
    %1033 = vmatprep.subr.mxu0 %v364
    %1034 = vmatpush1.msra.mxu0 %v363
    %1035 = vmatprep.subr.mxu0 %v366
    %1036 = vmatpush1.msra.mxu0 %v365
    %1037 = vmatprep.subr.mxu0 %v368
    %1038 = vmatpush1.msra.mxu0 %v367
    %1039 = vmatprep.subr.mxu0 %v370
    %1040 = vmatpush1.msra.mxu0 %v369
    %1041 = vmatprep.subr.mxu0 %v372
    %1042 = vmatpush1.msra.mxu0 %v371
    %1043 = vmatprep.subr.mxu0 %v374
    %1044 = vmatpush1.msra.mxu0 %v373
    %1045 = vmatprep.subr.mxu0 %v376
    %1046 = vmatpush1.msra.mxu0 %v375
    %1047 = vmatprep.subr.mxu0 %v378
    %1048 = vmatpush1.msra.mxu0 %v377
    %1049 = vmatprep.subr.mxu0 %v380
    %1050 = vmatpush1.msra.mxu0 %v379
    %1051 = vmatprep.subr.mxu0 %v382
    %1052 = vmatpush1.msra.mxu0 %v381
    %1053 = vmatprep.subr.mxu0 %v384
    %1054 = vmatpush1.msra.mxu0 %v383
    %1055 = vmatprep.subr.mxu0 %v386
    %1056 = vmatpush1.msra.mxu0 %v385
    %1057 = vmatprep.subr.mxu0 %v388
    %1058 = vmatpush1.msra.mxu0 %v387
    %1059 = vmatprep.subr.mxu0 %v390
    %1060 = vmatpush1.msra.mxu0 %v389
    %1061 = vmatprep.subr.mxu0 %v392
    %1062 = vmatpush1.msra.mxu0 %v391
    %1063 = vmatprep.subr.mxu0 %v394
    %1064 = vmatpush1.msra.mxu0 %v393
    %1065 = vmatprep.subr.mxu0 %v396
    %1066 = vmatpush1.msra.mxu0 %v395
    %1067 = vmatprep.subr.mxu0 %v398
    %1068 = vmatpush1.msra.mxu0 %v397
    %1069 = vmatprep.subr.mxu0 %v400
    %1070 = vmatpush1.msra.mxu0 %v399
    %1071 = vmatprep.subr.mxu0 %v402
    %1072 = vmatpush1.msra.mxu0 %v401
    %1073 = vmatprep.subr.mxu0 %v404
    %1074 = vmatpush1.msra.mxu0 %v403
    %1075 = vmatprep.mubr.f32.mxu0 %v928
    %1076 = vmatmul.mubr.f32.gmra.mrb[0].mxu0 %v927
    %v1077 = vpop.f32.mrb[0].mxu0
    %v1078 = vadd.f32 %v1007, %v1077
    %v1079 = vpop.f32.mrb[0].mxu0
    %v1080 = vadd.f32 %v1009, %v1079
    %1081 = vdwg.mxu0
    %v1082 = vrot.slane %v1078, 4
    %v1083 = vadd.f32 %v1078, %v1082
    %v1084 = vrot.slane %v1083, 2
    %v1085 = vadd.f32 %v1083, %v1084
    %v1086 = vrot.slane %v1085, 1
    %v1087 = vadd.f32 %v1085, %v1086
    %v1088 = vrot.slane %v1080, 4
    %v1089 = vadd.f32 %v1080, %v1088
    %v1090 = vrot.slane %v1089, 2
    %v1091 = vadd.f32 %v1089, %v1090
    %v1092 = vrot.slane %v1091, 1
    %v1093 = vadd.f32 %v1091, %v1092
    %v1094 = vmul.f32 %v1087, 0.125
    %v1095 = vmul.f32 %v1093, 0.125
    %v1096 = vsub.f32 %v1078, %v1094
    %v1097 = vsub.f32 %v1080, %v1095
    %v1098 = vmul.f32 %v1096, %v1096
    %v1099 = vmul.f32 %v1097, %v1097
    %v1100 = vrot.slane %v1098, 4
    %v1101 = vadd.f32 %v1098, %v1100
    %v1102 = vrot.slane %v1101, 2
    %v1103 = vadd.f32 %v1101, %v1102
    %v1104 = vrot.slane %v1103, 1
    %v1105 = vadd.f32 %v1103, %v1104
    %v1106 = vrot.slane %v1099, 4
    %v1107 = vadd.f32 %v1099, %v1106
    %v1108 = vrot.slane %v1107, 2
    %v1109 = vadd.f32 %v1107, %v1108
    %v1110 = vrot.slane %v1109, 1
    %v1111 = vadd.f32 %v1109, %v1110
    %v1112 = vmul.f32 %v1105, 0.125
    %v1113 = vmul.f32 %v1111, 0.125
    %v1114 = vadd.f32 %v1112, 0.001
    %v1115 = vadd.f32 %v1113, 0.001
    %v1116 = vrsqrt.pop %v1114
    %v1117 = vrsqrt.pop %v1115
    %v1118 = vmul.f32 %v1096, %v1116
    %v1119 = vmul.f32 %v1097, %v1117
    %v1120 = vtanh.pop %v1118
    %v1121 = vtanh.pop %v1119
    %v1123 = vlaneseq
    %v1124 = vshrl.u32 %v1123, 7
    %v1125 = vsub.s32 0, %v1124
    %v1126 = vrot.slane %v470, %v1125
    %v1127 = vlaneseq
    %v1128 = vshrl.u32 %v1127, 7
    %v1129 = vsub.s32 1, %v1128
    %v1130 = vrot.slane %v470, %v1129
    %1133 = vmatprep.subr.mxu0 %v407
    %1134 = vmatpush1.msra.mxu0 %v406
    %1135 = vmatprep.subr.mxu0 %v409
    %1136 = vmatpush1.msra.mxu0 %v408
    %1137 = vmatprep.subr.mxu0 %v411
    %1138 = vmatpush1.msra.mxu0 %v410
    %1139 = vmatprep.subr.mxu0 %v413
    %1140 = vmatpush1.msra.mxu0 %v412
    %1141 = vmatprep.subr.mxu0 %v415
    %1142 = vmatpush1.msra.mxu0 %v414
    %1143 = vmatprep.subr.mxu0 %v417
    %1144 = vmatpush1.msra.mxu0 %v416
    %1145 = vmatprep.subr.mxu0 %v419
    %1146 = vmatpush1.msra.mxu0 %v418
    %1147 = vmatprep.subr.mxu0 %v421
    %1148 = vmatpush1.msra.mxu0 %v420
    %1149 = vmatprep.subr.mxu0 %v423
    %1150 = vmatpush1.msra.mxu0 %v422
    %1151 = vmatprep.subr.mxu0 %v425
    %1152 = vmatpush1.msra.mxu0 %v424
    %1153 = vmatprep.subr.mxu0 %v427
    %1154 = vmatpush1.msra.mxu0 %v426
    %1155 = vmatprep.subr.mxu0 %v429
    %1156 = vmatpush1.msra.mxu0 %v428
    %1157 = vmatprep.subr.mxu0 %v431
    %1158 = vmatpush1.msra.mxu0 %v430
    %1159 = vmatprep.subr.mxu0 %v433
    %1160 = vmatpush1.msra.mxu0 %v432
    %1161 = vmatprep.subr.mxu0 %v435
    %1162 = vmatpush1.msra.mxu0 %v434
    %1163 = vmatprep.subr.mxu0 %v437
    %1164 = vmatpush1.msra.mxu0 %v436
    %1165 = vmatprep.subr.mxu0 %v439
    %1166 = vmatpush1.msra.mxu0 %v438
    %1167 = vmatprep.subr.mxu0 %v441
    %1168 = vmatpush1.msra.mxu0 %v440
    %1169 = vmatprep.subr.mxu0 %v443
    %1170 = vmatpush1.msra.mxu0 %v442
    %1171 = vmatprep.subr.mxu0 %v445
    %1172 = vmatpush1.msra.mxu0 %v444
    %1173 = vmatprep.subr.mxu0 %v447
    %1174 = vmatpush1.msra.mxu0 %v446
    %1175 = vmatprep.subr.mxu0 %v449
    %1176 = vmatpush1.msra.mxu0 %v448
    %1177 = vmatprep.subr.mxu0 %v451
    %1178 = vmatpush1.msra.mxu0 %v450
    %1179 = vmatprep.subr.mxu0 %v453
    %1180 = vmatpush1.msra.mxu0 %v452
    %1181 = vmatprep.subr.mxu0 %v455
    %1182 = vmatpush1.msra.mxu0 %v454
    %1183 = vmatprep.subr.mxu0 %v457
    %1184 = vmatpush1.msra.mxu0 %v456
    %1185 = vmatprep.subr.mxu0 %v459
    %1186 = vmatpush1.msra.mxu0 %v458
    %1187 = vmatprep.subr.mxu0 %v461
    %1188 = vmatpush1.msra.mxu0 %v460
    %1189 = vmatprep.subr.mxu0 %v463
    %1190 = vmatpush1.msra.mxu0 %v462
    %1191 = vmatprep.subr.mxu0 %v465
    %1192 = vmatpush1.msra.mxu0 %v464
    %1193 = vmatprep.subr.mxu0 %v467
    %1194 = vmatpush1.msra.mxu0 %v466
    %1195 = vmatprep.subr.mxu0 %v469
    %1196 = vmatpush1.msra.mxu0 %v468
    %1197 = vmatprep.mubr.f32.mxu0 %v1121
    %1198 = vmatmul.mubr.f32.gmra.mrb[0].mxu0 %v1120
    %v1199 = vpop.f32.mrb[0].mxu0
    %v1200 = vadd.f32 %v1126, %v1199
    %v1201 = vpop.f32.mrb[0].mxu0
    %v1202 = vadd.f32 %v1130, %v1201
    %1203 = vdwg.mxu0
    %v1204 = vrot.slane %v1200, 4
    %v1205 = vadd.f32 %v1200, %v1204
    %v1206 = vrot.slane %v1205, 2
    %v1207 = vadd.f32 %v1205, %v1206
    %v1208 = vrot.slane %v1207, 1
    %v1209 = vadd.f32 %v1207, %v1208
    %v1210 = vrot.slane %v1202, 4
    %v1211 = vadd.f32 %v1202, %v1210
    %v1212 = vrot.slane %v1211, 2
    %v1213 = vadd.f32 %v1211, %v1212
    %v1214 = vrot.slane %v1213, 1
    %v1215 = vadd.f32 %v1213, %v1214
    %v1216 = vmul.f32 %v1209, 0.125
    %v1217 = vmul.f32 %v1215, 0.125
    %v1218 = vsub.f32 %v1200, %v1216
    %v1219 = vsub.f32 %v1202, %v1217
    %v1220 = vmul.f32 %v1218, %v1218
    %v1221 = vmul.f32 %v1219, %v1219
    %v1222 = vrot.slane %v1220, 4
    %v1223 = vadd.f32 %v1220, %v1222
    %v1224 = vrot.slane %v1223, 2
    %v1225 = vadd.f32 %v1223, %v1224
    %v1226 = vrot.slane %v1225, 1
    %v1227 = vadd.f32 %v1225, %v1226
    %v1228 = vrot.slane %v1221, 4
    %v1229 = vadd.f32 %v1221, %v1228
    %v1230 = vrot.slane %v1229, 2
    %v1231 = vadd.f32 %v1229, %v1230
    %v1232 = vrot.slane %v1231, 1
    %v1233 = vadd.f32 %v1231, %v1232
    %v1234 = vmul.f32 %v1227, 0.125
    %v1235 = vmul.f32 %v1233, 0.125
    %v1236 = vadd.f32 %v1234, 0.001
    %v1237 = vadd.f32 %v1235, 0.001
    %v1238 = vrsqrt.pop %v1236
    %v1239 = vrsqrt.pop %v1237
    %v1240 = vmul.f32 %v1218, %v1238
    %v1241 = vmul.f32 %v1219, %v1239
    %v1242 = vtanh.pop %v1240
    %v1243 = vtanh.pop %v1241
    %v1245 = vlaneseq
    %v1246 = vshrl.u32 %v1245, 7
    %v1247 = vsub.s32 0, %v1246
    %v1248 = vrot.slane %v535, %v1247
    %v1249 = vlaneseq
    %v1250 = vshrl.u32 %v1249, 7
    %v1251 = vsub.s32 1, %v1250
    %v1252 = vrot.slane %v535, %v1251
    %1255 = vmatprep.subr.mxu0 %v472
    %1256 = vmatpush1.msra.mxu0 %v471
    %1257 = vmatprep.subr.mxu0 %v474
    %1258 = vmatpush1.msra.mxu0 %v473
    %1259 = vmatprep.subr.mxu0 %v476
    %1260 = vmatpush1.msra.mxu0 %v475
    %1261 = vmatprep.subr.mxu0 %v478
    %1262 = vmatpush1.msra.mxu0 %v477
    %1263 = vmatprep.subr.mxu0 %v480
    %1264 = vmatpush1.msra.mxu0 %v479
    %1265 = vmatprep.subr.mxu0 %v482
    %1266 = vmatpush1.msra.mxu0 %v481
    %1267 = vmatprep.subr.mxu0 %v484
    %1268 = vmatpush1.msra.mxu0 %v483
    %1269 = vmatprep.subr.mxu0 %v486
    %1270 = vmatpush1.msra.mxu0 %v485
    %1271 = vmatprep.subr.mxu0 %v488
    %1272 = vmatpush1.msra.mxu0 %v487
    %1273 = vmatprep.subr.mxu0 %v490
    %1274 = vmatpush1.msra.mxu0 %v489
    %1275 = vmatprep.subr.mxu0 %v492
    %1276 = vmatpush1.msra.mxu0 %v491
    %1277 = vmatprep.subr.mxu0 %v494
    %1278 = vmatpush1.msra.mxu0 %v493
    %1279 = vmatprep.subr.mxu0 %v496
    %1280 = vmatpush1.msra.mxu0 %v495
    %1281 = vmatprep.subr.mxu0 %v498
    %1282 = vmatpush1.msra.mxu0 %v497
    %1283 = vmatprep.subr.mxu0 %v500
    %1284 = vmatpush1.msra.mxu0 %v499
    %1285 = vmatprep.subr.mxu0 %v502
    %1286 = vmatpush1.msra.mxu0 %v501
    %1287 = vmatprep.subr.mxu0 %v504
    %1288 = vmatpush1.msra.mxu0 %v503
    %1289 = vmatprep.subr.mxu0 %v506
    %1290 = vmatpush1.msra.mxu0 %v505
    %1291 = vmatprep.subr.mxu0 %v508
    %1292 = vmatpush1.msra.mxu0 %v507
    %1293 = vmatprep.subr.mxu0 %v510
    %1294 = vmatpush1.msra.mxu0 %v509
    %1295 = vmatprep.subr.mxu0 %v512
    %1296 = vmatpush1.msra.mxu0 %v511
    %1297 = vmatprep.subr.mxu0 %v514
    %1298 = vmatpush1.msra.mxu0 %v513
    %1299 = vmatprep.subr.mxu0 %v516
    %1300 = vmatpush1.msra.mxu0 %v515
    %1301 = vmatprep.subr.mxu0 %v518
    %1302 = vmatpush1.msra.mxu0 %v517
    %1303 = vmatprep.subr.mxu0 %v520
    %1304 = vmatpush1.msra.mxu0 %v519
    %1305 = vmatprep.subr.mxu0 %v522
    %1306 = vmatpush1.msra.mxu0 %v521
    %1307 = vmatprep.subr.mxu0 %v524
    %1308 = vmatpush1.msra.mxu0 %v523
    %1309 = vmatprep.subr.mxu0 %v526
    %1310 = vmatpush1.msra.mxu0 %v525
    %1311 = vmatprep.subr.mxu0 %v528
    %1312 = vmatpush1.msra.mxu0 %v527
    %1313 = vmatprep.subr.mxu0 %v530
    %1314 = vmatpush1.msra.mxu0 %v529
    %1315 = vmatprep.subr.mxu0 %v532
    %1316 = vmatpush1.msra.mxu0 %v531
    %1317 = vmatprep.subr.mxu0 %v534
    %1318 = vmatpush1.msra.mxu0 %v533
    %1319 = vmatprep.mubr.f32.mxu0 %v1243
    %1320 = vmatmul.mubr.f32.gmra.mrb[0].mxu0 %v1242
    %v1321 = vpop.f32.mrb[0].mxu0
    %v1322 = vadd.f32 %v1248, %v1321
    %v1323 = vpop.f32.mrb[0].mxu0
    %v1324 = vadd.f32 %v1252, %v1323
    %1325 = vdwg.mxu0
    %v1326 = vld [vmem:[%s2] sm:$0xff]
    %v1327 = vld [vmem:[%s3] sm:$0xff]
    %v1328 = vld [vmem:[%s3 + $0x8] sm:$0xff]
    %v1329 = vld [vmem:[%s13] sm:$0xff]
    %v1330 = vld [vmem:[%s13 + $0x8] sm:$0xff]
    %v1331 = vld [vmem:[%s13 + $0x10] sm:$0xff]
    %v1332 = vld [vmem:[%s13 + $0x18] sm:$0xff]
    %v1333 = vld [vmem:[%s13 + $0x20] sm:$0xff]
    %v1334 = vld [vmem:[%s13 + $0x28] sm:$0xff]
    %v1335 = vld [vmem:[%s13 + $0x30] sm:$0xff]
    %v1336 = vld [vmem:[%s13 + $0x38] sm:$0xff]
    %v1337 = vld [vmem:[%s13 + $0x40] sm:$0xff]
    %v1338 = vld [vmem:[%s13 + $0x48] sm:$0xff]
    %v1339 = vld [vmem:[%s13 + $0x50] sm:$0xff]
    %v1340 = vld [vmem:[%s13 + $0x58] sm:$0xff]
    %v1341 = vld [vmem:[%s13 + $0x60] sm:$0xff]
    %v1342 = vld [vmem:[%s13 + $0x68] sm:$0xff]
    %v1343 = vld [vmem:[%s13 + $0x70] sm:$0xff]
    %v1344 = vld [vmem:[%s13 + $0x78] sm:$0xff]
    %v1345 = vld [vmem:[%s13 + $0x80] sm:$0xff]
    %v1346 = vld [vmem:[%s13 + $0x88] sm:$0xff]
    %v1347 = vld [vmem:[%s13 + $0x90] sm:$0xff]
    %v1348 = vld [vmem:[%s13 + $0x98] sm:$0xff]
    %v1349 = vld [vmem:[%s13 + $0xa0] sm:$0xff]
    %v1350 = vld [vmem:[%s13 + $0xa8] sm:$0xff]
    %v1351 = vld [vmem:[%s13 + $0xb0] sm:$0xff]
    %v1352 = vld [vmem:[%s13 + $0xb8] sm:$0xff]
    %v1353 = vld [vmem:[%s13 + $0xc0] sm:$0xff]
    %v1354 = vld [vmem:[%s13 + $0xc8] sm:$0xff]
    %v1355 = vld [vmem:[%s13 + $0xd0] sm:$0xff]
    %v1356 = vld [vmem:[%s13 + $0xd8] sm:$0xff]
    %v1357 = vld [vmem:[%s13 + $0xe0] sm:$0xff]
    %v1358 = vld [vmem:[%s13 + $0xe8] sm:$0xff]
    %v1359 = vld [vmem:[%s13 + $0xf0] sm:$0xff]
    %v1360 = vld [vmem:[%s13 + $0xf8] sm:$0xff]
    %v1361 = vld [vmem:[%s14] sm:$0xff]
    %v1362 = vld [vmem:[%s14 + $0x8] sm:$0xff]
    %v1363 = vld [vmem:[%s14 + $0x10] sm:$0xff]
    %v1364 = vld [vmem:[%s14 + $0x18] sm:$0xff]
    %v1365 = vld [vmem:[%s14 + $0x20] sm:$0xff]
    %v1366 = vld [vmem:[%s14 + $0x28] sm:$0xff]
    %v1367 = vld [vmem:[%s14 + $0x30] sm:$0xff]
    %v1368 = vld [vmem:[%s14 + $0x38] sm:$0xff]
    %v1369 = vld [vmem:[%s14 + $0x40] sm:$0xff]
    %v1370 = vld [vmem:[%s14 + $0x48] sm:$0xff]
    %v1371 = vld [vmem:[%s14 + $0x50] sm:$0xff]
    %v1372 = vld [vmem:[%s14 + $0x58] sm:$0xff]
    %v1373 = vld [vmem:[%s14 + $0x60] sm:$0xff]
    %v1374 = vld [vmem:[%s14 + $0x68] sm:$0xff]
    %v1375 = vld [vmem:[%s14 + $0x70] sm:$0xff]
    %v1376 = vld [vmem:[%s14 + $0x78] sm:$0xff]
    %v1377 = vld [vmem:[%s14 + $0x80] sm:$0xff]
    %v1378 = vld [vmem:[%s14 + $0x88] sm:$0xff]
    %v1379 = vld [vmem:[%s14 + $0x90] sm:$0xff]
    %v1380 = vld [vmem:[%s14 + $0x98] sm:$0xff]
    %v1381 = vld [vmem:[%s14 + $0xa0] sm:$0xff]
    %v1382 = vld [vmem:[%s14 + $0xa8] sm:$0xff]
    %v1383 = vld [vmem:[%s14 + $0xb0] sm:$0xff]
    %v1384 = vld [vmem:[%s14 + $0xb8] sm:$0xff]
    %v1385 = vld [vmem:[%s14 + $0xc0] sm:$0xff]
    %v1386 = vld [vmem:[%s14 + $0xc8] sm:$0xff]
    %v1387 = vld [vmem:[%s14 + $0xd0] sm:$0xff]
    %v1388 = vld [vmem:[%s14 + $0xd8] sm:$0xff]
    %v1389 = vld [vmem:[%s14 + $0xe0] sm:$0xff]
    %v1390 = vld [vmem:[%s14 + $0xe8] sm:$0xff]
    %v1391 = vld [vmem:[%s14 + $0xf0] sm:$0xff]
    %v1392 = vld [vmem:[%s14 + $0xf8] sm:$0xff]
    %v1393 = vld [vmem:[%s14 + $0x100] sm:$0xff]
    %v1394 = vld [vmem:[%s14 + $0x108] sm:$0xff]
    %v1395 = vld [vmem:[%s14 + $0x110] sm:$0xff]
    %v1396 = vld [vmem:[%s14 + $0x118] sm:$0xff]
    %v1397 = vld [vmem:[%s14 + $0x120] sm:$0xff]
    %v1398 = vld [vmem:[%s14 + $0x128] sm:$0xff]
    %v1399 = vld [vmem:[%s14 + $0x130] sm:$0xff]
    %v1400 = vld [vmem:[%s14 + $0x138] sm:$0xff]
    %v1401 = vld [vmem:[%s14 + $0x140] sm:$0xff]
    %v1402 = vld [vmem:[%s14 + $0x148] sm:$0xff]
    %v1403 = vld [vmem:[%s14 + $0x150] sm:$0xff]
    %v1404 = vld [vmem:[%s14 + $0x158] sm:$0xff]
    %v1405 = vld [vmem:[%s14 + $0x160] sm:$0xff]
    %v1406 = vld [vmem:[%s14 + $0x168] sm:$0xff]
    %v1407 = vld [vmem:[%s14 + $0x170] sm:$0xff]
    %v1408 = vld [vmem:[%s14 + $0x178] sm:$0xff]
    %v1409 = vld [vmem:[%s14 + $0x180] sm:$0xff]
    %v1410 = vld [vmem:[%s14 + $0x188] sm:$0xff]
    %v1411 = vld [vmem:[%s14 + $0x190] sm:$0xff]
    %v1412 = vld [vmem:[%s14 + $0x198] sm:$0xff]
    %v1413 = vld [vmem:[%s14 + $0x1a0] sm:$0xff]
    %v1414 = vld [vmem:[%s14 + $0x1a8] sm:$0xff]
    %v1415 = vld [vmem:[%s14 + $0x1b0] sm:$0xff]
    %v1416 = vld [vmem:[%s14 + $0x1b8] sm:$0xff]
    %v1417 = vld [vmem:[%s14 + $0x1c0] sm:$0xff]
    %v1418 = vld [vmem:[%s14 + $0x1c8] sm:$0xff]
    %v1419 = vld [vmem:[%s14 + $0x1d0] sm:$0xff]
    %v1420 = vld [vmem:[%s14 + $0x1d8] sm:$0xff]
    %v1421 = vld [vmem:[%s14 + $0x1e0] sm:$0xff]
    %v1422 = vld [vmem:[%s14 + $0x1e8] sm:$0xff]
    %v1423 = vld [vmem:[%s14 + $0x1f0] sm:$0xff]
    %v1424 = vld [vmem:[%s14 + $0x1f8] sm:$0xff]
    %v1425 = vld [vmem:[%s14 + $0x200] sm:$0xff]
    %v1426 = vld [vmem:[%s14 + $0x208] sm:$0xff]
    %v1427 = vld [vmem:[%s14 + $0x210] sm:$0xff]
    %v1428 = vld [vmem:[%s14 + $0x218] sm:$0xff]
    %v1429 = vld [vmem:[%s14 + $0x220] sm:$0xff]
    %v1430 = vld [vmem:[%s14 + $0x228] sm:$0xff]
    %v1431 = vld [vmem:[%s14 + $0x230] sm:$0xff]
    %v1432 = vld [vmem:[%s14 + $0x238] sm:$0xff]
    %v1433 = vld [vmem:[%s14 + $0x240] sm:$0xff]
    %v1434 = vld [vmem:[%s14 + $0x248] sm:$0xff]
    %v1435 = vld [vmem:[%s14 + $0x250] sm:$0xff]
    %v1436 = vld [vmem:[%s14 + $0x258] sm:$0xff]
    %v1437 = vld [vmem:[%s14 + $0x260] sm:$0xff]
    %v1438 = vld [vmem:[%s14 + $0x268] sm:$0xff]
    %v1439 = vld [vmem:[%s14 + $0x270] sm:$0xff]
    %v1440 = vld [vmem:[%s14 + $0x278] sm:$0xff]
    %v1441 = vld [vmem:[%s14 + $0x280] sm:$0xff]
    %v1442 = vld [vmem:[%s14 + $0x288] sm:$0xff]
    %v1443 = vld [vmem:[%s14 + $0x290] sm:$0xff]
    %v1444 = vld [vmem:[%s14 + $0x298] sm:$0xff]
    %v1445 = vld [vmem:[%s14 + $0x2a0] sm:$0xff]
    %v1446 = vld [vmem:[%s14 + $0x2a8] sm:$0xff]
    %v1447 = vld [vmem:[%s14 + $0x2b0] sm:$0xff]
    %v1448 = vld [vmem:[%s14 + $0x2b8] sm:$0xff]
    %v1449 = vld [vmem:[%s14 + $0x2c0] sm:$0xff]
    %v1450 = vld [vmem:[%s14 + $0x2c8] sm:$0xff]
    %v1451 = vld [vmem:[%s14 + $0x2d0] sm:$0xff]
    %v1452 = vld [vmem:[%s14 + $0x2d8] sm:$0xff]
    %v1453 = vld [vmem:[%s14 + $0x2e0] sm:$0xff]
    %v1454 = vld [vmem:[%s14 + $0x2e8] sm:$0xff]
    %v1455 = vld [vmem:[%s14 + $0x2f0] sm:$0xff]
    %v1456 = vld [vmem:[%s14 + $0x2f8] sm:$0xff]
    %v1457 = vld [vmem:[%s14 + $0x300] sm:$0xff]
    %v1458 = vld [vmem:[%s14 + $0x308] sm:$0xff]
    %v1459 = vld [vmem:[%s14 + $0x310] sm:$0xff]
    %v1460 = vld [vmem:[%s14 + $0x318] sm:$0xff]
    %v1461 = vld [vmem:[%s14 + $0x320] sm:$0xff]
    %v1462 = vld [vmem:[%s14 + $0x328] sm:$0xff]
    %v1463 = vld [vmem:[%s14 + $0x330] sm:$0xff]
    %v1464 = vld [vmem:[%s14 + $0x338] sm:$0xff]
    %v1465 = vld [vmem:[%s14 + $0x340] sm:$0xff]
    %v1466 = vld [vmem:[%s14 + $0x348] sm:$0xff]
    %v1467 = vld [vmem:[%s14 + $0x350] sm:$0xff]
    %v1468 = vld [vmem:[%s14 + $0x358] sm:$0xff]
    %v1469 = vld [vmem:[%s14 + $0x360] sm:$0xff]
    %v1470 = vld [vmem:[%s14 + $0x368] sm:$0xff]
    %v1471 = vld [vmem:[%s14 + $0x370] sm:$0xff]
    %v1472 = vld [vmem:[%s14 + $0x378] sm:$0xff]
    %v1473 = vld [vmem:[%s14 + $0x380] sm:$0xff]
    %v1474 = vld [vmem:[%s14 + $0x388] sm:$0xff]
    %v1475 = vld [vmem:[%s14 + $0x390] sm:$0xff]
    %v1476 = vld [vmem:[%s14 + $0x398] sm:$0xff]
    %v1477 = vld [vmem:[%s14 + $0x3a0] sm:$0xff]
    %v1478 = vld [vmem:[%s14 + $0x3a8] sm:$0xff]
    %v1479 = vld [vmem:[%s14 + $0x3b0] sm:$0xff]
    %v1480 = vld [vmem:[%s14 + $0x3b8] sm:$0xff]
    %v1481 = vld [vmem:[%s14 + $0x3c0] sm:$0xff]
    %v1482 = vld [vmem:[%s14 + $0x3c8] sm:$0xff]
    %v1483 = vld [vmem:[%s14 + $0x3d0] sm:$0xff]
    %v1484 = vld [vmem:[%s14 + $0x3d8] sm:$0xff]
    %v1485 = vld [vmem:[%s14 + $0x3e0] sm:$0xff]
    %v1486 = vld [vmem:[%s14 + $0x3e8] sm:$0xff]
    %v1487 = vld [vmem:[%s14 + $0x3f0] sm:$0xff]
    %v1488 = vld [vmem:[%s14 + $0x3f8] sm:$0xff]
    %v1489 = vld [vmem:[%s15] sm:$0xf]
    %v1490 = vld [vmem:[%s16] sm:$0xff]
    %v1491 = vld [vmem:[%s16 + $0x8] sm:$0xff]
    %v1492 = vld [vmem:[%s16 + $0x10] sm:$0xff]
    %v1493 = vld [vmem:[%s16 + $0x18] sm:$0xff]
    %v1494 = vld [vmem:[%s16 + $0x20] sm:$0xff]
    %v1495 = vld [vmem:[%s16 + $0x28] sm:$0xff]
    %v1496 = vld [vmem:[%s16 + $0x30] sm:$0xff]
    %v1497 = vld [vmem:[%s16 + $0x38] sm:$0xff]
    %v1498 = vld [vmem:[%s16 + $0x40] sm:$0xff]
    %v1499 = vld [vmem:[%s16 + $0x48] sm:$0xff]
    %v1500 = vld [vmem:[%s16 + $0x50] sm:$0xff]
    %v1501 = vld [vmem:[%s16 + $0x58] sm:$0xff]
    %v1502 = vld [vmem:[%s16 + $0x60] sm:$0xff]
    %v1503 = vld [vmem:[%s16 + $0x68] sm:$0xff]
    %v1504 = vld [vmem:[%s16 + $0x70] sm:$0xff]
    %v1505 = vld [vmem:[%s16 + $0x78] sm:$0xff]
    %v1506 = vld [vmem:[%s16 + $0x80] sm:$0xff]
    %v1507 = vld [vmem:[%s16 + $0x88] sm:$0xff]
    %v1508 = vld [vmem:[%s16 + $0x90] sm:$0xff]
    %v1509 = vld [vmem:[%s16 + $0x98] sm:$0xff]
    %v1510 = vld [vmem:[%s16 + $0xa0] sm:$0xff]
    %v1511 = vld [vmem:[%s16 + $0xa8] sm:$0xff]
    %v1512 = vld [vmem:[%s16 + $0xb0] sm:$0xff]
    %v1513 = vld [vmem:[%s16 + $0xb8] sm:$0xff]
    %v1514 = vld [vmem:[%s16 + $0xc0] sm:$0xff]
    %v1515 = vld [vmem:[%s16 + $0xc8] sm:$0xff]
    %v1516 = vld [vmem:[%s16 + $0xd0] sm:$0xff]
    %v1517 = vld [vmem:[%s16 + $0xd8] sm:$0xff]
    %v1518 = vld [vmem:[%s16 + $0xe0] sm:$0xff]
    %v1519 = vld [vmem:[%s16 + $0xe8] sm:$0xff]
    %v1520 = vld [vmem:[%s16 + $0xf0] sm:$0xff]
    %v1521 = vld [vmem:[%s16 + $0xf8] sm:$0xff]
    %v1522 = vld [vmem:[%s16 + $0x100] sm:$0xff]
    %v1523 = vld [vmem:[%s16 + $0x108] sm:$0xff]
    %v1524 = vld [vmem:[%s16 + $0x110] sm:$0xff]
    %v1525 = vld [vmem:[%s16 + $0x118] sm:$0xff]
    %v1526 = vld [vmem:[%s16 + $0x120] sm:$0xff]
    %v1527 = vld [vmem:[%s16 + $0x128] sm:$0xff]
    %v1528 = vld [vmem:[%s16 + $0x130] sm:$0xff]
    %v1529 = vld [vmem:[%s16 + $0x138] sm:$0xff]
    %v1530 = vld [vmem:[%s16 + $0x140] sm:$0xff]
    %v1531 = vld [vmem:[%s16 + $0x148] sm:$0xff]
    %v1532 = vld [vmem:[%s16 + $0x150] sm:$0xff]
    %v1533 = vld [vmem:[%s16 + $0x158] sm:$0xff]
    %v1534 = vld [vmem:[%s16 + $0x160] sm:$0xff]
    %v1535 = vld [vmem:[%s16 + $0x168] sm:$0xff]
    %v1536 = vld [vmem:[%s16 + $0x170] sm:$0xff]
    %v1537 = vld [vmem:[%s16 + $0x178] sm:$0xff]
    %v1538 = vld [vmem:[%s16 + $0x180] sm:$0xff]
    %v1539 = vld [vmem:[%s16 + $0x188] sm:$0xff]
    %v1540 = vld [vmem:[%s16 + $0x190] sm:$0xff]
    %v1541 = vld [vmem:[%s16 + $0x198] sm:$0xff]
    %v1542 = vld [vmem:[%s16 + $0x1a0] sm:$0xff]
    %v1543 = vld [vmem:[%s16 + $0x1a8] sm:$0xff]
    %v1544 = vld [vmem:[%s16 + $0x1b0] sm:$0xff]
    %v1545 = vld [vmem:[%s16 + $0x1b8] sm:$0xff]
    %v1546 = vld [vmem:[%s16 + $0x1c0] sm:$0xff]
    %v1547 = vld [vmem:[%s16 + $0x1c8] sm:$0xff]
    %v1548 = vld [vmem:[%s16 + $0x1d0] sm:$0xff]
    %v1549 = vld [vmem:[%s16 + $0x1d8] sm:$0xff]
    %v1550 = vld [vmem:[%s16 + $0x1e0] sm:$0xff]
    %v1551 = vld [vmem:[%s16 + $0x1e8] sm:$0xff]
    %v1552 = vld [vmem:[%s16 + $0x1f0] sm:$0xff]
    %v1553 = vld [vmem:[%s16 + $0x1f8] sm:$0xff]
    %v1554 = vld [vmem:[%s16 + $0x200] sm:$0xff]
    %v1555 = vld [vmem:[%s16 + $0x208] sm:$0xff]
    %v1556 = vld [vmem:[%s16 + $0x210] sm:$0xff]
    %v1557 = vld [vmem:[%s16 + $0x218] sm:$0xff]
    %v1558 = vld [vmem:[%s16 + $0x220] sm:$0xff]
    %v1559 = vld [vmem:[%s16 + $0x228] sm:$0xff]
    %v1560 = vld [vmem:[%s16 + $0x230] sm:$0xff]
    %v1561 = vld [vmem:[%s16 + $0x238] sm:$0xff]
    %v1562 = vld [vmem:[%s16 + $0x240] sm:$0xff]
    %v1563 = vld [vmem:[%s16 + $0x248] sm:$0xff]
    %v1564 = vld [vmem:[%s16 + $0x250] sm:$0xff]
    %v1565 = vld [vmem:[%s16 + $0x258] sm:$0xff]
    %v1566 = vld [vmem:[%s16 + $0x260] sm:$0xff]
    %v1567 = vld [vmem:[%s16 + $0x268] sm:$0xff]
    %v1568 = vld [vmem:[%s16 + $0x270] sm:$0xff]
    %v1569 = vld [vmem:[%s16 + $0x278] sm:$0xff]
    %v1570 = vld [vmem:[%s16 + $0x280] sm:$0xff]
    %v1571 = vld [vmem:[%s16 + $0x288] sm:$0xff]
    %v1572 = vld [vmem:[%s16 + $0x290] sm:$0xff]
    %v1573 = vld [vmem:[%s16 + $0x298] sm:$0xff]
    %v1574 = vld [vmem:[%s16 + $0x2a0] sm:$0xff]
    %v1575 = vld [vmem:[%s16 + $0x2a8] sm:$0xff]
    %v1576 = vld [vmem:[%s16 + $0x2b0] sm:$0xff]
    %v1577 = vld [vmem:[%s16 + $0x2b8] sm:$0xff]
    %v1578 = vld [vmem:[%s16 + $0x2c0] sm:$0xff]
    %v1579 = vld [vmem:[%s16 + $0x2c8] sm:$0xff]
    %v1580 = vld [vmem:[%s16 + $0x2d0] sm:$0xff]
    %v1581 = vld [vmem:[%s16 + $0x2d8] sm:$0xff]
    %v1582 = vld [vmem:[%s16 + $0x2e0] sm:$0xff]
    %v1583 = vld [vmem:[%s16 + $0x2e8] sm:$0xff]
    %v1584 = vld [vmem:[%s16 + $0x2f0] sm:$0xff]
    %v1585 = vld [vmem:[%s16 + $0x2f8] sm:$0xff]
    %v1586 = vld [vmem:[%s16 + $0x300] sm:$0xff]
    %v1587 = vld [vmem:[%s16 + $0x308] sm:$0xff]
    %v1588 = vld [vmem:[%s16 + $0x310] sm:$0xff]
    %v1589 = vld [vmem:[%s16 + $0x318] sm:$0xff]
    %v1590 = vld [vmem:[%s16 + $0x320] sm:$0xff]
    %v1591 = vld [vmem:[%s16 + $0x328] sm:$0xff]
    %v1592 = vld [vmem:[%s16 + $0x330] sm:$0xff]
    %v1593 = vld [vmem:[%s16 + $0x338] sm:$0xff]
    %v1594 = vld [vmem:[%s16 + $0x340] sm:$0xff]
    %v1595 = vld [vmem:[%s16 + $0x348] sm:$0xff]
    %v1596 = vld [vmem:[%s16 + $0x350] sm:$0xff]
    %v1597 = vld [vmem:[%s16 + $0x358] sm:$0xff]
    %v1598 = vld [vmem:[%s16 + $0x360] sm:$0xff]
    %v1599 = vld [vmem:[%s16 + $0x368] sm:$0xff]
    %v1600 = vld [vmem:[%s16 + $0x370] sm:$0xff]
    %v1601 = vld [vmem:[%s16 + $0x378] sm:$0xff]
    %v1602 = vld [vmem:[%s16 + $0x380] sm:$0xff]
    %v1603 = vld [vmem:[%s16 + $0x388] sm:$0xff]
    %v1604 = vld [vmem:[%s16 + $0x390] sm:$0xff]
    %v1605 = vld [vmem:[%s16 + $0x398] sm:$0xff]
    %v1606 = vld [vmem:[%s16 + $0x3a0] sm:$0xff]
    %v1607 = vld [vmem:[%s16 + $0x3a8] sm:$0xff]
    %v1608 = vld [vmem:[%s16 + $0x3b0] sm:$0xff]
    %v1609 = vld [vmem:[%s16 + $0x3b8] sm:$0xff]
    %v1610 = vld [vmem:[%s16 + $0x3c0] sm:$0xff]
    %v1611 = vld [vmem:[%s16 + $0x3c8] sm:$0xff]
    %v1612 = vld [vmem:[%s16 + $0x3d0] sm:$0xff]
    %v1613 = vld [vmem:[%s16 + $0x3d8] sm:$0xff]
    %v1614 = vld [vmem:[%s16 + $0x3e0] sm:$0xff]
    %v1615 = vld [vmem:[%s16 + $0x3e8] sm:$0xff]
    %v1616 = vld [vmem:[%s16 + $0x3f0] sm:$0xff]
    %v1617 = vld [vmem:[%s16 + $0x3f8] sm:$0xff]
    %v1618 = vld [vmem:[%s17] sm:$0x3]
    %v1619 = vld [vmem:[#allocation5] sm:$0xff]
    %v1620 = vld [vmem:[#allocation5 + $0x8] sm:$0xff]
    %v1621 = vld [vmem:[#allocation5 + $0x10] sm:$0xff]
    %v1622 = vld [vmem:[#allocation5 + $0x18] sm:$0xff]
    %v1623 = vld [vmem:[#allocation5 + $0x20] sm:$0xff]
    %v1624 = vld [vmem:[#allocation5 + $0x28] sm:$0xff]
    %v1625 = vld [vmem:[#allocation5 + $0x30] sm:$0xff]
    %v1626 = vld [vmem:[#allocation5 + $0x38] sm:$0xff]
    %v1627 = vld [vmem:[#allocation5 + $0x40] sm:$0xff]
    %v1628 = vld [vmem:[#allocation5 + $0x48] sm:$0xff]
    %v1629 = vld [vmem:[#allocation5 + $0x50] sm:$0xff]
    %v1630 = vld [vmem:[#allocation5 + $0x58] sm:$0xff]
    %v1631 = vld [vmem:[#allocation5 + $0x60] sm:$0xff]
    %v1632 = vld [vmem:[#allocation5 + $0x68] sm:$0xff]
    %v1633 = vld [vmem:[#allocation5 + $0x70] sm:$0xff]
    %v1634 = vld [vmem:[#allocation5 + $0x78] sm:$0xff]
    %v1635 = vld [vmem:[#allocation5 + $0x80] sm:$0xff]
    %v1636 = vld [vmem:[#allocation5 + $0x88] sm:$0xff]
    %v1637 = vld [vmem:[#allocation5 + $0x90] sm:$0xff]
    %v1638 = vld [vmem:[#allocation5 + $0x98] sm:$0xff]
    %v1639 = vld [vmem:[#allocation5 + $0xa0] sm:$0xff]
    %v1640 = vld [vmem:[#allocation5 + $0xa8] sm:$0xff]
    %v1641 = vld [vmem:[#allocation5 + $0xb0] sm:$0xff]
    %v1642 = vld [vmem:[#allocation5 + $0xb8] sm:$0xff]
    %v1643 = vld [vmem:[#allocation5 + $0xc0] sm:$0xff]
    %v1644 = vld [vmem:[#allocation5 + $0xc8] sm:$0xff]
    %v1645 = vld [vmem:[#allocation5 + $0xd0] sm:$0xff]
    %v1646 = vld [vmem:[#allocation5 + $0xd8] sm:$0xff]
    %v1647 = vld [vmem:[#allocation5 + $0xe0] sm:$0xff]
    %v1648 = vld [vmem:[#allocation5 + $0xe8] sm:$0xff]
    %v1649 = vld [vmem:[#allocation5 + $0xf0] sm:$0xff]
    %v1650 = vld [vmem:[#allocation5 + $0xf8] sm:$0xff]
    %v1651 = vld [vmem:[#allocation5 + $0x100] sm:$0xff]
    %v1652 = vld [vmem:[#allocation5 + $0x108] sm:$0xff]
    %v1653 = vld [vmem:[#allocation5 + $0x110] sm:$0xff]
    %v1654 = vld [vmem:[#allocation5 + $0x118] sm:$0xff]
    %v1655 = vld [vmem:[#allocation5 + $0x120] sm:$0xff]
    %v1656 = vld [vmem:[#allocation5 + $0x128] sm:$0xff]
    %v1657 = vld [vmem:[#allocation5 + $0x130] sm:$0xff]
    %v1658 = vld [vmem:[#allocation5 + $0x138] sm:$0xff]
    %v1659 = vld [vmem:[#allocation5 + $0x140] sm:$0xff]
    %v1660 = vld [vmem:[#allocation5 + $0x148] sm:$0xff]
    %v1661 = vld [vmem:[#allocation5 + $0x150] sm:$0xff]
    %v1662 = vld [vmem:[#allocation5 + $0x158] sm:$0xff]
    %v1663 = vld [vmem:[#allocation5 + $0x160] sm:$0xff]
    %v1664 = vld [vmem:[#allocation5 + $0x168] sm:$0xff]
    %v1665 = vld [vmem:[#allocation5 + $0x170] sm:$0xff]
    %v1666 = vld [vmem:[#allocation5 + $0x178] sm:$0xff]
    %v1667 = vld [vmem:[#allocation5 + $0x180] sm:$0xff]
    %v1668 = vld [vmem:[#allocation5 + $0x188] sm:$0xff]
    %v1669 = vld [vmem:[#allocation5 + $0x190] sm:$0xff]
    %v1670 = vld [vmem:[#allocation5 + $0x198] sm:$0xff]
    %v1671 = vld [vmem:[#allocation5 + $0x1a0] sm:$0xff]
    %v1672 = vld [vmem:[#allocation5 + $0x1a8] sm:$0xff]
    %v1673 = vld [vmem:[#allocation5 + $0x1b0] sm:$0xff]
    %v1674 = vld [vmem:[#allocation5 + $0x1b8] sm:$0xff]
    %v1675 = vld [vmem:[#allocation5 + $0x1c0] sm:$0xff]
    %v1676 = vld [vmem:[#allocation5 + $0x1c8] sm:$0xff]
    %v1677 = vld [vmem:[#allocation5 + $0x1d0] sm:$0xff]
    %v1678 = vld [vmem:[#allocation5 + $0x1d8] sm:$0xff]
    %v1679 = vld [vmem:[#allocation5 + $0x1e0] sm:$0xff]
    %v1680 = vld [vmem:[#allocation5 + $0x1e8] sm:$0xff]
    %v1681 = vld [vmem:[#allocation5 + $0x1f0] sm:$0xff]
    %v1682 = vld [vmem:[#allocation5 + $0x1f8] sm:$0xff]
    %v1683 = vld [vmem:[%s19] sm:$0x3]
    %v1684 = vld [vmem:[#allocation7] sm:$0xff]
    %v1685 = vld [vmem:[#allocation7 + $0x8] sm:$0xff]
    %v1686 = vld [vmem:[#allocation7 + $0x10] sm:$0xff]
    %v1687 = vld [vmem:[#allocation7 + $0x18] sm:$0xff]
    %v1688 = vld [vmem:[#allocation7 + $0x20] sm:$0xff]
    %v1689 = vld [vmem:[#allocation7 + $0x28] sm:$0xff]
    %v1690 = vld [vmem:[#allocation7 + $0x30] sm:$0xff]
    %v1691 = vld [vmem:[#allocation7 + $0x38] sm:$0xff]
    %v1692 = vld [vmem:[#allocation7 + $0x40] sm:$0xff]
    %v1693 = vld [vmem:[#allocation7 + $0x48] sm:$0xff]
    %v1694 = vld [vmem:[#allocation7 + $0x50] sm:$0xff]
    %v1695 = vld [vmem:[#allocation7 + $0x58] sm:$0xff]
    %v1696 = vld [vmem:[#allocation7 + $0x60] sm:$0xff]
    %v1697 = vld [vmem:[#allocation7 + $0x68] sm:$0xff]
    %v1698 = vld [vmem:[#allocation7 + $0x70] sm:$0xff]
    %v1699 = vld [vmem:[#allocation7 + $0x78] sm:$0xff]
    %v1700 = vld [vmem:[#allocation7 + $0x80] sm:$0xff]
    %v1701 = vld [vmem:[#allocation7 + $0x88] sm:$0xff]
    %v1702 = vld [vmem:[#allocation7 + $0x90] sm:$0xff]
    %v1703 = vld [vmem:[#allocation7 + $0x98] sm:$0xff]
    %v1704 = vld [vmem:[#allocation7 + $0xa0] sm:$0xff]
    %v1705 = vld [vmem:[#allocation7 + $0xa8] sm:$0xff]
    %v1706 = vld [vmem:[#allocation7 + $0xb0] sm:$0xff]
    %v1707 = vld [vmem:[#allocation7 + $0xb8] sm:$0xff]
    %v1708 = vld [vmem:[#allocation7 + $0xc0] sm:$0xff]
    %v1709 = vld [vmem:[#allocation7 + $0xc8] sm:$0xff]
    %v1710 = vld [vmem:[#allocation7 + $0xd0] sm:$0xff]
    %v1711 = vld [vmem:[#allocation7 + $0xd8] sm:$0xff]
    %v1712 = vld [vmem:[#allocation7 + $0xe0] sm:$0xff]
    %v1713 = vld [vmem:[#allocation7 + $0xe8] sm:$0xff]
    %v1714 = vld [vmem:[#allocation7 + $0xf0] sm:$0xff]
    %v1715 = vld [vmem:[#allocation7 + $0xf8] sm:$0xff]
    %v1716 = vld [vmem:[#allocation7 + $0x100] sm:$0xff]
    %v1717 = vld [vmem:[#allocation7 + $0x108] sm:$0xff]
    %v1718 = vld [vmem:[#allocation7 + $0x110] sm:$0xff]
    %v1719 = vld [vmem:[#allocation7 + $0x118] sm:$0xff]
    %v1720 = vld [vmem:[#allocation7 + $0x120] sm:$0xff]
    %v1721 = vld [vmem:[#allocation7 + $0x128] sm:$0xff]
    %v1722 = vld [vmem:[#allocation7 + $0x130] sm:$0xff]
    %v1723 = vld [vmem:[#allocation7 + $0x138] sm:$0xff]
    %v1724 = vld [vmem:[#allocation7 + $0x140] sm:$0xff]
    %v1725 = vld [vmem:[#allocation7 + $0x148] sm:$0xff]
    %v1726 = vld [vmem:[#allocation7 + $0x150] sm:$0xff]
    %v1727 = vld [vmem:[#allocation7 + $0x158] sm:$0xff]
    %v1728 = vld [vmem:[#allocation7 + $0x160] sm:$0xff]
    %v1729 = vld [vmem:[#allocation7 + $0x168] sm:$0xff]
    %v1730 = vld [vmem:[#allocation7 + $0x170] sm:$0xff]
    %v1731 = vld [vmem:[#allocation7 + $0x178] sm:$0xff]
    %v1732 = vld [vmem:[#allocation7 + $0x180] sm:$0xff]
    %v1733 = vld [vmem:[#allocation7 + $0x188] sm:$0xff]
    %v1734 = vld [vmem:[#allocation7 + $0x190] sm:$0xff]
    %v1735 = vld [vmem:[#allocation7 + $0x198] sm:$0xff]
    %v1736 = vld [vmem:[#allocation7 + $0x1a0] sm:$0xff]
    %v1737 = vld [vmem:[#allocation7 + $0x1a8] sm:$0xff]
    %v1738 = vld [vmem:[#allocation7 + $0x1b0] sm:$0xff]
    %v1739 = vld [vmem:[#allocation7 + $0x1b8] sm:$0xff]
    %v1740 = vld [vmem:[#allocation7 + $0x1c0] sm:$0xff]
    %v1741 = vld [vmem:[#allocation7 + $0x1c8] sm:$0xff]
    %v1742 = vld [vmem:[#allocation7 + $0x1d0] sm:$0xff]
    %v1743 = vld [vmem:[#allocation7 + $0x1d8] sm:$0xff]
    %v1744 = vld [vmem:[#allocation7 + $0x1e0] sm:$0xff]
    %v1745 = vld [vmem:[#allocation7 + $0x1e8] sm:$0xff]
    %v1746 = vld [vmem:[#allocation7 + $0x1f0] sm:$0xff]
    %v1747 = vld [vmem:[#allocation7 + $0x1f8] sm:$0xff]
    %v1748 = vld [vmem:[%s21] sm:$0x3]
    %1749 = vmatprep.subr.mxu0 %v1362
    %1750 = vmatpush1.msra.mxu0 %v1361
    %1751 = vmatprep.subr.mxu0 %v1366
    %1752 = vmatpush1.msra.mxu0 %v1365
    %1753 = vmatprep.subr.mxu0 %v1370
    %1754 = vmatpush1.msra.mxu0 %v1369
    %1755 = vmatprep.subr.mxu0 %v1374
    %1756 = vmatpush1.msra.mxu0 %v1373
    %1757 = vmatprep.subr.mxu0 %v1378
    %1758 = vmatpush1.msra.mxu0 %v1377
    %1759 = vmatprep.subr.mxu0 %v1382
    %1760 = vmatpush1.msra.mxu0 %v1381
    %1761 = vmatprep.subr.mxu0 %v1386
    %1762 = vmatpush1.msra.mxu0 %v1385
    %1763 = vmatprep.subr.mxu0 %v1390
    %1764 = vmatpush1.msra.mxu0 %v1389
    %1765 = vmatprep.subr.mxu0 %v1394
    %1766 = vmatpush1.msra.mxu0 %v1393
    %1767 = vmatprep.subr.mxu0 %v1398
    %1768 = vmatpush1.msra.mxu0 %v1397
    %1769 = vmatprep.subr.mxu0 %v1402
    %1770 = vmatpush1.msra.mxu0 %v1401
    %1771 = vmatprep.subr.mxu0 %v1406
    %1772 = vmatpush1.msra.mxu0 %v1405
    %1773 = vmatprep.subr.mxu0 %v1410
    %1774 = vmatpush1.msra.mxu0 %v1409
    %1775 = vmatprep.subr.mxu0 %v1414
    %1776 = vmatpush1.msra.mxu0 %v1413
    %1777 = vmatprep.subr.mxu0 %v1418
    %1778 = vmatpush1.msra.mxu0 %v1417
    %1779 = vmatprep.subr.mxu0 %v1422
    %1780 = vmatpush1.msra.mxu0 %v1421
    %1781 = vmatprep.subr.mxu0 %v1426
    %1782 = vmatpush1.msra.mxu0 %v1425
    %1783 = vmatprep.subr.mxu0 %v1430
    %1784 = vmatpush1.msra.mxu0 %v1429
    %1785 = vmatprep.subr.mxu0 %v1434
    %1786 = vmatpush1.msra.mxu0 %v1433
    %1787 = vmatprep.subr.mxu0 %v1438
    %1788 = vmatpush1.msra.mxu0 %v1437
    %1789 = vmatprep.subr.mxu0 %v1442
    %1790 = vmatpush1.msra.mxu0 %v1441
    %1791 = vmatprep.subr.mxu0 %v1446
    %1792 = vmatpush1.msra.mxu0 %v1445
    %1793 = vmatprep.subr.mxu0 %v1450
    %1794 = vmatpush1.msra.mxu0 %v1449
    %1795 = vmatprep.subr.mxu0 %v1454
    %1796 = vmatpush1.msra.mxu0 %v1453
    %1797 = vmatprep.subr.mxu0 %v1458
    %1798 = vmatpush1.msra.mxu0 %v1457
    %1799 = vmatprep.subr.mxu0 %v1462
    %1800 = vmatpush1.msra.mxu0 %v1461
    %1801 = vmatprep.subr.mxu0 %v1466
    %1802 = vmatpush1.msra.mxu0 %v1465
    %1803 = vmatprep.subr.mxu0 %v1470
    %1804 = vmatpush1.msra.mxu0 %v1469
    %1805 = vmatprep.subr.mxu0 %v1474
    %1806 = vmatpush1.msra.mxu0 %v1473
    %1807 = vmatprep.subr.mxu0 %v1478
    %1808 = vmatpush1.msra.mxu0 %v1477
    %1809 = vmatprep.subr.mxu0 %v1482
    %1810 = vmatpush1.msra.mxu0 %v1481
    %1811 = vmatprep.subr.mxu0 %v1486
    %1812 = vmatpush1.msra.mxu0 %v1485
    %1813 = vmatprep.mubr.f32.mxu0 %v1328
    %1814 = vmatmul.mubr.f32.gmra.mrb[0].mxu0 %v1327
    %v1815 = vpop.f32.mrb[0].mxu0
    %v1816 = vadd.f32 0.0, %v1815
    %v1817 = vpop.f32.mrb[0].mxu0
    %v1818 = vadd.f32 0.0, %v1817
    %1819 = vdwg.mxu0
    %1820 = vmatprep.subr.mxu0 %v1364
    %1821 = vmatpush1.msra.mxu0 %v1363
    %1822 = vmatprep.subr.mxu0 %v1368
    %1823 = vmatpush1.msra.mxu0 %v1367
    %1824 = vmatprep.subr.mxu0 %v1372
    %1825 = vmatpush1.msra.mxu0 %v1371
    %1826 = vmatprep.subr.mxu0 %v1376
    %1827 = vmatpush1.msra.mxu0 %v1375
    %1828 = vmatprep.subr.mxu0 %v1380
    %1829 = vmatpush1.msra.mxu0 %v1379
    %1830 = vmatprep.subr.mxu0 %v1384
    %1831 = vmatpush1.msra.mxu0 %v1383
    %1832 = vmatprep.subr.mxu0 %v1388
    %1833 = vmatpush1.msra.mxu0 %v1387
    %1834 = vmatprep.subr.mxu0 %v1392
    %1835 = vmatpush1.msra.mxu0 %v1391
    %1836 = vmatprep.subr.mxu0 %v1396
    %1837 = vmatpush1.msra.mxu0 %v1395
    %1838 = vmatprep.subr.mxu0 %v1400
    %1839 = vmatpush1.msra.mxu0 %v1399
    %1840 = vmatprep.subr.mxu0 %v1404
    %1841 = vmatpush1.msra.mxu0 %v1403
    %1842 = vmatprep.subr.mxu0 %v1408
    %1843 = vmatpush1.msra.mxu0 %v1407
    %1844 = vmatprep.subr.mxu0 %v1412
    %1845 = vmatpush1.msra.mxu0 %v1411
    %1846 = vmatprep.subr.mxu0 %v1416
    %1847 = vmatpush1.msra.mxu0 %v1415
    %1848 = vmatprep.subr.mxu0 %v1420
    %1849 = vmatpush1.msra.mxu0 %v1419
    %1850 = vmatprep.subr.mxu0 %v1424
    %1851 = vmatpush1.msra.mxu0 %v1423
    %1852 = vmatprep.subr.mxu0 %v1428
    %1853 = vmatpush1.msra.mxu0 %v1427
    %1854 = vmatprep.subr.mxu0 %v1432
    %1855 = vmatpush1.msra.mxu0 %v1431
    %1856 = vmatprep.subr.mxu0 %v1436
    %1857 = vmatpush1.msra.mxu0 %v1435
    %1858 = vmatprep.subr.mxu0 %v1440
    %1859 = vmatpush1.msra.mxu0 %v1439
    %1860 = vmatprep.subr.mxu0 %v1444
    %1861 = vmatpush1.msra.mxu0 %v1443
    %1862 = vmatprep.subr.mxu0 %v1448
    %1863 = vmatpush1.msra.mxu0 %v1447
    %1864 = vmatprep.subr.mxu0 %v1452
    %1865 = vmatpush1.msra.mxu0 %v1451
    %1866 = vmatprep.subr.mxu0 %v1456
    %1867 = vmatpush1.msra.mxu0 %v1455
    %1868 = vmatprep.subr.mxu0 %v1460
    %1869 = vmatpush1.msra.mxu0 %v1459
    %1870 = vmatprep.subr.mxu0 %v1464
    %1871 = vmatpush1.msra.mxu0 %v1463
    %1872 = vmatprep.subr.mxu0 %v1468
    %1873 = vmatpush1.msra.mxu0 %v1467
    %1874 = vmatprep.subr.mxu0 %v1472
    %1875 = vmatpush1.msra.mxu0 %v1471
    %1876 = vmatprep.subr.mxu0 %v1476
    %1877 = vmatpush1.msra.mxu0 %v1475
    %1878 = vmatprep.subr.mxu0 %v1480
    %1879 = vmatpush1.msra.mxu0 %v1479
    %1880 = vmatprep.subr.mxu0 %v1484
    %1881 = vmatpush1.msra.mxu0 %v1483
    %1882 = vmatprep.subr.mxu0 %v1488
    %1883 = vmatpush1.msra.mxu0 %v1487
    %1884 = vmatprep.mubr.f32.mxu0 %v1328
    %1885 = vmatmul.mubr.f32.gmra.mrb[0].mxu0 %v1327
    %v1886 = vpop.f32.mrb[0].mxu0
    %v1887 = vadd.f32 0.0, %v1886
    %v1888 = vpop.f32.mrb[0].mxu0
    %v1889 = vadd.f32 0.0, %v1888
    %1890 = vdwg.mxu0
    %v1892 = vsel %vm678, %v1326, 0
    %1894 = vmatprep.subr.mxu0 %v1330
    %1895 = vmatpush1.msra.mxu0 %v1329
    %1896 = vmatprep.subr.mxu0 %v1334
    %1897 = vmatpush1.msra.mxu0 %v1333
    %1898 = vmatprep.subr.mxu0 %v1338
    %1899 = vmatpush1.msra.mxu0 %v1337
    %1900 = vmatprep.subr.mxu0 %v1342
    %1901 = vmatpush1.msra.mxu0 %v1341
    %1902 = vmatprep.subr.mxu0 %v1346
    %1903 = vmatpush1.msra.mxu0 %v1345
    %1904 = vmatprep.subr.mxu0 %v1350
    %1905 = vmatpush1.msra.mxu0 %v1349
    %1906 = vmatprep.subr.mxu0 %v1354
    %1907 = vmatpush1.msra.mxu0 %v1353
    %1908 = vmatprep.subr.mxu0 %v1358
    %1909 = vmatpush1.msra.mxu0 %v1357
    %1910 = vmatprep.subr.mxu0 0.0
    %1911 = vmatpush1.msra.mxu0 0.0
    %1912 = vmatprep.subr.mxu0 0.0
    %1913 = vmatpush1.msra.mxu0 0.0
    %1914 = vmatprep.subr.mxu0 0.0
    %1915 = vmatpush1.msra.mxu0 0.0
    %1916 = vmatprep.subr.mxu0 0.0
    %1917 = vmatpush1.msra.mxu0 0.0
    %1918 = vmatprep.subr.mxu0 0.0
    %1919 = vmatpush1.msra.mxu0 0.0
    %1920 = vmatprep.subr.mxu0 0.0
    %1921 = vmatpush1.msra.mxu0 0.0
    %1922 = vmatprep.subr.mxu0 0.0
    %1923 = vmatpush1.msra.mxu0 0.0
    %1924 = vmatprep.subr.mxu0 0.0
    %1925 = vmatpush1.msra.mxu0 0.0
    %1926 = vmatprep.subr.mxu0 0.0
    %1927 = vmatpush1.msra.mxu0 0.0
    %1928 = vmatprep.subr.mxu0 0.0
    %1929 = vmatpush1.msra.mxu0 0.0
    %1930 = vmatprep.subr.mxu0 0.0
    %1931 = vmatpush1.msra.mxu0 0.0
    %1932 = vmatprep.subr.mxu0 0.0
    %1933 = vmatpush1.msra.mxu0 0.0
    %1934 = vmatprep.subr.mxu0 0.0
    %1935 = vmatpush1.msra.mxu0 0.0
    %1936 = vmatprep.subr.mxu0 0.0
    %1937 = vmatpush1.msra.mxu0 0.0
    %1938 = vmatprep.subr.mxu0 0.0
    %1939 = vmatpush1.msra.mxu0 0.0
    %1940 = vmatprep.subr.mxu0 0.0
    %1941 = vmatpush1.msra.mxu0 0.0
    %1942 = vmatprep.subr.mxu0 0.0
    %1943 = vmatpush1.msra.mxu0 0.0
    %1944 = vmatprep.subr.mxu0 0.0
    %1945 = vmatpush1.msra.mxu0 0.0
    %1946 = vmatprep.subr.mxu0 0.0
    %1947 = vmatpush1.msra.mxu0 0.0
    %1948 = vmatprep.subr.mxu0 0.0
    %1949 = vmatpush1.msra.mxu0 0.0
    %1950 = vmatprep.subr.mxu0 0.0
    %1951 = vmatpush1.msra.mxu0 0.0
    %1952 = vmatprep.subr.mxu0 0.0
    %1953 = vmatpush1.msra.mxu0 0.0
    %1954 = vmatprep.subr.mxu0 0.0
    %1955 = vmatpush1.msra.mxu0 0.0
    %1956 = vmatprep.subr.mxu0 0.0
    %1957 = vmatpush1.msra.mxu0 0.0
    %1958 = vmatprep.mubr.f32.mxu0 0.0
    %1959 = vmatmul.mubr.f32.gmra.mrb[0].mxu0 %v1892
    %v1960 = vpop.f32.mrb[0].mxu0
    %v1961 = vadd.f32 %v1816, %v1960
    %v1962 = vpop.f32.mrb[0].mxu0
    %v1963 = vadd.f32 %v1818, %v1962
    %1964 = vdwg.mxu0
    %1965 = vmatprep.subr.mxu0 %v1332
    %1966 = vmatpush1.msra.mxu0 %v1331
    %1967 = vmatprep.subr.mxu0 %v1336
    %1968 = vmatpush1.msra.mxu0 %v1335
    %1969 = vmatprep.subr.mxu0 %v1340
    %1970 = vmatpush1.msra.mxu0 %v1339
    %1971 = vmatprep.subr.mxu0 %v1344
    %1972 = vmatpush1.msra.mxu0 %v1343
    %1973 = vmatprep.subr.mxu0 %v1348
    %1974 = vmatpush1.msra.mxu0 %v1347
    %1975 = vmatprep.subr.mxu0 %v1352
    %1976 = vmatpush1.msra.mxu0 %v1351
    %1977 = vmatprep.subr.mxu0 %v1356
    %1978 = vmatpush1.msra.mxu0 %v1355
    %1979 = vmatprep.subr.mxu0 %v1360
    %1980 = vmatpush1.msra.mxu0 %v1359
    %1981 = vmatprep.subr.mxu0 0.0
    %1982 = vmatpush1.msra.mxu0 0.0
    %1983 = vmatprep.subr.mxu0 0.0
    %1984 = vmatpush1.msra.mxu0 0.0
    %1985 = vmatprep.subr.mxu0 0.0
    %1986 = vmatpush1.msra.mxu0 0.0
    %1987 = vmatprep.subr.mxu0 0.0
    %1988 = vmatpush1.msra.mxu0 0.0
    %1989 = vmatprep.subr.mxu0 0.0
    %1990 = vmatpush1.msra.mxu0 0.0
    %1991 = vmatprep.subr.mxu0 0.0
    %1992 = vmatpush1.msra.mxu0 0.0
    %1993 = vmatprep.subr.mxu0 0.0
    %1994 = vmatpush1.msra.mxu0 0.0
    %1995 = vmatprep.subr.mxu0 0.0
    %1996 = vmatpush1.msra.mxu0 0.0
    %1997 = vmatprep.subr.mxu0 0.0
    %1998 = vmatpush1.msra.mxu0 0.0
    %1999 = vmatprep.subr.mxu0 0.0
    %2000 = vmatpush1.msra.mxu0 0.0
    %2001 = vmatprep.subr.mxu0 0.0
    %2002 = vmatpush1.msra.mxu0 0.0
    %2003 = vmatprep.subr.mxu0 0.0
    %2004 = vmatpush1.msra.mxu0 0.0
    %2005 = vmatprep.subr.mxu0 0.0
    %2006 = vmatpush1.msra.mxu0 0.0
    %2007 = vmatprep.subr.mxu0 0.0
    %2008 = vmatpush1.msra.mxu0 0.0
    %2009 = vmatprep.subr.mxu0 0.0
    %2010 = vmatpush1.msra.mxu0 0.0
    %2011 = vmatprep.subr.mxu0 0.0
    %2012 = vmatpush1.msra.mxu0 0.0
    %2013 = vmatprep.subr.mxu0 0.0
    %2014 = vmatpush1.msra.mxu0 0.0
    %2015 = vmatprep.subr.mxu0 0.0
    %2016 = vmatpush1.msra.mxu0 0.0
    %2017 = vmatprep.subr.mxu0 0.0
    %2018 = vmatpush1.msra.mxu0 0.0
    %2019 = vmatprep.subr.mxu0 0.0
    %2020 = vmatpush1.msra.mxu0 0.0
    %2021 = vmatprep.subr.mxu0 0.0
    %2022 = vmatpush1.msra.mxu0 0.0
    %2023 = vmatprep.subr.mxu0 0.0
    %2024 = vmatpush1.msra.mxu0 0.0
    %2025 = vmatprep.subr.mxu0 0.0
    %2026 = vmatpush1.msra.mxu0 0.0
    %2027 = vmatprep.subr.mxu0 0.0
    %2028 = vmatpush1.msra.mxu0 0.0
    %2029 = vmatprep.mubr.f32.mxu0 0.0
    %2030 = vmatmul.mubr.f32.gmra.mrb[0].mxu0 %v1892
    %v2031 = vpop.f32.mrb[0].mxu0
    %v2032 = vadd.f32 %v1887, %v2031
    %v2033 = vpop.f32.mrb[0].mxu0
    %v2034 = vadd.f32 %v1889, %v2033
    %2035 = vdwg.mxu0
    %v2037 = vlaneseq
    %v2038 = vshrl.u32 %v2037, 7
    %v2039 = vsub.s32 0, %v2038
    %v2040 = vrot.slane %v1489, %v2039
    %v2041 = vlaneseq
    %v2042 = vshrl.u32 %v2041, 7
    %v2043 = vsub.s32 1, %v2042
    %v2044 = vrot.slane %v1489, %v2043
    %v2045 = vlaneseq
    %v2046 = vshrl.u32 %v2045, 7
    %v2047 = vsub.s32 2, %v2046
    %v2048 = vrot.slane %v1489, %v2047
    %v2049 = vlaneseq
    %v2050 = vshrl.u32 %v2049, 7
    %v2051 = vsub.s32 3, %v2050
    %v2052 = vrot.slane %v1489, %v2051
    %v2057 = vadd.f32 %v1961, %v2040
    %v2058 = vadd.f32 %v1963, %v2044
    %v2059 = vadd.f32 %v2032, %v2048
    %v2060 = vadd.f32 %v2034, %v2052
    %v2061 = vrot.slane %v2057, 4
    %v2062 = vadd.f32 %v2057, %v2061
    %v2063 = vrot.slane %v2062, 2
    %v2064 = vadd.f32 %v2062, %v2063
    %v2065 = vrot.slane %v2064, 1
    %v2066 = vadd.f32 %v2064, %v2065
    %v2067 = vrot.slane %v2058, 4
    %v2068 = vadd.f32 %v2058, %v2067
    %v2069 = vrot.slane %v2068, 2
    %v2070 = vadd.f32 %v2068, %v2069
    %v2071 = vrot.slane %v2070, 1
    %v2072 = vadd.f32 %v2070, %v2071
    %v2073 = vrot.slane %v2059, 4
    %v2074 = vadd.f32 %v2059, %v2073
    %v2075 = vrot.slane %v2074, 2
    %v2076 = vadd.f32 %v2074, %v2075
    %v2077 = vrot.slane %v2076, 1
    %v2078 = vadd.f32 %v2076, %v2077
    %v2079 = vrot.slane %v2060, 4
    %v2080 = vadd.f32 %v2060, %v2079
    %v2081 = vrot.slane %v2080, 2
    %v2082 = vadd.f32 %v2080, %v2081
    %v2083 = vrot.slane %v2082, 1
    %v2084 = vadd.f32 %v2082, %v2083
    %v2085 = vmul.f32 %v2066, 0.125
    %v2086 = vmul.f32 %v2072, 0.125
    %v2087 = vmul.f32 %v2078, 0.125
    %v2088 = vmul.f32 %v2084, 0.125
    %v2089 = vsub.f32 %v2057, %v2085
    %v2090 = vsub.f32 %v2058, %v2086
    %v2091 = vsub.f32 %v2059, %v2087
    %v2092 = vsub.f32 %v2060, %v2088
    %v2093 = vmul.f32 %v2089, %v2089
    %v2094 = vmul.f32 %v2090, %v2090
    %v2095 = vmul.f32 %v2091, %v2091
    %v2096 = vmul.f32 %v2092, %v2092
    %v2097 = vrot.slane %v2093, 4
    %v2098 = vadd.f32 %v2093, %v2097
    %v2099 = vrot.slane %v2098, 2
    %v2100 = vadd.f32 %v2098, %v2099
    %v2101 = vrot.slane %v2100, 1
    %v2102 = vadd.f32 %v2100, %v2101
    %v2103 = vrot.slane %v2094, 4
    %v2104 = vadd.f32 %v2094, %v2103
    %v2105 = vrot.slane %v2104, 2
    %v2106 = vadd.f32 %v2104, %v2105
    %v2107 = vrot.slane %v2106, 1
    %v2108 = vadd.f32 %v2106, %v2107
    %v2109 = vrot.slane %v2095, 4
    %v2110 = vadd.f32 %v2095, %v2109
    %v2111 = vrot.slane %v2110, 2
    %v2112 = vadd.f32 %v2110, %v2111
    %v2113 = vrot.slane %v2112, 1
    %v2114 = vadd.f32 %v2112, %v2113
    %v2115 = vrot.slane %v2096, 4
    %v2116 = vadd.f32 %v2096, %v2115
    %v2117 = vrot.slane %v2116, 2
    %v2118 = vadd.f32 %v2116, %v2117
    %v2119 = vrot.slane %v2118, 1
    %v2120 = vadd.f32 %v2118, %v2119
    %v2121 = vmul.f32 %v2102, 0.125
    %v2122 = vmul.f32 %v2108, 0.125
    %v2123 = vmul.f32 %v2114, 0.125
    %v2124 = vmul.f32 %v2120, 0.125
    %v2125 = vadd.f32 %v2121, 0.001
    %v2126 = vadd.f32 %v2122, 0.001
    %v2127 = vadd.f32 %v2123, 0.001
    %v2128 = vadd.f32 %v2124, 0.001
    %v2129 = vrsqrt.pop %v2125
    %v2130 = vrsqrt.pop %v2126
    %v2131 = vrsqrt.pop %v2127
    %v2132 = vrsqrt.pop %v2128
    %v2133 = vmul.f32 %v2089, %v2129
    %v2134 = vmul.f32 %v2090, %v2130
    %v2135 = vmul.f32 %v2091, %v2131
    %v2136 = vmul.f32 %v2092, %v2132
    %v2137 = vtanh.pop %v2133
    %v2138 = vtanh.pop %v2134
    %v2139 = vtanh.pop %v2135
    %v2140 = vtanh.pop %v2136
    %v2142 = vlaneseq
    %v2143 = vshrl.u32 %v2142, 7
    %v2144 = vsub.s32 0, %v2143
    %v2145 = vrot.slane %v1618, %v2144
    %v2146 = vlaneseq
    %v2147 = vshrl.u32 %v2146, 7
    %v2148 = vsub.s32 1, %v2147
    %v2149 = vrot.slane %v1618, %v2148
    %2152 = vmatprep.subr.mxu0 %v1491
    %2153 = vmatpush1.msra.mxu0 %v1490
    %2154 = vmatprep.subr.mxu0 %v1493
    %2155 = vmatpush1.msra.mxu0 %v1492
    %2156 = vmatprep.subr.mxu0 %v1495
    %2157 = vmatpush1.msra.mxu0 %v1494
    %2158 = vmatprep.subr.mxu0 %v1497
    %2159 = vmatpush1.msra.mxu0 %v1496
    %2160 = vmatprep.subr.mxu0 %v1499
    %2161 = vmatpush1.msra.mxu0 %v1498
    %2162 = vmatprep.subr.mxu0 %v1501
    %2163 = vmatpush1.msra.mxu0 %v1500
    %2164 = vmatprep.subr.mxu0 %v1503
    %2165 = vmatpush1.msra.mxu0 %v1502
    %2166 = vmatprep.subr.mxu0 %v1505
    %2167 = vmatpush1.msra.mxu0 %v1504
    %2168 = vmatprep.subr.mxu0 %v1507
    %2169 = vmatpush1.msra.mxu0 %v1506
    %2170 = vmatprep.subr.mxu0 %v1509
    %2171 = vmatpush1.msra.mxu0 %v1508
    %2172 = vmatprep.subr.mxu0 %v1511
    %2173 = vmatpush1.msra.mxu0 %v1510
    %2174 = vmatprep.subr.mxu0 %v1513
    %2175 = vmatpush1.msra.mxu0 %v1512
    %2176 = vmatprep.subr.mxu0 %v1515
    %2177 = vmatpush1.msra.mxu0 %v1514
    %2178 = vmatprep.subr.mxu0 %v1517
    %2179 = vmatpush1.msra.mxu0 %v1516
    %2180 = vmatprep.subr.mxu0 %v1519
    %2181 = vmatpush1.msra.mxu0 %v1518
    %2182 = vmatprep.subr.mxu0 %v1521
    %2183 = vmatpush1.msra.mxu0 %v1520
    %2184 = vmatprep.subr.mxu0 %v1523
    %2185 = vmatpush1.msra.mxu0 %v1522
    %2186 = vmatprep.subr.mxu0 %v1525
    %2187 = vmatpush1.msra.mxu0 %v1524
    %2188 = vmatprep.subr.mxu0 %v1527
    %2189 = vmatpush1.msra.mxu0 %v1526
    %2190 = vmatprep.subr.mxu0 %v1529
    %2191 = vmatpush1.msra.mxu0 %v1528
    %2192 = vmatprep.subr.mxu0 %v1531
    %2193 = vmatpush1.msra.mxu0 %v1530
    %2194 = vmatprep.subr.mxu0 %v1533
    %2195 = vmatpush1.msra.mxu0 %v1532
    %2196 = vmatprep.subr.mxu0 %v1535
    %2197 = vmatpush1.msra.mxu0 %v1534
    %2198 = vmatprep.subr.mxu0 %v1537
    %2199 = vmatpush1.msra.mxu0 %v1536
    %2200 = vmatprep.subr.mxu0 %v1539
    %2201 = vmatpush1.msra.mxu0 %v1538
    %2202 = vmatprep.subr.mxu0 %v1541
    %2203 = vmatpush1.msra.mxu0 %v1540
    %2204 = vmatprep.subr.mxu0 %v1543
    %2205 = vmatpush1.msra.mxu0 %v1542
    %2206 = vmatprep.subr.mxu0 %v1545
    %2207 = vmatpush1.msra.mxu0 %v1544
    %2208 = vmatprep.subr.mxu0 %v1547
    %2209 = vmatpush1.msra.mxu0 %v1546
    %2210 = vmatprep.subr.mxu0 %v1549
    %2211 = vmatpush1.msra.mxu0 %v1548
    %2212 = vmatprep.subr.mxu0 %v1551
    %2213 = vmatpush1.msra.mxu0 %v1550
    %2214 = vmatprep.subr.mxu0 %v1553
    %2215 = vmatpush1.msra.mxu0 %v1552
    %2216 = vmatprep.mubr.f32.mxu0 %v2138
    %2217 = vmatmul.mubr.f32.gmra.mrb[0].mxu0 %v2137
    %v2218 = vpop.f32.mrb[0].mxu0
    %v2219 = vadd.f32 %v2145, %v2218
    %v2220 = vpop.f32.mrb[0].mxu0
    %v2221 = vadd.f32 %v2149, %v2220
    %2222 = vdwg.mxu0
    %2223 = vmatprep.subr.mxu0 %v1555
    %2224 = vmatpush1.msra.mxu0 %v1554
    %2225 = vmatprep.subr.mxu0 %v1557
    %2226 = vmatpush1.msra.mxu0 %v1556
    %2227 = vmatprep.subr.mxu0 %v1559
    %2228 = vmatpush1.msra.mxu0 %v1558
    %2229 = vmatprep.subr.mxu0 %v1561
    %2230 = vmatpush1.msra.mxu0 %v1560
    %2231 = vmatprep.subr.mxu0 %v1563
    %2232 = vmatpush1.msra.mxu0 %v1562
    %2233 = vmatprep.subr.mxu0 %v1565
    %2234 = vmatpush1.msra.mxu0 %v1564
    %2235 = vmatprep.subr.mxu0 %v1567
    %2236 = vmatpush1.msra.mxu0 %v1566
    %2237 = vmatprep.subr.mxu0 %v1569
    %2238 = vmatpush1.msra.mxu0 %v1568
    %2239 = vmatprep.subr.mxu0 %v1571
    %2240 = vmatpush1.msra.mxu0 %v1570
    %2241 = vmatprep.subr.mxu0 %v1573
    %2242 = vmatpush1.msra.mxu0 %v1572
    %2243 = vmatprep.subr.mxu0 %v1575
    %2244 = vmatpush1.msra.mxu0 %v1574
    %2245 = vmatprep.subr.mxu0 %v1577
    %2246 = vmatpush1.msra.mxu0 %v1576
    %2247 = vmatprep.subr.mxu0 %v1579
    %2248 = vmatpush1.msra.mxu0 %v1578
    %2249 = vmatprep.subr.mxu0 %v1581
    %2250 = vmatpush1.msra.mxu0 %v1580
    %2251 = vmatprep.subr.mxu0 %v1583
    %2252 = vmatpush1.msra.mxu0 %v1582
    %2253 = vmatprep.subr.mxu0 %v1585
    %2254 = vmatpush1.msra.mxu0 %v1584
    %2255 = vmatprep.subr.mxu0 %v1587
    %2256 = vmatpush1.msra.mxu0 %v1586
    %2257 = vmatprep.subr.mxu0 %v1589
    %2258 = vmatpush1.msra.mxu0 %v1588
    %2259 = vmatprep.subr.mxu0 %v1591
    %2260 = vmatpush1.msra.mxu0 %v1590
    %2261 = vmatprep.subr.mxu0 %v1593
    %2262 = vmatpush1.msra.mxu0 %v1592
    %2263 = vmatprep.subr.mxu0 %v1595
    %2264 = vmatpush1.msra.mxu0 %v1594
    %2265 = vmatprep.subr.mxu0 %v1597
    %2266 = vmatpush1.msra.mxu0 %v1596
    %2267 = vmatprep.subr.mxu0 %v1599
    %2268 = vmatpush1.msra.mxu0 %v1598
    %2269 = vmatprep.subr.mxu0 %v1601
    %2270 = vmatpush1.msra.mxu0 %v1600
    %2271 = vmatprep.subr.mxu0 %v1603
    %2272 = vmatpush1.msra.mxu0 %v1602
    %2273 = vmatprep.subr.mxu0 %v1605
    %2274 = vmatpush1.msra.mxu0 %v1604
    %2275 = vmatprep.subr.mxu0 %v1607
    %2276 = vmatpush1.msra.mxu0 %v1606
    %2277 = vmatprep.subr.mxu0 %v1609
    %2278 = vmatpush1.msra.mxu0 %v1608
    %2279 = vmatprep.subr.mxu0 %v1611
    %2280 = vmatpush1.msra.mxu0 %v1610
    %2281 = vmatprep.subr.mxu0 %v1613
    %2282 = vmatpush1.msra.mxu0 %v1612
    %2283 = vmatprep.subr.mxu0 %v1615
    %2284 = vmatpush1.msra.mxu0 %v1614
    %2285 = vmatprep.subr.mxu0 %v1617
    %2286 = vmatpush1.msra.mxu0 %v1616
    %2287 = vmatprep.mubr.f32.mxu0 %v2140
    %2288 = vmatmul.mubr.f32.gmra.mrb[0].mxu0 %v2139
    %v2289 = vpop.f32.mrb[0].mxu0
    %v2290 = vadd.f32 %v2219, %v2289
    %v2291 = vpop.f32.mrb[0].mxu0
    %v2292 = vadd.f32 %v2221, %v2291
    %2293 = vdwg.mxu0
    %v2294 = vrot.slane %v2290, 4
    %v2295 = vadd.f32 %v2290, %v2294
    %v2296 = vrot.slane %v2295, 2
    %v2297 = vadd.f32 %v2295, %v2296
    %v2298 = vrot.slane %v2297, 1
    %v2299 = vadd.f32 %v2297, %v2298
    %v2300 = vrot.slane %v2292, 4
    %v2301 = vadd.f32 %v2292, %v2300
    %v2302 = vrot.slane %v2301, 2
    %v2303 = vadd.f32 %v2301, %v2302
    %v2304 = vrot.slane %v2303, 1
    %v2305 = vadd.f32 %v2303, %v2304
    %v2306 = vmul.f32 %v2299, 0.125
    %v2307 = vmul.f32 %v2305, 0.125
    %v2308 = vsub.f32 %v2290, %v2306
    %v2309 = vsub.f32 %v2292, %v2307
    %v2310 = vmul.f32 %v2308, %v2308
    %v2311 = vmul.f32 %v2309, %v2309
    %v2312 = vrot.slane %v2310, 4
    %v2313 = vadd.f32 %v2310, %v2312
    %v2314 = vrot.slane %v2313, 2
    %v2315 = vadd.f32 %v2313, %v2314
    %v2316 = vrot.slane %v2315, 1
    %v2317 = vadd.f32 %v2315, %v2316
    %v2318 = vrot.slane %v2311, 4
    %v2319 = vadd.f32 %v2311, %v2318
    %v2320 = vrot.slane %v2319, 2
    %v2321 = vadd.f32 %v2319, %v2320
    %v2322 = vrot.slane %v2321, 1
    %v2323 = vadd.f32 %v2321, %v2322
    %v2324 = vmul.f32 %v2317, 0.125
    %v2325 = vmul.f32 %v2323, 0.125
    %v2326 = vadd.f32 %v2324, 0.001
    %v2327 = vadd.f32 %v2325, 0.001
    %v2328 = vrsqrt.pop %v2326
    %v2329 = vrsqrt.pop %v2327
    %v2330 = vmul.f32 %v2308, %v2328
    %v2331 = vmul.f32 %v2309, %v2329
    %v2332 = vtanh.pop %v2330
    %v2333 = vtanh.pop %v2331
    %v2335 = vlaneseq
    %v2336 = vshrl.u32 %v2335, 7
    %v2337 = vsub.s32 0, %v2336
    %v2338 = vrot.slane %v1683, %v2337
    %v2339 = vlaneseq
    %v2340 = vshrl.u32 %v2339, 7
    %v2341 = vsub.s32 1, %v2340
    %v2342 = vrot.slane %v1683, %v2341
    %2345 = vmatprep.subr.mxu0 %v1620
    %2346 = vmatpush1.msra.mxu0 %v1619
    %2347 = vmatprep.subr.mxu0 %v1622
    %2348 = vmatpush1.msra.mxu0 %v1621
    %2349 = vmatprep.subr.mxu0 %v1624
    %2350 = vmatpush1.msra.mxu0 %v1623
    %2351 = vmatprep.subr.mxu0 %v1626
    %2352 = vmatpush1.msra.mxu0 %v1625
    %2353 = vmatprep.subr.mxu0 %v1628
    %2354 = vmatpush1.msra.mxu0 %v1627
    %2355 = vmatprep.subr.mxu0 %v1630
    %2356 = vmatpush1.msra.mxu0 %v1629
    %2357 = vmatprep.subr.mxu0 %v1632
    %2358 = vmatpush1.msra.mxu0 %v1631
    %2359 = vmatprep.subr.mxu0 %v1634
    %2360 = vmatpush1.msra.mxu0 %v1633
    %2361 = vmatprep.subr.mxu0 %v1636
    %2362 = vmatpush1.msra.mxu0 %v1635
    %2363 = vmatprep.subr.mxu0 %v1638
    %2364 = vmatpush1.msra.mxu0 %v1637
    %2365 = vmatprep.subr.mxu0 %v1640
    %2366 = vmatpush1.msra.mxu0 %v1639
    %2367 = vmatprep.subr.mxu0 %v1642
    %2368 = vmatpush1.msra.mxu0 %v1641
    %2369 = vmatprep.subr.mxu0 %v1644
    %2370 = vmatpush1.msra.mxu0 %v1643
    %2371 = vmatprep.subr.mxu0 %v1646
    %2372 = vmatpush1.msra.mxu0 %v1645
    %2373 = vmatprep.subr.mxu0 %v1648
    %2374 = vmatpush1.msra.mxu0 %v1647
    %2375 = vmatprep.subr.mxu0 %v1650
    %2376 = vmatpush1.msra.mxu0 %v1649
    %2377 = vmatprep.subr.mxu0 %v1652
    %2378 = vmatpush1.msra.mxu0 %v1651
    %2379 = vmatprep.subr.mxu0 %v1654
    %2380 = vmatpush1.msra.mxu0 %v1653
    %2381 = vmatprep.subr.mxu0 %v1656
    %2382 = vmatpush1.msra.mxu0 %v1655
    %2383 = vmatprep.subr.mxu0 %v1658
    %2384 = vmatpush1.msra.mxu0 %v1657
    %2385 = vmatprep.subr.mxu0 %v1660
    %2386 = vmatpush1.msra.mxu0 %v1659
    %2387 = vmatprep.subr.mxu0 %v1662
    %2388 = vmatpush1.msra.mxu0 %v1661
    %2389 = vmatprep.subr.mxu0 %v1664
    %2390 = vmatpush1.msra.mxu0 %v1663
    %2391 = vmatprep.subr.mxu0 %v1666
    %2392 = vmatpush1.msra.mxu0 %v1665
    %2393 = vmatprep.subr.mxu0 %v1668
    %2394 = vmatpush1.msra.mxu0 %v1667
    %2395 = vmatprep.subr.mxu0 %v1670
    %2396 = vmatpush1.msra.mxu0 %v1669
    %2397 = vmatprep.subr.mxu0 %v1672
    %2398 = vmatpush1.msra.mxu0 %v1671
    %2399 = vmatprep.subr.mxu0 %v1674
    %2400 = vmatpush1.msra.mxu0 %v1673
    %2401 = vmatprep.subr.mxu0 %v1676
    %2402 = vmatpush1.msra.mxu0 %v1675
    %2403 = vmatprep.subr.mxu0 %v1678
    %2404 = vmatpush1.msra.mxu0 %v1677
    %2405 = vmatprep.subr.mxu0 %v1680
    %2406 = vmatpush1.msra.mxu0 %v1679
    %2407 = vmatprep.subr.mxu0 %v1682
    %2408 = vmatpush1.msra.mxu0 %v1681
    %2409 = vmatprep.mubr.f32.mxu0 %v2333
    %2410 = vmatmul.mubr.f32.gmra.mrb[0].mxu0 %v2332
    %v2411 = vpop.f32.mrb[0].mxu0
    %v2412 = vadd.f32 %v2338, %v2411
    %v2413 = vpop.f32.mrb[0].mxu0
    %v2414 = vadd.f32 %v2342, %v2413
    %2415 = vdwg.mxu0
    %v2416 = vrot.slane %v2412, 4
    %v2417 = vadd.f32 %v2412, %v2416
    %v2418 = vrot.slane %v2417, 2
    %v2419 = vadd.f32 %v2417, %v2418
    %v2420 = vrot.slane %v2419, 1
    %v2421 = vadd.f32 %v2419, %v2420
    %v2422 = vrot.slane %v2414, 4
    %v2423 = vadd.f32 %v2414, %v2422
    %v2424 = vrot.slane %v2423, 2
    %v2425 = vadd.f32 %v2423, %v2424
    %v2426 = vrot.slane %v2425, 1
    %v2427 = vadd.f32 %v2425, %v2426
    %v2428 = vmul.f32 %v2421, 0.125
    %v2429 = vmul.f32 %v2427, 0.125
    %v2430 = vsub.f32 %v2412, %v2428
    %v2431 = vsub.f32 %v2414, %v2429
    %v2432 = vmul.f32 %v2430, %v2430
    %v2433 = vmul.f32 %v2431, %v2431
    %v2434 = vrot.slane %v2432, 4
    %v2435 = vadd.f32 %v2432, %v2434
    %v2436 = vrot.slane %v2435, 2
    %v2437 = vadd.f32 %v2435, %v2436
    %v2438 = vrot.slane %v2437, 1
    %v2439 = vadd.f32 %v2437, %v2438
    %v2440 = vrot.slane %v2433, 4
    %v2441 = vadd.f32 %v2433, %v2440
    %v2442 = vrot.slane %v2441, 2
    %v2443 = vadd.f32 %v2441, %v2442
    %v2444 = vrot.slane %v2443, 1
    %v2445 = vadd.f32 %v2443, %v2444
    %v2446 = vmul.f32 %v2439, 0.125
    %v2447 = vmul.f32 %v2445, 0.125
    %v2448 = vadd.f32 %v2446, 0.001
    %v2449 = vadd.f32 %v2447, 0.001
    %v2450 = vrsqrt.pop %v2448
    %v2451 = vrsqrt.pop %v2449
    %v2452 = vmul.f32 %v2430, %v2450
    %v2453 = vmul.f32 %v2431, %v2451
    %v2454 = vtanh.pop %v2452
    %v2455 = vtanh.pop %v2453
    %v2457 = vlaneseq
    %v2458 = vshrl.u32 %v2457, 7
    %v2459 = vsub.s32 0, %v2458
    %v2460 = vrot.slane %v1748, %v2459
    %v2461 = vlaneseq
    %v2462 = vshrl.u32 %v2461, 7
    %v2463 = vsub.s32 1, %v2462
    %v2464 = vrot.slane %v1748, %v2463
    %2467 = vmatprep.subr.mxu0 %v1685
    %2468 = vmatpush1.msra.mxu0 %v1684
    %2469 = vmatprep.subr.mxu0 %v1687
    %2470 = vmatpush1.msra.mxu0 %v1686
    %2471 = vmatprep.subr.mxu0 %v1689
    %2472 = vmatpush1.msra.mxu0 %v1688
    %2473 = vmatprep.subr.mxu0 %v1691
    %2474 = vmatpush1.msra.mxu0 %v1690
    %2475 = vmatprep.subr.mxu0 %v1693
    %2476 = vmatpush1.msra.mxu0 %v1692
    %2477 = vmatprep.subr.mxu0 %v1695
    %2478 = vmatpush1.msra.mxu0 %v1694
    %2479 = vmatprep.subr.mxu0 %v1697
    %2480 = vmatpush1.msra.mxu0 %v1696
    %2481 = vmatprep.subr.mxu0 %v1699
    %2482 = vmatpush1.msra.mxu0 %v1698
    %2483 = vmatprep.subr.mxu0 %v1701
    %2484 = vmatpush1.msra.mxu0 %v1700
    %2485 = vmatprep.subr.mxu0 %v1703
    %2486 = vmatpush1.msra.mxu0 %v1702
    %2487 = vmatprep.subr.mxu0 %v1705
    %2488 = vmatpush1.msra.mxu0 %v1704
    %2489 = vmatprep.subr.mxu0 %v1707
    %2490 = vmatpush1.msra.mxu0 %v1706
    %2491 = vmatprep.subr.mxu0 %v1709
    %2492 = vmatpush1.msra.mxu0 %v1708
    %2493 = vmatprep.subr.mxu0 %v1711
    %2494 = vmatpush1.msra.mxu0 %v1710
    %2495 = vmatprep.subr.mxu0 %v1713
    %2496 = vmatpush1.msra.mxu0 %v1712
    %2497 = vmatprep.subr.mxu0 %v1715
    %2498 = vmatpush1.msra.mxu0 %v1714
    %2499 = vmatprep.subr.mxu0 %v1717
    %2500 = vmatpush1.msra.mxu0 %v1716
    %2501 = vmatprep.subr.mxu0 %v1719
    %2502 = vmatpush1.msra.mxu0 %v1718
    %2503 = vmatprep.subr.mxu0 %v1721
    %2504 = vmatpush1.msra.mxu0 %v1720
    %2505 = vmatprep.subr.mxu0 %v1723
    %2506 = vmatpush1.msra.mxu0 %v1722
    %2507 = vmatprep.subr.mxu0 %v1725
    %2508 = vmatpush1.msra.mxu0 %v1724
    %2509 = vmatprep.subr.mxu0 %v1727
    %2510 = vmatpush1.msra.mxu0 %v1726
    %2511 = vmatprep.subr.mxu0 %v1729
    %2512 = vmatpush1.msra.mxu0 %v1728
    %2513 = vmatprep.subr.mxu0 %v1731
    %2514 = vmatpush1.msra.mxu0 %v1730
    %2515 = vmatprep.subr.mxu0 %v1733
    %2516 = vmatpush1.msra.mxu0 %v1732
    %2517 = vmatprep.subr.mxu0 %v1735
    %2518 = vmatpush1.msra.mxu0 %v1734
    %2519 = vmatprep.subr.mxu0 %v1737
    %2520 = vmatpush1.msra.mxu0 %v1736
    %2521 = vmatprep.subr.mxu0 %v1739
    %2522 = vmatpush1.msra.mxu0 %v1738
    %2523 = vmatprep.subr.mxu0 %v1741
    %2524 = vmatpush1.msra.mxu0 %v1740
    %2525 = vmatprep.subr.mxu0 %v1743
    %2526 = vmatpush1.msra.mxu0 %v1742
    %2527 = vmatprep.subr.mxu0 %v1745
    %2528 = vmatpush1.msra.mxu0 %v1744
    %2529 = vmatprep.subr.mxu0 %v1747
    %2530 = vmatpush1.msra.mxu0 %v1746
    %2531 = vmatprep.mubr.f32.mxu0 %v2455
    %2532 = vmatmul.mubr.f32.gmra.mrb[0].mxu0 %v2454
    %v2533 = vpop.f32.mrb[0].mxu0
    %v2534 = vadd.f32 %v2460, %v2533
    %v2535 = vpop.f32.mrb[0].mxu0
    %v2536 = vadd.f32 %v2464, %v2535
    %2537 = vdwg.mxu0
    %v2538 = vmul.f32 %v1322, %v2534
    %v2539 = vmul.f32 %v1324, %v2536
    %v2540 = vadd.f32 %v2538, %v2539
    %2541 = vadd.xlane.f32.xlu0 %v2540
    %v2542 = vpop.xlane.xlu0 %2541
    %v2543 = vlaneseq
    %v2544 = vshrl.u32 %v2543, 7
    %vm2545 = vcmp.lt.s32.totalorder %v2544, 0
    %v2546 = vsub.s32 0, %v2544
    %v2547 = vsel %vm2545, %v2546, %v2544
    %v2548 = vshrl.u32 %v2547, 1
    %v2549 = vand.u32 %v2547, 1
    %v2550 = vsub.s32 0, %v2549
    %v2551 = vsel %vm2545, %v2550, %v2549
    %vm2552 = vcmp.ne.s32.totalorder %v2551, 0
    %vm2553 = vcmp.lt.s32.totalorder %v2551, 0
    %vm2554 = vmand %vm2553, %vm2552
    %v2555 = vadd.s32 %v2551, 2
    %v2556 = vsel %vm2554, %v2555, %v2551
    %vm2557 = vcmp.eq.s32.totalorder %v2556, 0
    %v2558 = vsel %vm2557, 1.0, 0.0
    %v2559 = vsub.f32 %v2542, %v2558
    %v2560 = vmul.f32 %v2559, %v2559
    %vm2561 = vcmask 7168
    %v2562 = vsel %vm2561, %v2560, 0.0
    %2563 = vadd.xlane.f32.xlu0 %v2562
    %v2564 = vpop.xlane.xlu0 %2563
    %v2565 = vrot.slane %v2564, 4
    %v2566 = vadd.f32 %v2564, %v2565
    %v2567 = vrot.slane %v2566, 2
    %v2568 = vadd.f32 %v2566, %v2567
    %v2569 = vrot.slane %v2568, 1
    %v2570 = vadd.f32 %v2568, %v2569
    %s2571 = vtos %v2570
    %v2572 = vstv %s2571
    %v2573 = vmul.f32 %v2572, 0.125
    %2574 = vst [vmem:[#allocation8] sm:$0x1] %v2573
    // Predicated region
    $region102: #{dropoutnet_forward.1} parent=1 // pred_check
      _
    $region103: #{dropoutnet_forward.1} parent=1 // pred_check_branch
      %2576 = sbr.rel (0) target = $region105
    $region104: #{dropoutnet_forward.1} parent=1 // pred_region
      %s2578 = ssub.s32 16, 16
      %2579 = vsyncadd [#allocation4], %s2578
      %s2581 = sshll.u32 [#allocation8], 4
      %s2582 = int_to_ptr.vmem [resolvable:$true] %s2581
      %2584 = dma.vmem_to_hbm [thread:$0]  %s2582, 16, %s22, [#allocation4]
    $region105: #{dropoutnet_forward.1} parent=1 // pred_fallthru
      _
    // Predicated region
    $region106: #{dropoutnet_forward.1} parent=1 // pred_check
      _
    $region107: #{dropoutnet_forward.1} parent=1 // pred_check_branch
      %2586 = sbr.rel (0) target = $region109
    $region108: #{dropoutnet_forward.1} parent=1 // pred_region
      %2587 = dma.done [#allocation4], 16
    $region109: #{dropoutnet_forward.1} parent=1 // pred_fallthru
      _
    %2588 = vsyncpa [#allocation3], 1
    %2589 = vsyncpa [#allocation6], 1
    %2590 = vsyncpa [#allocation4], 1

</llo_original>
